<compile_context>
chip_gen: v7x
topology: tpu7x:2x2x1
jax: 0.10.0
libtpu: 0.0.40
codegen_flags: <defaults>
</compile_context>

<pallas_src>
import jax
import jax.numpy as jnp
from jax import lax
from jax.experimental import pallas as pl
from jax.experimental.pallas import tpu as pltpu


# ------------------- wrapper-side weight preprocessing (tiny) -------------------
def _banded_pool_weights(w_hwio, W):
    """(3,3,Cin,Cout) HWIO conv weights -> (3, W*Cin, W*Cout) banded matrices.

    band[ky][w_in*Cin + ci, parity*(W//2)*Cout + wh*Cout + co] = w[ky, kx, ci, co]
    with w_out = 2*wh + parity and w_in = w_out + kx - 1; entries whose w_in
    falls outside [0, W) are dropped (== SAME zero padding along W).  Output
    columns are de-interleaved into [even w | odd w] halves so the 2x2 maxpool
    along W becomes an elementwise max of two aligned 256-lane halves.
    """
    _, _, Cin, Cout = w_hwio.shape
    Wh = W // 2
    w_out = jnp.arange(W)
    w_in = jnp.arange(W)
    bands = []
    for ky in range(3):
        acc = jnp.zeros((W, Cin, W, Cout), w_hwio.dtype)
        for kx in range(3):
            src = w_out + (kx - 1)                      # input column feeding output col
            valid = (src >= 0) & (src < W)
            ind = ((w_in[:, None] == src[None, :]) & valid[None, :]).astype(w_hwio.dtype)
            acc = acc + ind[:, None, :, None] * w_hwio[ky, kx][None, :, None, :]
        acc = acc.reshape(W, Cin, Wh, 2, Cout)          # (w_in, ci, wh, parity, co)
        acc = jnp.transpose(acc, (0, 1, 3, 2, 4))       # (w_in, ci, parity, wh, co)
        bands.append(acc.reshape(W * Cin, W * Cout))
    return jnp.stack(bands, axis=0)


def _bias_row(b, W):
    # lane index n has co = n % Cout in both (interleaved / de-interleaved) orders
    return jnp.tile(b, W).reshape(1, W * b.shape[0])


def _deinterleaved_to_nchw(c, H, W, Cout):
    """(B, H, W*Cout) kernel layout, columns de-interleaved [even|odd] -> (B, Cout, H, W)."""
    B = c.shape[0]
    Wh = W // 2
    t = c.reshape(B, H, 2, Wh, Cout)                    # (b, h, parity, wh, co)
    t = jnp.transpose(t, (0, 4, 1, 3, 2))               # (b, co, h, wh, parity)
    return t.reshape(B, Cout, H, W)                     # w = 2*wh + parity


# ------------------------------ the fused kernel ------------------------------
def _convnet_kernel(x_ref, band1_ref, bias1_ref, band2_ref, bias2_ref,
                    band3_ref, bias3_ref, wf1_ref, bf1_ref, wf2_ref, bf2_ref,
                    c1_ref, c2_ref, c3_ref, f1_ref, f2_ref):

    def conv_relu_pool(x_rows, band_ref, bias_ref, c_ref, H, W, Cout):
        # x_rows: (H, W*Cin) packed rows; band_ref: (3, W*Cin, W*Cout)
        wc_in = x_rows.shape[1]
        half = (W // 2) * Cout
        zero_row = jnp.zeros((1, wc_in), jnp.float32)
        x_prev = jnp.concatenate([zero_row, x_rows[:H - 1, :]], axis=0)   # row h-1
        x_next = jnp.concatenate([x_rows[1:, :], zero_row], axis=0)       # row h+1
        acc = jnp.dot(x_prev, band_ref[0], preferred_element_type=jnp.float32)
        acc = acc + jnp.dot(x_rows, band_ref[1], preferred_element_type=jnp.float32)
        acc = acc + jnp.dot(x_next, band_ref[2], preferred_element_type=jnp.float32)
        y = jnp.maximum(acc + bias_ref[...], 0.0)        # (H, W*Cout), post-ReLU
        c_ref[0] = y.astype(c_ref.dtype)                 # lane-dense 512-wide store
        colmax = jnp.maximum(y[:, :half], y[:, half:])   # pool along W (even|odd halves)
        return jnp.max(colmax.reshape(H // 2, 2, half), axis=1)   # pool along H

    x0 = x_ref[0].astype(jnp.float32)                                    # (32, 96)
    p1 = conv_relu_pool(x0, band1_ref, bias1_ref, c1_ref, 32, 32, 16)    # (16, 256)
    p2 = conv_relu_pool(p1, band2_ref, bias2_ref, c2_ref, 16, 16, 32)    # ( 8, 256)
    p3 = conv_relu_pool(p2, band3_ref, bias3_ref, c3_ref, 8, 8, 64)      # ( 4, 256)

    # fc1: each of the 4 rows of p3 hits its matching 256-row block of the
    # (pre-permuted) fc1 weight; accumulate in f32.
    h = jnp.dot(p3[0:1, :], wf1_ref[0], preferred_element_type=jnp.float32)
    for r in range(1, 4):
        h = h + jnp.dot(p3[r:r + 1, :], wf1_ref[r], preferred_element_type=jnp.float32)
    h = jnp.maximum(h + bf1_ref[...], 0.0)               # fc1 post-ReLU, (1, 128)
    f1_ref[0] = h.astype(f1_ref.dtype)
    o = jnp.dot(h, wf2_ref[...], preferred_element_type=jnp.float32) + bf2_ref[...]
    f2_ref[0] = o.astype(f2_ref.dtype)


# --------------------------------- forward ---------------------------------
def convnet_forward(x_nchw, params):
    B, Cin, H, W = x_nchw.shape
    assert (Cin, H, W) == (3, 32, 32), "fc1 = 64*4*4 requires 3x32x32 input"

    # lane-dense packed rows: (B, H, W*Cin)
    x_rows = jnp.transpose(x_nchw, (0, 2, 3, 1)).reshape(B, H, W * Cin)

    band1 = _banded_pool_weights(params["w1"], 32)       # (3,  96, 512)
    band2 = _banded_pool_weights(params["w2"], 16)       # (3, 256, 512)
    band3 = _banded_pool_weights(params["w3"], 8)        # (3, 256, 512)
    bias1 = _bias_row(params["b1"], 32)                  # (1, 512)
    bias2 = _bias_row(params["b2"], 16)
    bias3 = _bias_row(params["b3"], 8)
    # fc1 rows: torch NCHW-flatten (c*16 + h*4 + w) -> kernel packed order (h, w*64 + c)
    wf1p = params["wf1"].reshape(64, 4, 4, 128).transpose(1, 2, 0, 3).reshape(4, 256, 128)
    bf1 = params["bf1"].reshape(1, 128)
    wf2 = params["wf2"]                                  # (128, 10)
    bf2 = params["bf2"].reshape(1, 10)

    inv = lambda shape: pl.BlockSpec(shape, lambda bi: (0,) * len(shape))  # grid-invariant

    c1, c2, c3, f1, f2 = pl.pallas_call(
        _convnet_kernel,
        out_shape=(
            jax.ShapeDtypeStruct((B, 32, 512), x_nchw.dtype),
            jax.ShapeDtypeStruct((B, 16, 512), x_nchw.dtype),
            jax.ShapeDtypeStruct((B, 8, 512), x_nchw.dtype),
            jax.ShapeDtypeStruct((B, 1, 128), x_nchw.dtype),
            jax.ShapeDtypeStruct((B, 1, 10), x_nchw.dtype),
        ),
        grid=(B,),
        in_specs=[
            pl.BlockSpec((1, H, W * Cin), lambda bi: (bi, 0, 0)),
            inv((3, 96, 512)), inv((1, 512)),
            inv((3, 256, 512)), inv((1, 512)),
            inv((3, 256, 512)), inv((1, 512)),
            inv((4, 256, 128)), inv((1, 128)),
            inv((128, 10)), inv((1, 10)),
        ],
        out_specs=(
            pl.BlockSpec((1, 32, 512), lambda bi: (bi, 0, 0)),
            pl.BlockSpec((1, 16, 512), lambda bi: (bi, 0, 0)),
            pl.BlockSpec((1, 8, 512), lambda bi: (bi, 0, 0)),
            pl.BlockSpec((1, 1, 128), lambda bi: (bi, 0, 0)),
            pl.BlockSpec((1, 1, 10), lambda bi: (bi, 0, 0)),
        ),
        compiler_params=pltpu.CompilerParams(
            dimension_semantics=("parallel",),
            vmem_limit_bytes=32 * 1024 * 1024),
    )(x_rows, band1, bias1, band2, bias2, band3, bias3, wf1p, bf1, wf2, bf2)

    conv1_out = _deinterleaved_to_nchw(c1, 32, 32, 16)   # (B, 16, 32, 32) post-ReLU
    conv2_out = _deinterleaved_to_nchw(c2, 16, 16, 32)   # (B, 32, 16, 16)
    conv3_out = _deinterleaved_to_nchw(c3, 8, 8, 64)     # (B, 64,  8,  8)
    f1 = f1.reshape(B, 128)
    f2 = f2.reshape(B, 10)
    return (f2, conv1_out, conv2_out, conv3_out, f1, f2)


# ------------------------------- parameters -------------------------------
def init_params(key):
    ks = jax.random.split(key, 10)

    def nrm(k, shape, scale):
        return scale * jax.random.normal(k, shape, jnp.float32)

    return {
        # conv weights stored HWIO (3,3,Cin,Cout); biases (Cout,)
        "w1": nrm(ks[0], (3, 3, 3, 16), 0.1),   "b1": nrm(ks[1], (16,), 0.1),
        "w2": nrm(ks[2], (3, 3, 16, 32), 0.05), "b2": nrm(ks[3], (32,), 0.1),
        "w3": nrm(ks[4], (3, 3, 32, 64), 0.05), "b3": nrm(ks[5], (64,), 0.1),
        # fc weights stored (in, out); fc1 in-dim ordered as flattened NCHW (C,H,W)
        "wf1": nrm(ks[6], (64 * 4 * 4, 128), 0.02), "bf1": nrm(ks[7], (128,), 0.1),
        "wf2": nrm(ks[8], (128, 10), 0.05),         "bf2": nrm(ks[9], (10,), 0.1),
    }


# ----------------------- plain-XLA reference (self-check) -----------------------
def _reference_forward(x_nchw, params):
    x = jnp.transpose(x_nchw, (0, 2, 3, 1))

    def conv(a, w, b):
        y = lax.conv_general_dilated(a, w, (1, 1), "SAME",
                                     dimension_numbers=("NHWC", "HWIO", "NHWC"))
        return jnp.maximum(y + b, 0.0)

    def pool(a):
        return lax.reduce_window(a, jnp.array(-jnp.inf, a.dtype), lax.max,
                                 (1, 2, 2, 1), (1, 2, 2, 1), "VALID")

    c1 = conv(x, params["w1"], params["b1"]); p1 = pool(c1)
    c2 = conv(p1, params["w2"], params["b2"]); p2 = pool(c2)
    c3 = conv(p2, params["w3"], params["b3"]); p3 = pool(c3)
    flat = jnp.transpose(p3, (0, 3, 1, 2)).reshape(p3.shape[0], -1)   # torch view(B,-1) on NCHW
    f1 = jnp.maximum(flat @ params["wf1"] + params["bf1"], 0.0)
    f2 = f1 @ params["wf2"] + params["bf2"]
    return (f2, jnp.transpose(c1, (0, 3, 1, 2)), jnp.transpose(c2, (0, 3, 1, 2)),
            jnp.transpose(c3, (0, 3, 1, 2)), f1, f2)


if __name__ == "__main__":
    key = jax.random.PRNGKey(0)
    kx, kp = jax.random.split(key)
    # spatial 32x32 is required by fc1 (64 * 4 * 4); small batch of 2
    x = jax.random.normal(kx, (2, 3, 32, 32), jnp.float32)
    params = init_params(kp)

    fwd = jax.jit(convnet_forward)
    outs = jax.block_until_ready(fwd(x, params))

    # shape sanity checks
    assert outs[0].shape == (2, 10)
    assert outs[1].shape == (2, 16, 32, 32)
    assert outs[2].shape == (2, 32, 16, 16)
    assert outs[3].shape == (2, 64, 8, 8)
    assert outs[4].shape == (2, 128)
    assert outs[5].shape == (2, 10)

    # numerical sanity check vs plain-XLA reference (loose f32 tolerance)
    refs = jax.block_until_ready(jax.jit(_reference_forward)(x, params))
    for got, want in zip(outs, refs):
        err = float(jnp.max(jnp.abs(got - want)))
        scale = max(1.0, float(jnp.max(jnp.abs(want))))
        assert err <= 1e-2 * scale, f"mismatch: err={err}, scale={scale}"

    print("KERNEL_OK")
</pallas_src>

<mosaic_0001>
module attributes {stable_mosaic.version = 11 : i64} {
  func.func @_convnet_kernel(%arg0: i32, %arg1: memref<1x32x96xf32, #tpu.memory_space<vmem>>, %arg2: memref<3x96x512xf32, #tpu.memory_space<vmem>>, %arg3: memref<1x512xf32, #tpu.memory_space<vmem>>, %arg4: memref<3x256x512xf32, #tpu.memory_space<vmem>>, %arg5: memref<1x512xf32, #tpu.memory_space<vmem>>, %arg6: memref<3x256x512xf32, #tpu.memory_space<vmem>>, %arg7: memref<1x512xf32, #tpu.memory_space<vmem>>, %arg8: memref<4x256x128xf32, #tpu.memory_space<vmem>>, %arg9: memref<1x128xf32, #tpu.memory_space<vmem>>, %arg10: memref<128x10xf32, #tpu.memory_space<vmem>>, %arg11: memref<1x10xf32, #tpu.memory_space<vmem>>, %arg12: memref<1x32x512xf32, #tpu.memory_space<vmem>>, %arg13: memref<1x16x512xf32, #tpu.memory_space<vmem>>, %arg14: memref<1x8x512xf32, #tpu.memory_space<vmem>>, %arg15: memref<1x1x128xf32, #tpu.memory_space<vmem>>, %arg16: memref<1x1x10xf32, #tpu.memory_space<vmem>>) attributes {dimension_semantics = [#tpu.dimension_semantics<parallel>], iteration_bounds = array<i64: 2>, scalar_prefetch = 0 : i64, scratch_operands = 0 : i64, tpu.core_type = #tpu.core_type<tc>, window_params = [{transform_indices = @transform_0, window_bounds = array<i64: 1, 32, 96>}, {pipeline_mode = #tpu.pipeline_mode<synchronous>, transform_indices = @transform_1, window_bounds = array<i64: 3, 96, 512>}, {pipeline_mode = #tpu.pipeline_mode<synchronous>, transform_indices = @transform_2, window_bounds = array<i64: 1, 512>}, {pipeline_mode = #tpu.pipeline_mode<synchronous>, transform_indices = @transform_3, window_bounds = array<i64: 3, 256, 512>}, {pipeline_mode = #tpu.pipeline_mode<synchronous>, transform_indices = @transform_4, window_bounds = array<i64: 1, 512>}, {pipeline_mode = #tpu.pipeline_mode<synchronous>, transform_indices = @transform_5, window_bounds = array<i64: 3, 256, 512>}, {pipeline_mode = #tpu.pipeline_mode<synchronous>, transform_indices = @transform_6, window_bounds = array<i64: 1, 512>}, {pipeline_mode = #tpu.pipeline_mode<synchronous>, transform_indices = @transform_7, window_bounds = array<i64: 4, 256, 128>}, {pipeline_mode = #tpu.pipeline_mode<synchronous>, transform_indices = @transform_8, window_bounds = array<i64: 1, 128>}, {pipeline_mode = #tpu.pipeline_mode<synchronous>, transform_indices = @transform_9, window_bounds = array<i64: 128, 10>}, {pipeline_mode = #tpu.pipeline_mode<synchronous>, transform_indices = @transform_10, window_bounds = array<i64: 1, 10>}, {transform_indices = @transform_11, window_bounds = array<i64: 1, 32, 512>}, {transform_indices = @transform_12, window_bounds = array<i64: 1, 16, 512>}, {transform_indices = @transform_13, window_bounds = array<i64: 1, 8, 512>}, {transform_indices = @transform_14, window_bounds = array<i64: 1, 1, 128>}, {transform_indices = @transform_15, window_bounds = array<i64: 1, 1, 10>}]} {
    %c0 = arith.constant 0 : index
    %c0_0 = arith.constant 0 : index
    %c0_1 = arith.constant 0 : index
    %0 = vector.load %arg1[%c0, %c0_0, %c0_1] : memref<1x32x96xf32, #tpu.memory_space<vmem>>, vector<1x32x96xf32>
    %1 = vector.shape_cast %0 : vector<1x32x96xf32> to vector<32x96xf32>
    %cst = arith.constant 0.000000e+00 : f32
    %2 = vector.broadcast %cst : f32 to vector<1x96xf32>
    %3 = vector.extract_strided_slice %1 {offsets = [0, 0], sizes = [31, 96], strides = [1, 1]} : vector<32x96xf32> to vector<31x96xf32>
    %4 = tpu.concatenate %2, %3 in 0 : vector<1x96xf32>, vector<31x96xf32> -> vector<32x96xf32>
    %5 = vector.extract_strided_slice %1 {offsets = [1, 0], sizes = [31, 96], strides = [1, 1]} : vector<32x96xf32> to vector<31x96xf32>
    %6 = tpu.concatenate %5, %2 in 0 : vector<31x96xf32>, vector<1x96xf32> -> vector<32x96xf32>
    %c0_2 = arith.constant 0 : index
    %c0_3 = arith.constant 0 : index
    %c0_4 = arith.constant 0 : index
    %7 = vector.load %arg2[%c0_2, %c0_3, %c0_4] : memref<3x96x512xf32, #tpu.memory_space<vmem>>, vector<1x96x512xf32>
    %8 = vector.shape_cast %7 : vector<1x96x512xf32> to vector<96x512xf32>
    %cst_5 = arith.constant dense<0.000000e+00> : vector<32x512xf32>
    %9 = tpu.matmul %4, %8, %cst_5 {dimension_numbers = #tpu.dot_dimension_numbers<[1], [0], [0], [1], [0, 0, 1, 1], [], []>} : vector<32x96xf32>, vector<96x512xf32>, vector<32x512xf32> -> vector<32x512xf32>
    %c1 = arith.constant 1 : index
    %c0_6 = arith.constant 0 : index
    %c0_7 = arith.constant 0 : index
    %10 = vector.load %arg2[%c1, %c0_6, %c0_7] : memref<3x96x512xf32, #tpu.memory_space<vmem>>, vector<1x96x512xf32>
    %11 = vector.shape_cast %10 : vector<1x96x512xf32> to vector<96x512xf32>
    %cst_8 = arith.constant dense<0.000000e+00> : vector<32x512xf32>
    %12 = tpu.matmul %1, %11, %cst_8 {dimension_numbers = #tpu.dot_dimension_numbers<[1], [0], [0], [1], [0, 0, 1, 1], [], []>} : vector<32x96xf32>, vector<96x512xf32>, vector<32x512xf32> -> vector<32x512xf32>
    %13 = arith.addf %9, %12 : vector<32x512xf32>
    %c2 = arith.constant 2 : index
    %c0_9 = arith.constant 0 : index
    %c0_10 = arith.constant 0 : index
    %14 = vector.load %arg2[%c2, %c0_9, %c0_10] : memref<3x96x512xf32, #tpu.memory_space<vmem>>, vector<1x96x512xf32>
    %15 = vector.shape_cast %14 : vector<1x96x512xf32> to vector<96x512xf32>
    %cst_11 = arith.constant dense<0.000000e+00> : vector<32x512xf32>
    %16 = tpu.matmul %6, %15, %cst_11 {dimension_numbers = #tpu.dot_dimension_numbers<[1], [0], [0], [1], [0, 0, 1, 1], [], []>} : vector<32x96xf32>, vector<96x512xf32>, vector<32x512xf32> -> vector<32x512xf32>
    %17 = arith.addf %13, %16 : vector<32x512xf32>
    %c0_12 = arith.constant 0 : index
    %c0_13 = arith.constant 0 : index
    %18 = vector.load %arg3[%c0_12, %c0_13] : memref<1x512xf32, #tpu.memory_space<vmem>>, vector<1x512xf32>
    %19 = vector.broadcast %18 : vector<1x512xf32> to vector<32x512xf32>
    %20 = arith.addf %17, %19 : vector<32x512xf32>
    %cst_14 = arith.constant 0.000000e+00 : f32
    %21 = vector.broadcast %cst_14 : f32 to vector<32x512xf32>
    %22 = arith.maximumf %20, %21 : vector<32x512xf32>
    %c0_15 = arith.constant 0 : index
    %c0_16 = arith.constant 0 : index
    %c0_17 = arith.constant 0 : index
    %23 = vector.load %arg12[%c0_15, %c0_16, %c0_17] : memref<1x32x512xf32, #tpu.memory_space<vmem>>, vector<1x32x512xf32>
    %24 = vector.shape_cast %23 : vector<1x32x512xf32> to vector<32x512xf32>
    %25 = vector.shape_cast %22 : vector<32x512xf32> to vector<1x32x512xf32>
    tpu.vector_store %arg12[%c0_15, %c0_16, %c0_17], %25 {strides = array<i32>} : memref<1x32x512xf32, #tpu.memory_space<vmem>>, vector<1x32x512xf32>,
    %26 = vector.extract_strided_slice %22 {offsets = [0, 0], sizes = [32, 256], strides = [1, 1]} : vector<32x512xf32> to vector<32x256xf32>
    %27 = vector.extract_strided_slice %22 {offsets = [0, 256], sizes = [32, 256], strides = [1, 1]} : vector<32x512xf32> to vector<32x256xf32>
    %28 = arith.maximumf %26, %27 : vector<32x256xf32>
    %29 = vector.shape_cast %28 : vector<32x256xf32> to vector<16x2x256xf32>
    %cst_18 = arith.constant dense<0xFF800000> : vector<16x256xf32>
    %30 = vector.multi_reduction <maximumf>, %29, %cst_18 [1] : vector<16x2x256xf32> to vector<16x256xf32>
    %cst_19 = arith.constant 0.000000e+00 : f32
    %31 = vector.broadcast %cst_19 : f32 to vector<1x256xf32>
    %32 = vector.extract_strided_slice %30 {offsets = [0, 0], sizes = [15, 256], strides = [1, 1]} : vector<16x256xf32> to vector<15x256xf32>
    %33 = tpu.concatenate %31, %32 in 0 : vector<1x256xf32>, vector<15x256xf32> -> vector<16x256xf32>
    %34 = vector.extract_strided_slice %30 {offsets = [1, 0], sizes = [15, 256], strides = [1, 1]} : vector<16x256xf32> to vector<15x256xf32>
    %35 = tpu.concatenate %34, %31 in 0 : vector<15x256xf32>, vector<1x256xf32> -> vector<16x256xf32>
    %c0_20 = arith.constant 0 : index
    %c0_21 = arith.constant 0 : index
    %c0_22 = arith.constant 0 : index
    %36 = vector.load %arg4[%c0_20, %c0_21, %c0_22] : memref<3x256x512xf32, #tpu.memory_space<vmem>>, vector<1x256x512xf32>
    %37 = vector.shape_cast %36 : vector<1x256x512xf32> to vector<256x512xf32>
    %cst_23 = arith.constant dense<0.000000e+00> : vector<16x512xf32>
    %38 = tpu.matmul %33, %37, %cst_23 {dimension_numbers = #tpu.dot_dimension_numbers<[1], [0], [0], [1], [0, 0, 1, 1], [], []>} : vector<16x256xf32>, vector<256x512xf32>, vector<16x512xf32> -> vector<16x512xf32>
    %c1_24 = arith.constant 1 : index
    %c0_25 = arith.constant 0 : index
    %c0_26 = arith.constant 0 : index
    %39 = vector.load %arg4[%c1_24, %c0_25, %c0_26] : memref<3x256x512xf32, #tpu.memory_space<vmem>>, vector<1x256x512xf32>
    %40 = vector.shape_cast %39 : vector<1x256x512xf32> to vector<256x512xf32>
    %cst_27 = arith.constant dense<0.000000e+00> : vector<16x512xf32>
    %41 = tpu.matmul %30, %40, %cst_27 {dimension_numbers = #tpu.dot_dimension_numbers<[1], [0], [0], [1], [0, 0, 1, 1], [], []>} : vector<16x256xf32>, vector<256x512xf32>, vector<16x512xf32> -> vector<16x512xf32>
    %42 = arith.addf %38, %41 : vector<16x512xf32>
    %c2_28 = arith.constant 2 : index
    %c0_29 = arith.constant 0 : index
    %c0_30 = arith.constant 0 : index
    %43 = vector.load %arg4[%c2_28, %c0_29, %c0_30] : memref<3x256x512xf32, #tpu.memory_space<vmem>>, vector<1x256x512xf32>
    %44 = vector.shape_cast %43 : vector<1x256x512xf32> to vector<256x512xf32>
    %cst_31 = arith.constant dense<0.000000e+00> : vector<16x512xf32>
    %45 = tpu.matmul %35, %44, %cst_31 {dimension_numbers = #tpu.dot_dimension_numbers<[1], [0], [0], [1], [0, 0, 1, 1], [], []>} : vector<16x256xf32>, vector<256x512xf32>, vector<16x512xf32> -> vector<16x512xf32>
    %46 = arith.addf %42, %45 : vector<16x512xf32>
    %c0_32 = arith.constant 0 : index
    %c0_33 = arith.constant 0 : index
    %47 = vector.load %arg5[%c0_32, %c0_33] : memref<1x512xf32, #tpu.memory_space<vmem>>, vector<1x512xf32>
    %48 = vector.broadcast %47 : vector<1x512xf32> to vector<16x512xf32>
    %49 = arith.addf %46, %48 : vector<16x512xf32>
    %cst_34 = arith.constant 0.000000e+00 : f32
    %50 = vector.broadcast %cst_34 : f32 to vector<16x512xf32>
    %51 = arith.maximumf %49, %50 : vector<16x512xf32>
    %c0_35 = arith.constant 0 : index
    %c0_36 = arith.constant 0 : index
    %c0_37 = arith.constant 0 : index
    %52 = vector.load %arg13[%c0_35, %c0_36, %c0_37] : memref<1x16x512xf32, #tpu.memory_space<vmem>>, vector<1x16x512xf32>
    %53 = vector.shape_cast %52 : vector<1x16x512xf32> to vector<16x512xf32>
    %54 = vector.shape_cast %51 : vector<16x512xf32> to vector<1x16x512xf32>
    tpu.vector_store %arg13[%c0_35, %c0_36, %c0_37], %54 {strides = array<i32>} : memref<1x16x512xf32, #tpu.memory_space<vmem>>, vector<1x16x512xf32>,
    %55 = vector.extract_strided_slice %51 {offsets = [0, 0], sizes = [16, 256], strides = [1, 1]} : vector<16x512xf32> to vector<16x256xf32>
    %56 = vector.extract_strided_slice %51 {offsets = [0, 256], sizes = [16, 256], strides = [1, 1]} : vector<16x512xf32> to vector<16x256xf32>
    %57 = arith.maximumf %55, %56 : vector<16x256xf32>
    %58 = vector.shape_cast %57 : vector<16x256xf32> to vector<8x2x256xf32>
    %cst_38 = arith.constant dense<0xFF800000> : vector<8x256xf32>
    %59 = vector.multi_reduction <maximumf>, %58, %cst_38 [1] : vector<8x2x256xf32> to vector<8x256xf32>
    %cst_39 = arith.constant 0.000000e+00 : f32
    %60 = vector.broadcast %cst_39 : f32 to vector<1x256xf32>
    %61 = vector.extract_strided_slice %59 {offsets = [0, 0], sizes = [7, 256], strides = [1, 1]} : vector<8x256xf32> to vector<7x256xf32>
    %62 = tpu.concatenate %60, %61 in 0 : vector<1x256xf32>, vector<7x256xf32> -> vector<8x256xf32>
    %63 = vector.extract_strided_slice %59 {offsets = [1, 0], sizes = [7, 256], strides = [1, 1]} : vector<8x256xf32> to vector<7x256xf32>
    %64 = tpu.concatenate %63, %60 in 0 : vector<7x256xf32>, vector<1x256xf32> -> vector<8x256xf32>
    %c0_40 = arith.constant 0 : index
    %c0_41 = arith.constant 0 : index
    %c0_42 = arith.constant 0 : index
    %65 = vector.load %arg6[%c0_40, %c0_41, %c0_42] : memref<3x256x512xf32, #tpu.memory_space<vmem>>, vector<1x256x512xf32>
    %66 = vector.shape_cast %65 : vector<1x256x512xf32> to vector<256x512xf32>
    %cst_43 = arith.constant dense<0.000000e+00> : vector<8x512xf32>
    %67 = tpu.matmul %62, %66, %cst_43 {dimension_numbers = #tpu.dot_dimension_numbers<[1], [0], [0], [1], [0, 0, 1, 1], [], []>} : vector<8x256xf32>, vector<256x512xf32>, vector<8x512xf32> -> vector<8x512xf32>
    %c1_44 = arith.constant 1 : index
    %c0_45 = arith.constant 0 : index
    %c0_46 = arith.constant 0 : index
    %68 = vector.load %arg6[%c1_44, %c0_45, %c0_46] : memref<3x256x512xf32, #tpu.memory_space<vmem>>, vector<1x256x512xf32>
    %69 = vector.shape_cast %68 : vector<1x256x512xf32> to vector<256x512xf32>
    %cst_47 = arith.constant dense<0.000000e+00> : vector<8x512xf32>
    %70 = tpu.matmul %59, %69, %cst_47 {dimension_numbers = #tpu.dot_dimension_numbers<[1], [0], [0], [1], [0, 0, 1, 1], [], []>} : vector<8x256xf32>, vector<256x512xf32>, vector<8x512xf32> -> vector<8x512xf32>
    %71 = arith.addf %67, %70 : vector<8x512xf32>
    %c2_48 = arith.constant 2 : index
    %c0_49 = arith.constant 0 : index
    %c0_50 = arith.constant 0 : index
    %72 = vector.load %arg6[%c2_48, %c0_49, %c0_50] : memref<3x256x512xf32, #tpu.memory_space<vmem>>, vector<1x256x512xf32>
    %73 = vector.shape_cast %72 : vector<1x256x512xf32> to vector<256x512xf32>
    %cst_51 = arith.constant dense<0.000000e+00> : vector<8x512xf32>
    %74 = tpu.matmul %64, %73, %cst_51 {dimension_numbers = #tpu.dot_dimension_numbers<[1], [0], [0], [1], [0, 0, 1, 1], [], []>} : vector<8x256xf32>, vector<256x512xf32>, vector<8x512xf32> -> vector<8x512xf32>
    %75 = arith.addf %71, %74 : vector<8x512xf32>
    %c0_52 = arith.constant 0 : index
    %c0_53 = arith.constant 0 : index
    %76 = vector.load %arg7[%c0_52, %c0_53] : memref<1x512xf32, #tpu.memory_space<vmem>>, vector<1x512xf32>
    %77 = vector.broadcast %76 : vector<1x512xf32> to vector<8x512xf32>
    %78 = arith.addf %75, %77 : vector<8x512xf32>
    %cst_54 = arith.constant 0.000000e+00 : f32
    %79 = vector.broadcast %cst_54 : f32 to vector<8x512xf32>
    %80 = arith.maximumf %78, %79 : vector<8x512xf32>
    %c0_55 = arith.constant 0 : index
    %c0_56 = arith.constant 0 : index
    %c0_57 = arith.constant 0 : index
    %81 = vector.load %arg14[%c0_55, %c0_56, %c0_57] : memref<1x8x512xf32, #tpu.memory_space<vmem>>, vector<1x8x512xf32>
    %82 = vector.shape_cast %81 : vector<1x8x512xf32> to vector<8x512xf32>
    %83 = vector.shape_cast %80 : vector<8x512xf32> to vector<1x8x512xf32>
    tpu.vector_store %arg14[%c0_55, %c0_56, %c0_57], %83 {strides = array<i32>} : memref<1x8x512xf32, #tpu.memory_space<vmem>>, vector<1x8x512xf32>,
    %84 = vector.extract_strided_slice %80 {offsets = [0, 0], sizes = [8, 256], strides = [1, 1]} : vector<8x512xf32> to vector<8x256xf32>
    %85 = vector.extract_strided_slice %80 {offsets = [0, 256], sizes = [8, 256], strides = [1, 1]} : vector<8x512xf32> to vector<8x256xf32>
    %86 = arith.maximumf %84, %85 : vector<8x256xf32>
    %87 = vector.shape_cast %86 : vector<8x256xf32> to vector<4x2x256xf32>
    %cst_58 = arith.constant dense<0xFF800000> : vector<4x256xf32>
    %88 = vector.multi_reduction <maximumf>, %87, %cst_58 [1] : vector<4x2x256xf32> to vector<4x256xf32>
    %89 = vector.extract_strided_slice %88 {offsets = [0, 0], sizes = [1, 256], strides = [1, 1]} : vector<4x256xf32> to vector<1x256xf32>
    %c0_59 = arith.constant 0 : index
    %c0_60 = arith.constant 0 : index
    %c0_61 = arith.constant 0 : index
    %90 = vector.load %arg8[%c0_59, %c0_60, %c0_61] : memref<4x256x128xf32, #tpu.memory_space<vmem>>, vector<1x256x128xf32>
    %91 = vector.shape_cast %90 : vector<1x256x128xf32> to vector<256x128xf32>
    %cst_62 = arith.constant dense<0.000000e+00> : vector<1x128xf32>
    %92 = tpu.matmul %89, %91, %cst_62 {dimension_numbers = #tpu.dot_dimension_numbers<[1], [0], [0], [1], [0, 0, 1, 1], [], []>} : vector<1x256xf32>, vector<256x128xf32>, vector<1x128xf32> -> vector<1x128xf32>
    %93 = vector.extract_strided_slice %88 {offsets = [1, 0], sizes = [1, 256], strides = [1, 1]} : vector<4x256xf32> to vector<1x256xf32>
    %c1_63 = arith.constant 1 : index
    %c0_64 = arith.constant 0 : index
    %c0_65 = arith.constant 0 : index
    %94 = vector.load %arg8[%c1_63, %c0_64, %c0_65] : memref<4x256x128xf32, #tpu.memory_space<vmem>>, vector<1x256x128xf32>
    %95 = vector.shape_cast %94 : vector<1x256x128xf32> to vector<256x128xf32>
    %cst_66 = arith.constant dense<0.000000e+00> : vector<1x128xf32>
    %96 = tpu.matmul %93, %95, %cst_66 {dimension_numbers = #tpu.dot_dimension_numbers<[1], [0], [0], [1], [0, 0, 1, 1], [], []>} : vector<1x256xf32>, vector<256x128xf32>, vector<1x128xf32> -> vector<1x128xf32>
    %97 = arith.addf %92, %96 : vector<1x128xf32>
    %98 = vector.extract_strided_slice %88 {offsets = [2, 0], sizes = [1, 256], strides = [1, 1]} : vector<4x256xf32> to vector<1x256xf32>
    %c2_67 = arith.constant 2 : index
    %c0_68 = arith.constant 0 : index
    %c0_69 = arith.constant 0 : index
    %99 = vector.load %arg8[%c2_67, %c0_68, %c0_69] : memref<4x256x128xf32, #tpu.memory_space<vmem>>, vector<1x256x128xf32>
    %100 = vector.shape_cast %99 : vector<1x256x128xf32> to vector<256x128xf32>
    %cst_70 = arith.constant dense<0.000000e+00> : vector<1x128xf32>
    %101 = tpu.matmul %98, %100, %cst_70 {dimension_numbers = #tpu.dot_dimension_numbers<[1], [0], [0], [1], [0, 0, 1, 1], [], []>} : vector<1x256xf32>, vector<256x128xf32>, vector<1x128xf32> -> vector<1x128xf32>
    %102 = arith.addf %97, %101 : vector<1x128xf32>
    %103 = vector.extract_strided_slice %88 {offsets = [3, 0], sizes = [1, 256], strides = [1, 1]} : vector<4x256xf32> to vector<1x256xf32>
    %c3 = arith.constant 3 : index
    %c0_71 = arith.constant 0 : index
    %c0_72 = arith.constant 0 : index
    %104 = vector.load %arg8[%c3, %c0_71, %c0_72] : memref<4x256x128xf32, #tpu.memory_space<vmem>>, vector<1x256x128xf32>
    %105 = vector.shape_cast %104 : vector<1x256x128xf32> to vector<256x128xf32>
    %cst_73 = arith.constant dense<0.000000e+00> : vector<1x128xf32>
    %106 = tpu.matmul %103, %105, %cst_73 {dimension_numbers = #tpu.dot_dimension_numbers<[1], [0], [0], [1], [0, 0, 1, 1], [], []>} : vector<1x256xf32>, vector<256x128xf32>, vector<1x128xf32> -> vector<1x128xf32>
    %107 = arith.addf %102, %106 : vector<1x128xf32>
    %c0_74 = arith.constant 0 : index
    %c0_75 = arith.constant 0 : index
    %108 = vector.load %arg9[%c0_74, %c0_75] : memref<1x128xf32, #tpu.memory_space<vmem>>, vector<1x128xf32>
    %109 = arith.addf %107, %108 : vector<1x128xf32>
    %cst_76 = arith.constant 0.000000e+00 : f32
    %110 = vector.broadcast %cst_76 : f32 to vector<1x128xf32>
    %111 = arith.maximumf %109, %110 : vector<1x128xf32>
    %c0_77 = arith.constant 0 : index
    %c0_78 = arith.constant 0 : index
    %c0_79 = arith.constant 0 : index
    %112 = vector.load %arg15[%c0_77, %c0_78, %c0_79] : memref<1x1x128xf32, #tpu.memory_space<vmem>>, vector<1x1x128xf32>
    %113 = vector.shape_cast %112 : vector<1x1x128xf32> to vector<1x128xf32>
    %114 = vector.shape_cast %111 : vector<1x128xf32> to vector<1x1x128xf32>
    tpu.vector_store %arg15[%c0_77, %c0_78, %c0_79], %114 {strides = array<i32>} : memref<1x1x128xf32, #tpu.memory_space<vmem>>, vector<1x1x128xf32>,
    %c0_80 = arith.constant 0 : index
    %c0_81 = arith.constant 0 : index
    %115 = vector.load %arg10[%c0_80, %c0_81] : memref<128x10xf32, #tpu.memory_space<vmem>>, vector<128x10xf32>
    %cst_82 = arith.constant dense<0.000000e+00> : vector<1x10xf32>
    %116 = tpu.matmul %111, %115, %cst_82 {dimension_numbers = #tpu.dot_dimension_numbers<[1], [0], [0], [1], [0, 0, 1, 1], [], []>} : vector<1x128xf32>, vector<128x10xf32>, vector<1x10xf32> -> vector<1x10xf32>
    %c0_83 = arith.constant 0 : index
    %c0_84 = arith.constant 0 : index
    %117 = vector.load %arg11[%c0_83, %c0_84] : memref<1x10xf32, #tpu.memory_space<vmem>>, vector<1x10xf32>
    %118 = arith.addf %116, %117 : vector<1x10xf32>
    %c0_85 = arith.constant 0 : index
    %c0_86 = arith.constant 0 : index
    %c0_87 = arith.constant 0 : index
    %119 = vector.load %arg16[%c0_85, %c0_86, %c0_87] : memref<1x1x10xf32, #tpu.memory_space<vmem>>, vector<1x1x10xf32>
    %120 = vector.shape_cast %119 : vector<1x1x10xf32> to vector<1x10xf32>
    %121 = vector.shape_cast %118 : vector<1x10xf32> to vector<1x1x10xf32>
    tpu.vector_store %arg16[%c0_85, %c0_86, %c0_87], %121 {strides = array<i32>} : memref<1x1x10xf32, #tpu.memory_space<vmem>>, vector<1x1x10xf32>,
    return
  }
  func.func @transform_0(%arg0: i32) -> (i32, i32, i32) {
    %c0_i32 = arith.constant 0 : i32
    %c0_i32_0 = arith.constant 0 : i32
    %c0_i32_1 = arith.constant 0 : i32
    return %arg0, %c0_i32, %c0_i32_0 : i32, i32, i32
  }
  func.func @transform_1(%arg0: i32) -> (i32, i32, i32) {
    %c0_i32 = arith.constant 0 : i32
    %c0_i32_0 = arith.constant 0 : i32
    %c0_i32_1 = arith.constant 0 : i32
    %c0_i32_2 = arith.constant 0 : i32
    return %c0_i32, %c0_i32_0, %c0_i32_1 : i32, i32, i32
  }
  func.func @transform_2(%arg0: i32) -> (i32, i32) {
    %c0_i32 = arith.constant 0 : i32
    %c0_i32_0 = arith.constant 0 : i32
    %c0_i32_1 = arith.constant 0 : i32
    return %c0_i32, %c0_i32_0 : i32, i32
  }
  func.func @transform_3(%arg0: i32) -> (i32, i32, i32) {
    %c0_i32 = arith.constant 0 : i32
    %c0_i32_0 = arith.constant 0 : i32
    %c0_i32_1 = arith.constant 0 : i32
    %c0_i32_2 = arith.constant 0 : i32
    return %c0_i32, %c0_i32_0, %c0_i32_1 : i32, i32, i32
  }
  func.func @transform_4(%arg0: i32) -> (i32, i32) {
    %c0_i32 = arith.constant 0 : i32
    %c0_i32_0 = arith.constant 0 : i32
    %c0_i32_1 = arith.constant 0 : i32
    return %c0_i32, %c0_i32_0 : i32, i32
  }
  func.func @transform_5(%arg0: i32) -> (i32, i32, i32) {
    %c0_i32 = arith.constant 0 : i32
    %c0_i32_0 = arith.constant 0 : i32
    %c0_i32_1 = arith.constant 0 : i32
    %c0_i32_2 = arith.constant 0 : i32
    return %c0_i32, %c0_i32_0, %c0_i32_1 : i32, i32, i32
  }
  func.func @transform_6(%arg0: i32) -> (i32, i32) {
    %c0_i32 = arith.constant 0 : i32
    %c0_i32_0 = arith.constant 0 : i32
    %c0_i32_1 = arith.constant 0 : i32
    return %c0_i32, %c0_i32_0 : i32, i32
  }
  func.func @transform_7(%arg0: i32) -> (i32, i32, i32) {
    %c0_i32 = arith.constant 0 : i32
    %c0_i32_0 = arith.constant 0 : i32
    %c0_i32_1 = arith.constant 0 : i32
    %c0_i32_2 = arith.constant 0 : i32
    return %c0_i32, %c0_i32_0, %c0_i32_1 : i32, i32, i32
  }
  func.func @transform_8(%arg0: i32) -> (i32, i32) {
    %c0_i32 = arith.constant 0 : i32
    %c0_i32_0 = arith.constant 0 : i32
    %c0_i32_1 = arith.constant 0 : i32
    return %c0_i32, %c0_i32_0 : i32, i32
  }
  func.func @transform_9(%arg0: i32) -> (i32, i32) {
    %c0_i32 = arith.constant 0 : i32
    %c0_i32_0 = arith.constant 0 : i32
    %c0_i32_1 = arith.constant 0 : i32
    return %c0_i32, %c0_i32_0 : i32, i32
  }
  func.func @transform_10(%arg0: i32) -> (i32, i32) {
    %c0_i32 = arith.constant 0 : i32
    %c0_i32_0 = arith.constant 0 : i32
    %c0_i32_1 = arith.constant 0 : i32
    return %c0_i32, %c0_i32_0 : i32, i32
  }
  func.func @transform_11(%arg0: i32) -> (i32, i32, i32) {
    %c0_i32 = arith.constant 0 : i32
    %c0_i32_0 = arith.constant 0 : i32
    %c0_i32_1 = arith.constant 0 : i32
    return %arg0, %c0_i32, %c0_i32_0 : i32, i32, i32
  }
  func.func @transform_12(%arg0: i32) -> (i32, i32, i32) {
    %c0_i32 = arith.constant 0 : i32
    %c0_i32_0 = arith.constant 0 : i32
    %c0_i32_1 = arith.constant 0 : i32
    return %arg0, %c0_i32, %c0_i32_0 : i32, i32, i32
  }
  func.func @transform_13(%arg0: i32) -> (i32, i32, i32) {
    %c0_i32 = arith.constant 0 : i32
    %c0_i32_0 = arith.constant 0 : i32
    %c0_i32_1 = arith.constant 0 : i32
    return %arg0, %c0_i32, %c0_i32_0 : i32, i32, i32
  }
  func.func @transform_14(%arg0: i32) -> (i32, i32, i32) {
    %c0_i32 = arith.constant 0 : i32
    %c0_i32_0 = arith.constant 0 : i32
    %c0_i32_1 = arith.constant 0 : i32
    return %arg0, %c0_i32, %c0_i32_0 : i32, i32, i32
  }
  func.func @transform_15(%arg0: i32) -> (i32, i32, i32) {
    %c0_i32 = arith.constant 0 : i32
    %c0_i32_0 = arith.constant 0 : i32
    %c0_i32_1 = arith.constant 0 : i32
    return %arg0, %c0_i32, %c0_i32_0 : i32, i32, i32
  }
}

</mosaic_0001>

<llo_original>
// kernel: tile.18
$region0: #{tile.18}
  #allocation0 [shape = 's32[1]{0}', space=sflag, size = 0x4, scoped, tag = 'scoped memory for tile.18']
  %s0 = inlined_call_operand.vmem [shape: f32[16], index: 0, kind: input, shape index: {}]
  %s1 = inlined_call_operand.vmem [shape: f32[32,16], index: 1, kind: output, shape index: {}]
  // Predicated region
  $region2: #{tile.18} parent=0 // pred_check
    _
  $region3: #{tile.18} parent=0 // pred_check_branch
    %3 = sbr.rel (0) target = $region5
  $region4: #{tile.18} parent=0 // pred_region
    _
  $region5: #{tile.18} parent=0 // pred_fallthru
    _
  %v4 = vld [vmem:[%s0] ss:$0 sm:$0xff]
  %5 = vst [vmem:[%s1] sm:$0xff] %v4
  %s6 = scalar_lea.vmem %s1, 8
  %7 = vst [vmem:[%s6] sm:$0xff] %v4
  %s8 = scalar_lea.vmem %s1, 16
  %9 = vst [vmem:[%s8] sm:$0xff] %v4
  %s10 = scalar_lea.vmem %s1, 24
  %11 = vst [vmem:[%s10] sm:$0xff] %v4

// kernel: tile.19
$region0: #{tile.19}
  %s0 = inlined_call_operand.vmem [shape: f32[32,16], index: 0, kind: input, shape index: {}]
  %s1 = inlined_call_operand.vmem [shape: f32[1,512], index: 1, kind: output, shape index: {}]
  $region1: #{tile.19} parent=0
    #allocation0 [shape = 'u8[16384]{0}', space=vmem, size = 0x4000, scoped, tag = 'scoped mem for output reshape']
    %v2 = vld [vmem:[%s0] ss:$8 sm:$0xf]
    %vm3 = vcmask 130048
    %4 = vst.msk [vmem:[#allocation0] ss:$8 sm:$0xf] %vm3, %v2
    %s5 = scalar_lea.vmem %s0, 7
    %v6 = vld [vmem:[%s5] ss:$8 sm:$0xf]
    %7 = vrot.lane.b32.xlu0 %v6, 112
    %v8 = vpop.permute.xlu0 %7
    %vm9 = vcmask 1048448
    %10 = vst.msk [vmem:[#allocation0] ss:$8 sm:$0xf] %vm9, %v8
    %s11 = scalar_lea.vmem %s0, 6
    %v12 = vld [vmem:[%s11] ss:$8 sm:$0xf]
    %13 = vrot.lane.b32.xlu0 %v12, 96
    %v14 = vpop.permute.xlu0 %13
    %vm15 = vcmask 917248
    %16 = vst.msk [vmem:[#allocation0] ss:$8 sm:$0xf] %vm15, %v14
    %s17 = scalar_lea.vmem %s0, 5
    %v18 = vld [vmem:[%s17] ss:$8 sm:$0xf]
    %19 = vrot.lane.b32.xlu0 %v18, 80
    %v20 = vpop.permute.xlu0 %19
    %vm21 = vcmask 786048
    %22 = vst.msk [vmem:[#allocation0] ss:$8 sm:$0xf] %vm21, %v20
    %s23 = scalar_lea.vmem %s0, 4
    %v24 = vld [vmem:[%s23] ss:$8 sm:$0xf]
    %25 = vrot.lane.b32.xlu0 %v24, 64
    %v26 = vpop.permute.xlu0 %25
    %vm27 = vcmask 654848
    %28 = vst.msk [vmem:[#allocation0] ss:$8 sm:$0xf] %vm27, %v26
    %s29 = scalar_lea.vmem %s0, 3
    %v30 = vld [vmem:[%s29] ss:$8 sm:$0xf]
    %31 = vrot.lane.b32.xlu0 %v30, 48
    %v32 = vpop.permute.xlu0 %31
    %vm33 = vcmask 523648
    %34 = vst.msk [vmem:[#allocation0] ss:$8 sm:$0xf] %vm33, %v32
    %s35 = scalar_lea.vmem %s0, 2
    %v36 = vld [vmem:[%s35] ss:$8 sm:$0xf]
    %37 = vrot.lane.b32.xlu0 %v36, 32
    %v38 = vpop.permute.xlu0 %37
    %vm39 = vcmask 392448
    %40 = vst.msk [vmem:[#allocation0] ss:$8 sm:$0xf] %vm39, %v38
    %s41 = scalar_lea.vmem %s0, 1
    %v42 = vld [vmem:[%s41] ss:$8 sm:$0xf]
    %43 = vrot.lane.b32.xlu0 %v42, 16
    %v44 = vpop.permute.xlu0 %43
    %vm45 = vcmask 261248
    %46 = vst.msk [vmem:[#allocation0] ss:$8 sm:$0xf] %vm45, %v44
    %s48 = sshllo.u32 0, 1
    %v50 = vld [vmem:[#allocation0] sm:%s48]
    %s51 = sshllo.u32 0, 1
    %52 = vst [vmem:[%s1] sm:%s51] %v50
    %s53 = scalar_lea.vmem [#allocation0], 8
    %v54 = vld [vmem:[%s53] sm:%s48]
    %s55 = sshllo.u32 0, 1
    %s56 = scalar_lea.vmem %s1, 1
    %57 = vst [vmem:[%s56] sm:%s55] %v54
    %s58 = scalar_lea.vmem [#allocation0], 16
    %v59 = vld [vmem:[%s58] sm:%s48]
    %s60 = sshllo.u32 0, 1
    %s61 = smul.addr 1, 2
    %s62 = scalar_lea.vmem %s1, %s61
    %63 = vst [vmem:[%s62] sm:%s60] %v59
    %s64 = scalar_lea.vmem [#allocation0], 24
    %v65 = vld [vmem:[%s64] sm:%s48]
    %s66 = sshllo.u32 0, 1
    %s67 = smul.addr 1, 3
    %s68 = scalar_lea.vmem %s1, %s67
    %69 = vst [vmem:[%s68] sm:%s66] %v65

// kernel: tile.23
$region0: #{tile.23}
  #allocation0 [shape = 's32[1]{0}', space=sflag, size = 0x4, scoped, tag = 'scoped memory for tile.23']
  %s0 = inlined_call_operand.vmem [shape: f32[32], index: 0, kind: input, shape index: {}]
  %s1 = inlined_call_operand.vmem [shape: f32[16,32], index: 1, kind: output, shape index: {}]
  // Predicated region
  $region2: #{tile.23} parent=0 // pred_check
    _
  $region3: #{tile.23} parent=0 // pred_check_branch
    %3 = sbr.rel (0) target = $region5
  $region4: #{tile.23} parent=0 // pred_region
    _
  $region5: #{tile.23} parent=0 // pred_fallthru
    _
  %v4 = vld [vmem:[%s0] ss:$0 sm:$0xff]
  %5 = vst [vmem:[%s1] sm:$0xff] %v4
  %s6 = scalar_lea.vmem %s1, 8
  %7 = vst [vmem:[%s6] sm:$0xff] %v4

// kernel: tile.24
$region0: #{tile.24}
  %s0 = inlined_call_operand.vmem [shape: f32[16,32], index: 0, kind: input, shape index: {}]
  %s1 = inlined_call_operand.vmem [shape: f32[1,512], index: 1, kind: output, shape index: {}]
  $region1: #{tile.24} parent=0
    #allocation0 [shape = 'u8[16384]{0}', space=vmem, size = 0x4000, scoped, tag = 'scoped mem for output reshape']
    %v2 = vld [vmem:[%s0] ss:$4 sm:$0xf]
    %vm3 = vcmask 261120
    %4 = vst.msk [vmem:[#allocation0] ss:$8 sm:$0xf] %vm3, %v2
    %s5 = scalar_lea.vmem %s0, 3
    %v6 = vld [vmem:[%s5] ss:$4 sm:$0xf]
    %7 = vrot.lane.b32.xlu0 %v6, 96
    %v8 = vpop.permute.xlu0 %7
    %vm9 = vcmask 1048320
    %10 = vst.msk [vmem:[#allocation0] ss:$8 sm:$0xf] %vm9, %v8
    %s11 = scalar_lea.vmem %s0, 2
    %v12 = vld [vmem:[%s11] ss:$4 sm:$0xf]
    %13 = vrot.lane.b32.xlu0 %v12, 64
    %v14 = vpop.permute.xlu0 %13
    %vm15 = vcmask 785920
    %16 = vst.msk [vmem:[#allocation0] ss:$8 sm:$0xf] %vm15, %v14
    %s17 = scalar_lea.vmem %s0, 1
    %v18 = vld [vmem:[%s17] ss:$4 sm:$0xf]
    %19 = vrot.lane.b32.xlu0 %v18, 32
    %v20 = vpop.permute.xlu0 %19
    %vm21 = vcmask 523520
    %22 = vst.msk [vmem:[#allocation0] ss:$8 sm:$0xf] %vm21, %v20
    %s24 = sshllo.u32 0, 1
    %v26 = vld [vmem:[#allocation0] sm:%s24]
    %s27 = sshllo.u32 0, 1
    %28 = vst [vmem:[%s1] sm:%s27] %v26
    %s29 = scalar_lea.vmem [#allocation0], 8
    %v30 = vld [vmem:[%s29] sm:%s24]
    %s31 = sshllo.u32 0, 1
    %s32 = scalar_lea.vmem %s1, 1
    %33 = vst [vmem:[%s32] sm:%s31] %v30
    %s34 = scalar_lea.vmem [#allocation0], 16
    %v35 = vld [vmem:[%s34] sm:%s24]
    %s36 = sshllo.u32 0, 1
    %s37 = smul.addr 1, 2
    %s38 = scalar_lea.vmem %s1, %s37
    %39 = vst [vmem:[%s38] sm:%s36] %v35
    %s40 = scalar_lea.vmem [#allocation0], 24
    %v41 = vld [vmem:[%s40] sm:%s24]
    %s42 = sshllo.u32 0, 1
    %s43 = smul.addr 1, 3
    %s44 = scalar_lea.vmem %s1, %s43
    %45 = vst [vmem:[%s44] sm:%s42] %v41

// kernel: tile.28
$region0: #{tile.28}
  #allocation0 [shape = 's32[1]{0}', space=sflag, size = 0x4, scoped, tag = 'scoped memory for tile.28']
  %s0 = inlined_call_operand.vmem [shape: f32[64], index: 0, kind: input, shape index: {}]
  %s1 = inlined_call_operand.vmem [shape: f32[8,64], index: 1, kind: output, shape index: {}]
  // Predicated region
  $region2: #{tile.28} parent=0 // pred_check
    _
  $region3: #{tile.28} parent=0 // pred_check_branch
    %3 = sbr.rel (0) target = $region5
  $region4: #{tile.28} parent=0 // pred_region
    _
  $region5: #{tile.28} parent=0 // pred_fallthru
    _
  %v4 = vld [vmem:[%s0] ss:$0 sm:$0xff]
  %5 = vst [vmem:[%s1] sm:$0xff] %v4

// kernel: tile.29
$region0: #{tile.29}
  %s0 = inlined_call_operand.vmem [shape: f32[8,64], index: 0, kind: input, shape index: {}]
  %s1 = inlined_call_operand.vmem [shape: f32[1,512], index: 1, kind: output, shape index: {}]
  $region1: #{tile.29} parent=0
    #allocation0 [shape = 'u8[16384]{0}', space=vmem, size = 0x4000, scoped, tag = 'scoped mem for output reshape']
    %v2 = vld [vmem:[%s0] ss:$2 sm:$0xf]
    %vm3 = vcmask 523264
    %4 = vst.msk [vmem:[#allocation0] ss:$8 sm:$0xf] %vm3, %v2
    %s5 = scalar_lea.vmem %s0, 1
    %v6 = vld [vmem:[%s5] ss:$2 sm:$0xf]
    %7 = vrot.lane.b32.xlu0 %v6, 64
    %v8 = vpop.permute.xlu0 %7
    %vm9 = vcmask 1048064
    %10 = vst.msk [vmem:[#allocation0] ss:$8 sm:$0xf] %vm9, %v8
    %s12 = sshllo.u32 0, 1
    %v14 = vld [vmem:[#allocation0] sm:%s12]
    %s15 = sshllo.u32 0, 1
    %16 = vst [vmem:[%s1] sm:%s15] %v14
    %s17 = scalar_lea.vmem [#allocation0], 8
    %v18 = vld [vmem:[%s17] sm:%s12]
    %s19 = sshllo.u32 0, 1
    %s20 = scalar_lea.vmem %s1, 1
    %21 = vst [vmem:[%s20] sm:%s19] %v18
    %s22 = scalar_lea.vmem [#allocation0], 16
    %v23 = vld [vmem:[%s22] sm:%s12]
    %s24 = sshllo.u32 0, 1
    %s25 = smul.addr 1, 2
    %s26 = scalar_lea.vmem %s1, %s25
    %27 = vst [vmem:[%s26] sm:%s24] %v23
    %s28 = scalar_lea.vmem [#allocation0], 24
    %v29 = vld [vmem:[%s28] sm:%s12]
    %s30 = sshllo.u32 0, 1
    %s31 = smul.addr 1, 3
    %s32 = scalar_lea.vmem %s1, %s31
    %33 = vst [vmem:[%s32] sm:%s30] %v29

// kernel: convnet_forward.1
$region0: #{convnet_forward.1}
  #allocation0 [shape = 'u32[]', space=smem, size = 0x4, offset = 0x4, fixed_abs, tag = 'smem constant byte address 0x4 - core index']
  #allocation1 [shape = 'u32[144,128]{1,0:T(1,128)}', space=vmem, size = 0x12000, scoped, tag = 'internal scratch']
  %s0 = inlined_call_operand.vmem [shape: f32[2,32,96], index: 0, kind: input, shape index: {}]
  %s1 = inlined_call_operand.vmem [shape: f32[3,96,512], index: 1, kind: input, shape index: {}]
  %s2 = inlined_call_operand.vmem [shape: f32[1,512], index: 2, kind: input, shape index: {}]
  %s3 = inlined_call_operand.vmem [shape: f32[3,256,512], index: 3, kind: input, shape index: {}]
  %s4 = inlined_call_operand.vmem [shape: f32[1,512], index: 4, kind: input, shape index: {}]
  %s5 = inlined_call_operand.vmem [shape: f32[3,256,512], index: 5, kind: input, shape index: {}]
  %s6 = inlined_call_operand.vmem [shape: f32[1,512], index: 6, kind: input, shape index: {}]
  %s7 = inlined_call_operand.vmem [shape: f32[4,256,128], index: 7, kind: input, shape index: {}]
  %s8 = inlined_call_operand.vmem [shape: f32[1,128], index: 8, kind: input, shape index: {}]
  %s9 = inlined_call_operand.vmem [shape: f32[128,10], index: 9, kind: input, shape index: {}]
  %s10 = inlined_call_operand.vmem [shape: f32[1,10], index: 10, kind: input, shape index: {}]
  %s11 = inlined_call_operand.vmem [shape: f32[2,32,512], index: 11, kind: output, shape index: {0}]
  %s12 = inlined_call_operand.vmem [shape: f32[2,16,512], index: 12, kind: output, shape index: {1}]
  %s13 = inlined_call_operand.vmem [shape: f32[2,8,512], index: 13, kind: output, shape index: {2}]
  %s14 = inlined_call_operand.hbm [shape: f32[2,1,128], index: 14, kind: output, shape index: {3}]
  %s15 = inlined_call_operand.vmem [shape: f32[2,1,10], index: 15, kind: output, shape index: {4}]
  %16 = xla_tuple %s11, %s12, %s13, %s14, %s15
  %s17 = sld [smem:[#allocation0]]
  $region109: #{convnet_forward.1} parent=0
    _
  %s19 = ssub.s32 1, %s17
  %s20 = scalar_select 0, %s19, %s17
  $region1: #{convnet_forward.1} parent=0
    #allocation2 [shape = 'u8[1024]{0}', space=vmem, size = 0x400, scoped, tag = 'output window, operand 3']
    #allocation3 [shape = 's32[2]{0}', space=sflag, size = 0x8, scoped, tag = 'scoped memory for convnet_forward.1']
    %21 = vsyncpa [#allocation3], 0
    %s22 = scalar_lea.sflag [#allocation3], 1
    %23 = vsyncpa %s22, 0
    loop: start=0, step=1, limit=4
    $region2: #{convnet_forward.1} parent=1 // loop_pre_header
      _
    $region3: #{convnet_forward.1} parent=1 // loop_header
      %s25 = sphi 0, %s29
      %p26 = scmp.ge.s32.totalorder %s25, 4
      %s35 = sphi 0, %s37
      %s38 = sphi 0, %s35
      %s39 = sphi 0, %s38
      %s55 = sphi 0, %s39
      %s59 = sphi 0, %s59
      %s61 = sphi 0, %s59
      %s62 = sphi 0, %s61
      %s76 = sphi 0, %s62
      %s80 = sphi 0, %s80
      %s82 = sphi 0, %s80
      %s83 = sphi 0, %s82
      %s97 = sphi 0, %s83
      %s101 = sphi 0, %s101
      %s103 = sphi 0, %s101
      %s104 = sphi 0, %s103
      %s118 = sphi 0, %s104
      %s122 = sphi 0, %s122
      %s124 = sphi 0, %s122
      %s125 = sphi 0, %s124
      %s139 = sphi 0, %s125
      %s143 = sphi 0, %s143
      %s145 = sphi 0, %s143
      %s146 = sphi 0, %s145
      %s160 = sphi 0, %s146
      %s164 = sphi 0, %s164
      %s166 = sphi 0, %s164
      %s167 = sphi 0, %s166
      %s181 = sphi 0, %s167
      %s185 = sphi 0, %s185
      %s187 = sphi 0, %s185
      %s188 = sphi 0, %s187
      %s202 = sphi 0, %s188
      %s206 = sphi 0, %s206
      %s208 = sphi 0, %s206
      %s209 = sphi 0, %s208
      %s223 = sphi 0, %s209
      %s227 = sphi 0, %s227
      %s229 = sphi 0, %s227
      %s230 = sphi 0, %s229
      %s244 = sphi 0, %s230
      %s248 = sphi 0, %s248
      %s250 = sphi 0, %s248
      %s251 = sphi 0, %s250
      %s265 = sphi 0, %s251
      %s271 = sphi 0, %s273
      %s274 = sphi 0, %s271
      %s275 = sphi 0, %s274
      %s291 = sphi 0, %s275
      %s297 = sphi 0, %s299
      %s300 = sphi 0, %s297
      %s301 = sphi 0, %s300
      %s317 = sphi 0, %s301
      %s323 = sphi 0, %s325
      %s326 = sphi 0, %s323
      %s327 = sphi 0, %s326
      %s343 = sphi 0, %s327
      %s349 = sphi 0, %s351
      %s352 = sphi 0, %s349
      %s353 = sphi 0, %s352
      %s369 = sphi 0, %s353
      %s375 = sphi 0, %s377
      %s378 = sphi 0, %s375
      %s379 = sphi 0, %s378
      %s395 = sphi 0, %s379
    $region4: #{convnet_forward.1} parent=1 // loop_header_branch
      %28 = sbr.rel (%p26) target = $region8
    $region5: #{convnet_forward.1} parent=1 // loop_body
      %s30 = ssub.s32 %s25, 1
      %s31 = ssub.s32 %s25, 2
      %s32 = sadd.s32 %s25, 1
      %s33 = ssub.s32 %s25, %s32
      %p34 = scmp.eq.s32.totalorder %s33, 0
      %s36 = sadd.s32 %s35, 1
      %s37 = scalar_select %p34, %s35, %s36
      %p40 = pneg %p34
      %p41 = scmp.eq.s32.totalorder %s25, 1
      %p42 = por %p40, %p41
      %p43 = scmp.ne.s32.totalorder %s35, %s38
      %p44 = scmp.eq.s32.totalorder %s25, 0
      %p45 = por %p43, %p44
      %p46 = scmp.ne.s32.totalorder %s35, %s38
      %p47 = scmp.eq.s32.totalorder %s30, 1
      %p48 = por %p46, %p47
      %p49 = scmp.ne.s32.totalorder %s38, %s39
      %p50 = scmp.eq.s32.totalorder %s30, 0
      %p51 = por %p49, %p50
      %p52 = scmp.ne.s32.totalorder %s38, %s39
      %p53 = scmp.eq.s32.totalorder %s31, 1
      %p54 = por %p52, %p53
      %p56 = scmp.ne.s32.totalorder %s39, %s55
      %p57 = scmp.eq.s32.totalorder %s31, 0
      %p58 = por %p56, %p57
      %s60 = sadd.s32 %s59, 1
      %p63 = scmp.eq.s32.totalorder %s25, 1
      %p64 = scmp.ne.s32.totalorder %s59, %s61
      %p65 = scmp.eq.s32.totalorder %s25, 0
      %p66 = por %p64, %p65
      %p67 = scmp.ne.s32.totalorder %s59, %s61
      %p68 = scmp.eq.s32.totalorder %s30, 1
      %p69 = por %p67, %p68
      %p70 = scmp.ne.s32.totalorder %s61, %s62
      %p71 = scmp.eq.s32.totalorder %s30, 0
      %p72 = por %p70, %p71
      %p73 = scmp.ne.s32.totalorder %s61, %s62
      %p74 = scmp.eq.s32.totalorder %s31, 1
      %p75 = por %p73, %p74
      %p77 = scmp.ne.s32.totalorder %s62, %s76
      %p78 = scmp.eq.s32.totalorder %s31, 0
      %p79 = por %p77, %p78
      %s81 = sadd.s32 %s80, 1
      %p84 = scmp.eq.s32.totalorder %s25, 1
      %p85 = scmp.ne.s32.totalorder %s80, %s82
      %p86 = scmp.eq.s32.totalorder %s25, 0
      %p87 = por %p85, %p86
      %p88 = scmp.ne.s32.totalorder %s80, %s82
      %p89 = scmp.eq.s32.totalorder %s30, 1
      %p90 = por %p88, %p89
      %p91 = scmp.ne.s32.totalorder %s82, %s83
      %p92 = scmp.eq.s32.totalorder %s30, 0
      %p93 = por %p91, %p92
      %p94 = scmp.ne.s32.totalorder %s82, %s83
      %p95 = scmp.eq.s32.totalorder %s31, 1
      %p96 = por %p94, %p95
      %p98 = scmp.ne.s32.totalorder %s83, %s97
      %p99 = scmp.eq.s32.totalorder %s31, 0
      %p100 = por %p98, %p99
      %s102 = sadd.s32 %s101, 1
      %p105 = scmp.eq.s32.totalorder %s25, 1
      %p106 = scmp.ne.s32.totalorder %s101, %s103
      %p107 = scmp.eq.s32.totalorder %s25, 0
      %p108 = por %p106, %p107
      %p109 = scmp.ne.s32.totalorder %s101, %s103
      %p110 = scmp.eq.s32.totalorder %s30, 1
      %p111 = por %p109, %p110
      %p112 = scmp.ne.s32.totalorder %s103, %s104
      %p113 = scmp.eq.s32.totalorder %s30, 0
      %p114 = por %p112, %p113
      %p115 = scmp.ne.s32.totalorder %s103, %s104
      %p116 = scmp.eq.s32.totalorder %s31, 1
      %p117 = por %p115, %p116
      %p119 = scmp.ne.s32.totalorder %s104, %s118
      %p120 = scmp.eq.s32.totalorder %s31, 0
      %p121 = por %p119, %p120
      %s123 = sadd.s32 %s122, 1
      %p126 = scmp.eq.s32.totalorder %s25, 1
      %p127 = scmp.ne.s32.totalorder %s122, %s124
      %p128 = scmp.eq.s32.totalorder %s25, 0
      %p129 = por %p127, %p128
      %p130 = scmp.ne.s32.totalorder %s122, %s124
      %p131 = scmp.eq.s32.totalorder %s30, 1
      %p132 = por %p130, %p131
      %p133 = scmp.ne.s32.totalorder %s124, %s125
      %p134 = scmp.eq.s32.totalorder %s30, 0
      %p135 = por %p133, %p134
      %p136 = scmp.ne.s32.totalorder %s124, %s125
      %p137 = scmp.eq.s32.totalorder %s31, 1
      %p138 = por %p136, %p137
      %p140 = scmp.ne.s32.totalorder %s125, %s139
      %p141 = scmp.eq.s32.totalorder %s31, 0
      %p142 = por %p140, %p141
      %s144 = sadd.s32 %s143, 1
      %p147 = scmp.eq.s32.totalorder %s25, 1
      %p148 = scmp.ne.s32.totalorder %s143, %s145
      %p149 = scmp.eq.s32.totalorder %s25, 0
      %p150 = por %p148, %p149
      %p151 = scmp.ne.s32.totalorder %s143, %s145
      %p152 = scmp.eq.s32.totalorder %s30, 1
      %p153 = por %p151, %p152
      %p154 = scmp.ne.s32.totalorder %s145, %s146
      %p155 = scmp.eq.s32.totalorder %s30, 0
      %p156 = por %p154, %p155
      %p157 = scmp.ne.s32.totalorder %s145, %s146
      %p158 = scmp.eq.s32.totalorder %s31, 1
      %p159 = por %p157, %p158
      %p161 = scmp.ne.s32.totalorder %s146, %s160
      %p162 = scmp.eq.s32.totalorder %s31, 0
      %p163 = por %p161, %p162
      %s165 = sadd.s32 %s164, 1
      %p168 = scmp.eq.s32.totalorder %s25, 1
      %p169 = scmp.ne.s32.totalorder %s164, %s166
      %p170 = scmp.eq.s32.totalorder %s25, 0
      %p171 = por %p169, %p170
      %p172 = scmp.ne.s32.totalorder %s164, %s166
      %p173 = scmp.eq.s32.totalorder %s30, 1
      %p174 = por %p172, %p173
      %p175 = scmp.ne.s32.totalorder %s166, %s167
      %p176 = scmp.eq.s32.totalorder %s30, 0
      %p177 = por %p175, %p176
      %p178 = scmp.ne.s32.totalorder %s166, %s167
      %p179 = scmp.eq.s32.totalorder %s31, 1
      %p180 = por %p178, %p179
      %p182 = scmp.ne.s32.totalorder %s167, %s181
      %p183 = scmp.eq.s32.totalorder %s31, 0
      %p184 = por %p182, %p183
      %s186 = sadd.s32 %s185, 1
      %p189 = scmp.eq.s32.totalorder %s25, 1
      %p190 = scmp.ne.s32.totalorder %s185, %s187
      %p191 = scmp.eq.s32.totalorder %s25, 0
      %p192 = por %p190, %p191
      %p193 = scmp.ne.s32.totalorder %s185, %s187
      %p194 = scmp.eq.s32.totalorder %s30, 1
      %p195 = por %p193, %p194
      %p196 = scmp.ne.s32.totalorder %s187, %s188
      %p197 = scmp.eq.s32.totalorder %s30, 0
      %p198 = por %p196, %p197
      %p199 = scmp.ne.s32.totalorder %s187, %s188
      %p200 = scmp.eq.s32.totalorder %s31, 1
      %p201 = por %p199, %p200
      %p203 = scmp.ne.s32.totalorder %s188, %s202
      %p204 = scmp.eq.s32.totalorder %s31, 0
      %p205 = por %p203, %p204
      %s207 = sadd.s32 %s206, 1
      %p210 = scmp.eq.s32.totalorder %s25, 1
      %p211 = scmp.ne.s32.totalorder %s206, %s208
      %p212 = scmp.eq.s32.totalorder %s25, 0
      %p213 = por %p211, %p212
      %p214 = scmp.ne.s32.totalorder %s206, %s208
      %p215 = scmp.eq.s32.totalorder %s30, 1
      %p216 = por %p214, %p215
      %p217 = scmp.ne.s32.totalorder %s208, %s209
      %p218 = scmp.eq.s32.totalorder %s30, 0
      %p219 = por %p217, %p218
      %p220 = scmp.ne.s32.totalorder %s208, %s209
      %p221 = scmp.eq.s32.totalorder %s31, 1
      %p222 = por %p220, %p221
      %p224 = scmp.ne.s32.totalorder %s209, %s223
      %p225 = scmp.eq.s32.totalorder %s31, 0
      %p226 = por %p224, %p225
      %s228 = sadd.s32 %s227, 1
      %p231 = scmp.eq.s32.totalorder %s25, 1
      %p232 = scmp.ne.s32.totalorder %s227, %s229
      %p233 = scmp.eq.s32.totalorder %s25, 0
      %p234 = por %p232, %p233
      %p235 = scmp.ne.s32.totalorder %s227, %s229
      %p236 = scmp.eq.s32.totalorder %s30, 1
      %p237 = por %p235, %p236
      %p238 = scmp.ne.s32.totalorder %s229, %s230
      %p239 = scmp.eq.s32.totalorder %s30, 0
      %p240 = por %p238, %p239
      %p241 = scmp.ne.s32.totalorder %s229, %s230
      %p242 = scmp.eq.s32.totalorder %s31, 1
      %p243 = por %p241, %p242
      %p245 = scmp.ne.s32.totalorder %s230, %s244
      %p246 = scmp.eq.s32.totalorder %s31, 0
      %p247 = por %p245, %p246
      %s249 = sadd.s32 %s248, 1
      %p252 = scmp.eq.s32.totalorder %s25, 1
      %p253 = scmp.ne.s32.totalorder %s248, %s250
      %p254 = scmp.eq.s32.totalorder %s25, 0
      %p255 = por %p253, %p254
      %p256 = scmp.ne.s32.totalorder %s248, %s250
      %p257 = scmp.eq.s32.totalorder %s30, 1
      %p258 = por %p256, %p257
      %p259 = scmp.ne.s32.totalorder %s250, %s251
      %p260 = scmp.eq.s32.totalorder %s30, 0
      %p261 = por %p259, %p260
      %p262 = scmp.ne.s32.totalorder %s250, %s251
      %p263 = scmp.eq.s32.totalorder %s31, 1
      %p264 = por %p262, %p263
      %p266 = scmp.ne.s32.totalorder %s251, %s265
      %p267 = scmp.eq.s32.totalorder %s31, 0
      %p268 = por %p266, %p267
      %s269 = ssub.s32 %s25, %s32
      %p270 = scmp.eq.s32.totalorder %s269, 0
      %s272 = sadd.s32 %s271, 1
      %s273 = scalar_select %p270, %s271, %s272
      %p276 = pneg %p270
      %p277 = scmp.eq.s32.totalorder %s25, 1
      %p278 = por %p276, %p277
      %p279 = scmp.ne.s32.totalorder %s271, %s274
      %p280 = scmp.eq.s32.totalorder %s25, 0
      %p281 = por %p279, %p280
      %p282 = scmp.ne.s32.totalorder %s271, %s274
      %p283 = scmp.eq.s32.totalorder %s30, 1
      %p284 = por %p282, %p283
      %p285 = scmp.ne.s32.totalorder %s274, %s275
      %p286 = scmp.eq.s32.totalorder %s30, 0
      %p287 = por %p285, %p286
      %p288 = scmp.ne.s32.totalorder %s274, %s275
      %p289 = scmp.eq.s32.totalorder %s31, 1
      %p290 = por %p288, %p289
      %p292 = scmp.ne.s32.totalorder %s275, %s291
      %p293 = scmp.eq.s32.totalorder %s31, 0
      %p294 = por %p292, %p293
      %s295 = ssub.s32 %s25, %s32
      %p296 = scmp.eq.s32.totalorder %s295, 0
      %s298 = sadd.s32 %s297, 1
      %s299 = scalar_select %p296, %s297, %s298
      %p302 = pneg %p296
      %p303 = scmp.eq.s32.totalorder %s25, 1
      %p304 = por %p302, %p303
      %p305 = scmp.ne.s32.totalorder %s297, %s300
      %p306 = scmp.eq.s32.totalorder %s25, 0
      %p307 = por %p305, %p306
      %p308 = scmp.ne.s32.totalorder %s297, %s300
      %p309 = scmp.eq.s32.totalorder %s30, 1
      %p310 = por %p308, %p309
      %p311 = scmp.ne.s32.totalorder %s300, %s301
      %p312 = scmp.eq.s32.totalorder %s30, 0
      %p313 = por %p311, %p312
      %p314 = scmp.ne.s32.totalorder %s300, %s301
      %p315 = scmp.eq.s32.totalorder %s31, 1
      %p316 = por %p314, %p315
      %p318 = scmp.ne.s32.totalorder %s301, %s317
      %p319 = scmp.eq.s32.totalorder %s31, 0
      %p320 = por %p318, %p319
      %s321 = ssub.s32 %s25, %s32
      %p322 = scmp.eq.s32.totalorder %s321, 0
      %s324 = sadd.s32 %s323, 1
      %s325 = scalar_select %p322, %s323, %s324
      %p328 = pneg %p322
      %p329 = scmp.eq.s32.totalorder %s25, 1
      %p330 = por %p328, %p329
      %p331 = scmp.ne.s32.totalorder %s323, %s326
      %p332 = scmp.eq.s32.totalorder %s25, 0
      %p333 = por %p331, %p332
      %p334 = scmp.ne.s32.totalorder %s323, %s326
      %p335 = scmp.eq.s32.totalorder %s30, 1
      %p336 = por %p334, %p335
      %p337 = scmp.ne.s32.totalorder %s326, %s327
      %p338 = scmp.eq.s32.totalorder %s30, 0
      %p339 = por %p337, %p338
      %p340 = scmp.ne.s32.totalorder %s326, %s327
      %p341 = scmp.eq.s32.totalorder %s31, 1
      %p342 = por %p340, %p341
      %p344 = scmp.ne.s32.totalorder %s327, %s343
      %p345 = scmp.eq.s32.totalorder %s31, 0
      %p346 = por %p344, %p345
      %s347 = ssub.s32 %s25, %s32
      %p348 = scmp.eq.s32.totalorder %s347, 0
      %s350 = sadd.s32 %s349, 1
      %s351 = scalar_select %p348, %s349, %s350
      %p354 = pneg %p348
      %p355 = scmp.eq.s32.totalorder %s25, 1
      %p356 = por %p354, %p355
      %p357 = scmp.ne.s32.totalorder %s349, %s352
      %p358 = scmp.eq.s32.totalorder %s25, 0
      %p359 = por %p357, %p358
      %p360 = scmp.ne.s32.totalorder %s349, %s352
      %p361 = scmp.eq.s32.totalorder %s30, 1
      %p362 = por %p360, %p361
      %p363 = scmp.ne.s32.totalorder %s352, %s353
      %p364 = scmp.eq.s32.totalorder %s30, 0
      %p365 = por %p363, %p364
      %p366 = scmp.ne.s32.totalorder %s352, %s353
      %p367 = scmp.eq.s32.totalorder %s31, 1
      %p368 = por %p366, %p367
      %p370 = scmp.ne.s32.totalorder %s353, %s369
      %p371 = scmp.eq.s32.totalorder %s31, 0
      %p372 = por %p370, %p371
      %s373 = ssub.s32 %s25, %s32
      %p374 = scmp.eq.s32.totalorder %s373, 0
      %s376 = sadd.s32 %s375, 1
      %s377 = scalar_select %p374, %s375, %s376
      %p380 = pneg %p374
      %p381 = scmp.eq.s32.totalorder %s25, 1
      %p382 = por %p380, %p381
      %p383 = scmp.ne.s32.totalorder %s375, %s378
      %p384 = scmp.eq.s32.totalorder %s25, 0
      %p385 = por %p383, %p384
      %p386 = scmp.ne.s32.totalorder %s375, %s378
      %p387 = scmp.eq.s32.totalorder %s30, 1
      %p388 = por %p386, %p387
      %p389 = scmp.ne.s32.totalorder %s378, %s379
      %p390 = scmp.eq.s32.totalorder %s30, 0
      %p391 = por %p389, %p390
      %p392 = scmp.ne.s32.totalorder %s378, %s379
      %p393 = scmp.eq.s32.totalorder %s31, 1
      %p394 = por %p392, %p393
      %p396 = scmp.ne.s32.totalorder %s379, %s395
      %p397 = scmp.eq.s32.totalorder %s31, 0
      %p398 = por %p396, %p397
      %p399 = scmp.le.s32.totalorder 1, %s25
      %p400 = scmp.lt.s32.totalorder %s25, 3
      %p401 = pnand %p399, %p400
      %p402 = pneg %p401
      // Predicated region
      $region9: #{convnet_forward.1} parent=5 // pred_check
        _
      $region10: #{convnet_forward.1} parent=5 // pred_check_branch
        %404 = sbr.rel (%p401) target = $region12
      $region11: #{convnet_forward.1} parent=5 // pred_region
        %s405 = ssub.s32 %s25, 1
        // Predicated region
        $region13: #{convnet_forward.1} parent=11 // pred_check
          %p406 = pneg %p72
        $region14: #{convnet_forward.1} parent=11 // pred_check_branch
          %408 = sbr.rel (%p406) target = $region16
        $region15: #{convnet_forward.1} parent=11 // pred_region
          _
        $region16: #{convnet_forward.1} parent=11 // pred_fallthru
          _
        // Predicated region
        $region17: #{convnet_forward.1} parent=11 // pred_check
          %p409 = pneg %p93
        $region18: #{convnet_forward.1} parent=11 // pred_check_branch
          %411 = sbr.rel (%p409) target = $region20
        $region19: #{convnet_forward.1} parent=11 // pred_region
          _
        $region20: #{convnet_forward.1} parent=11 // pred_fallthru
          _
        // Predicated region
        $region21: #{convnet_forward.1} parent=11 // pred_check
          %p412 = pneg %p114
        $region22: #{convnet_forward.1} parent=11 // pred_check_branch
          %414 = sbr.rel (%p412) target = $region24
        $region23: #{convnet_forward.1} parent=11 // pred_region
          _
        $region24: #{convnet_forward.1} parent=11 // pred_fallthru
          _
        // Predicated region
        $region25: #{convnet_forward.1} parent=11 // pred_check
          %p415 = pneg %p135
        $region26: #{convnet_forward.1} parent=11 // pred_check_branch
          %417 = sbr.rel (%p415) target = $region28
        $region27: #{convnet_forward.1} parent=11 // pred_region
          _
        $region28: #{convnet_forward.1} parent=11 // pred_fallthru
          _
        // Predicated region
        $region29: #{convnet_forward.1} parent=11 // pred_check
          %p418 = pneg %p156
        $region30: #{convnet_forward.1} parent=11 // pred_check_branch
          %420 = sbr.rel (%p418) target = $region32
        $region31: #{convnet_forward.1} parent=11 // pred_region
          _
        $region32: #{convnet_forward.1} parent=11 // pred_fallthru
          _
        // Predicated region
        $region33: #{convnet_forward.1} parent=11 // pred_check
          %p421 = pneg %p177
        $region34: #{convnet_forward.1} parent=11 // pred_check_branch
          %423 = sbr.rel (%p421) target = $region36
        $region35: #{convnet_forward.1} parent=11 // pred_region
          _
        $region36: #{convnet_forward.1} parent=11 // pred_fallthru
          _
        // Predicated region
        $region37: #{convnet_forward.1} parent=11 // pred_check
          %p424 = pneg %p198
        $region38: #{convnet_forward.1} parent=11 // pred_check_branch
          %426 = sbr.rel (%p424) target = $region40
        $region39: #{convnet_forward.1} parent=11 // pred_region
          _
        $region40: #{convnet_forward.1} parent=11 // pred_fallthru
          _
        // Predicated region
        $region41: #{convnet_forward.1} parent=11 // pred_check
          %p427 = pneg %p219
        $region42: #{convnet_forward.1} parent=11 // pred_check_branch
          %429 = sbr.rel (%p427) target = $region44
        $region43: #{convnet_forward.1} parent=11 // pred_region
          _
        $region44: #{convnet_forward.1} parent=11 // pred_fallthru
          _
        // Predicated region
        $region45: #{convnet_forward.1} parent=11 // pred_check
          %p430 = pneg %p240
        $region46: #{convnet_forward.1} parent=11 // pred_check_branch
          %432 = sbr.rel (%p430) target = $region48
        $region47: #{convnet_forward.1} parent=11 // pred_region
          _
        $region48: #{convnet_forward.1} parent=11 // pred_fallthru
          _
        // Predicated region
        $region49: #{convnet_forward.1} parent=11 // pred_check
          %p433 = pneg %p261
        $region50: #{convnet_forward.1} parent=11 // pred_check_branch
          %435 = sbr.rel (%p433) target = $region52
        $region51: #{convnet_forward.1} parent=11 // pred_region
          _
        $region52: #{convnet_forward.1} parent=11 // pred_fallthru
          _
      $region12: #{convnet_forward.1} parent=5 // pred_fallthru
        _
      %p436 = scmp.lt.s32.totalorder %s25, 2
      // Predicated region
      $region53: #{convnet_forward.1} parent=5 // pred_check
        %p437 = pneg %p436
      $region54: #{convnet_forward.1} parent=5 // pred_check_branch
        %439 = sbr.rel (%p437) target = $region56
      $region55: #{convnet_forward.1} parent=5 // pred_region
        // Predicated region
        $region57: #{convnet_forward.1} parent=55 // pred_check
          %p440 = pneg %p45
        $region58: #{convnet_forward.1} parent=55 // pred_check_branch
          %442 = sbr.rel (%p440) target = $region60
        $region59: #{convnet_forward.1} parent=55 // pred_region
          %p443 = scmp.lt.s32.totalorder %s25, 1
          %s444 = scalar_select %p443, %s25, 1
          %s445 = smul.addr %s444, 4
          %s446 = smul.addr %s445, 8
          %s447 = scalar_lea.vmem %s0, %s446
        $region60: #{convnet_forward.1} parent=55 // pred_fallthru
          _
      $region56: #{convnet_forward.1} parent=5 // pred_fallthru
        _
      %p448 = scmp.le.s32.totalorder 1, %s25
      %p449 = scmp.lt.s32.totalorder %s25, 3
      %p450 = pnand %p448, %p449
      %p451 = pneg %p450
      // Predicated region
      $region61: #{convnet_forward.1} parent=5 // pred_check
        _
      $region62: #{convnet_forward.1} parent=5 // pred_check_branch
        %453 = sbr.rel (%p450) target = $region64
      $region63: #{convnet_forward.1} parent=5 // pred_region
        %s454 = ssub.s32 %s25, 1
        %p455 = scmp.lt.s32.totalorder %s30, 1
        %s456 = scalar_select %p455, %s30, 1
        %s457 = smul.addr %s456, 4
        %s458 = smul.addr %s457, 8
        %s459 = scalar_lea.vmem %s0, %s458
        %p460 = pneg %p51
        %p461 = pneg %p48
        %p462 = pneg %p72
        %p463 = pneg %p69
        %p464 = pneg %p93
        %p465 = pneg %p90
        %p466 = pneg %p114
        %p467 = pneg %p111
        %p468 = pneg %p135
        %p469 = pneg %p132
        %p470 = pneg %p156
        %p471 = pneg %p153
        %p472 = pneg %p177
        %p473 = pneg %p174
        %p474 = pneg %p198
        %p475 = pneg %p195
        %p476 = pneg %p219
        %p477 = pneg %p216
        %p478 = pneg %p240
        %p479 = pneg %p237
        %p480 = pneg %p261
        %p481 = pneg %p258
        %p482 = pneg %p287
        %p483 = pneg %p284
        %p484 = scmp.lt.s32.totalorder %s30, 1
        %s485 = scalar_select %p484, %s30, 1
        %s486 = smul.addr %s485, 16
        %s487 = smul.addr %s486, 8
        %s488 = scalar_lea.vmem %s11, %s487
        %p489 = pneg %p313
        %p490 = pneg %p310
        %p491 = scmp.lt.s32.totalorder %s30, 1
        %s492 = scalar_select %p491, %s30, 1
        %s493 = smul.addr %s492, 8
        %s494 = smul.addr %s493, 8
        %s495 = scalar_lea.vmem %s12, %s494
        %p496 = pneg %p339
        %p497 = pneg %p336
        %p498 = scmp.lt.s32.totalorder %s30, 1
        %s499 = scalar_select %p498, %s30, 1
        %s500 = smul.addr %s499, 4
        %s501 = smul.addr %s500, 8
        %s502 = scalar_lea.vmem %s13, %s501
        %p503 = pneg %p365
        %p504 = pneg %p362
        %s505 = sand.u32 %s352, 1
        %s506 = scalar_lea.sflag [#allocation3], %s505
        %s507 = sand.u32 %s352, 1
        %s508 = scalar_lea.vmem [#allocation2], %s507
        %p509 = pneg %p391
        %p510 = pneg %p388
        %p511 = scmp.lt.s32.totalorder %s30, 1
        %s512 = scalar_select %p511, %s30, 1
        %s513 = scalar_lea.vmem %s15, %s512
        %p514 = scmp.lt.s32.totalorder %s30, 1
        %s515 = scalar_select %p514, %s30, 1
        %s516 = smul.addr %s515, 4
        %s517 = smul.addr %s516, 8
        %s518 = scalar_lea.vmem %s0, %s517
        %p519 = scmp.lt.s32.totalorder %s30, 1
        %s520 = scalar_select %p519, %s30, 1
        %s521 = smul.addr %s520, 16
        %s522 = smul.addr %s521, 8
        %s523 = scalar_lea.vmem %s11, %s522
        %p524 = scmp.lt.s32.totalorder %s30, 1
        %s525 = scalar_select %p524, %s30, 1
        %s526 = smul.addr %s525, 8
        %s527 = smul.addr %s526, 8
        %s528 = scalar_lea.vmem %s12, %s527
        %p529 = scmp.lt.s32.totalorder %s30, 1
        %s530 = scalar_select %p529, %s30, 1
        %s531 = smul.addr %s530, 4
        %s532 = smul.addr %s531, 8
        %s533 = scalar_lea.vmem %s13, %s532
        %p534 = scmp.lt.s32.totalorder %s30, 1
        %s535 = scalar_select %p534, %s30, 1
        %s536 = scalar_lea.vmem %s15, %s535
        %v537 = vld [vmem:[%s518] sm:$0xff]
        %v538 = vld [vmem:[%s518 + $0x8] sm:$0xff]
        %v539 = vld [vmem:[%s518 + $0x10] sm:$0xff]
        %v540 = vld [vmem:[%s518 + $0x18] sm:$0xff]
        %vm545 = vcmask 1040384
        %v546 = vrot.slane %v537, 7
        %v547 = vrot.slane %v538, 7
        %v548 = vsel %vm545, %v546, %v547
        %v549 = vrot.slane %v539, 7
        %v550 = vsel %vm545, %v547, %v549
        %v551 = vrot.slane %v540, 7
        %v552 = vsel %vm545, %v549, %v551
        %v554 = vsel %vm545, 0.0, %v546
        %vm555 = vcmask 1046528
        %v556 = vrot.slane %v537, 1
        %v557 = vrot.slane %v538, 1
        %v558 = vsel %vm555, %v556, %v557
        %v559 = vrot.slane %v539, 1
        %v560 = vsel %vm555, %v557, %v559
        %v561 = vrot.slane %v540, 1
        %v562 = vsel %vm555, %v559, %v561
        %v564 = vsel %vm555, %v561, 0.0
        %v565 = vld [vmem:[%s1] sm:$0xff]
        %v566 = vld [vmem:[%s1 + $0x8] sm:$0xff]
        %v567 = vld [vmem:[%s1 + $0x10] sm:$0xff]
        %v568 = vld [vmem:[%s1 + $0x18] sm:$0xff]
        %v569 = vld [vmem:[%s1 + $0x20] sm:$0xff]
        %v570 = vld [vmem:[%s1 + $0x28] sm:$0xff]
        %v571 = vld [vmem:[%s1 + $0x30] sm:$0xff]
        %v572 = vld [vmem:[%s1 + $0x38] sm:$0xff]
        %v573 = vld [vmem:[%s1 + $0x40] sm:$0xff]
        %v574 = vld [vmem:[%s1 + $0x48] sm:$0xff]
        %v575 = vld [vmem:[%s1 + $0x50] sm:$0xff]
        %v576 = vld [vmem:[%s1 + $0x58] sm:$0xff]
        %v577 = vld [vmem:[%s1 + $0x60] sm:$0xff]
        %v578 = vld [vmem:[%s1 + $0x68] sm:$0xff]
        %v579 = vld [vmem:[%s1 + $0x70] sm:$0xff]
        %v580 = vld [vmem:[%s1 + $0x78] sm:$0xff]
        %v581 = vld [vmem:[%s1 + $0x80] sm:$0xff]
        %v582 = vld [vmem:[%s1 + $0x88] sm:$0xff]
        %v583 = vld [vmem:[%s1 + $0x90] sm:$0xff]
        %v584 = vld [vmem:[%s1 + $0x98] sm:$0xff]
        %v585 = vld [vmem:[%s1 + $0xa0] sm:$0xff]
        %v586 = vld [vmem:[%s1 + $0xa8] sm:$0xff]
        %v587 = vld [vmem:[%s1 + $0xb0] sm:$0xff]
        %v588 = vld [vmem:[%s1 + $0xb8] sm:$0xff]
        %v589 = vld [vmem:[%s1 + $0xc0] sm:$0xff]
        %v590 = vld [vmem:[%s1 + $0xc8] sm:$0xff]
        %v591 = vld [vmem:[%s1 + $0xd0] sm:$0xff]
        %v592 = vld [vmem:[%s1 + $0xd8] sm:$0xff]
        %v593 = vld [vmem:[%s1 + $0xe0] sm:$0xff]
        %v594 = vld [vmem:[%s1 + $0xe8] sm:$0xff]
        %v595 = vld [vmem:[%s1 + $0xf0] sm:$0xff]
        %v596 = vld [vmem:[%s1 + $0xf8] sm:$0xff]
        %v597 = vld [vmem:[%s1 + $0x100] sm:$0xff]
        %v598 = vld [vmem:[%s1 + $0x108] sm:$0xff]
        %v599 = vld [vmem:[%s1 + $0x110] sm:$0xff]
        %v600 = vld [vmem:[%s1 + $0x118] sm:$0xff]
        %v601 = vld [vmem:[%s1 + $0x120] sm:$0xff]
        %v602 = vld [vmem:[%s1 + $0x128] sm:$0xff]
        %v603 = vld [vmem:[%s1 + $0x130] sm:$0xff]
        %v604 = vld [vmem:[%s1 + $0x138] sm:$0xff]
        %v605 = vld [vmem:[%s1 + $0x140] sm:$0xff]
        %v606 = vld [vmem:[%s1 + $0x148] sm:$0xff]
        %v607 = vld [vmem:[%s1 + $0x150] sm:$0xff]
        %v608 = vld [vmem:[%s1 + $0x158] sm:$0xff]
        %v609 = vld [vmem:[%s1 + $0x160] sm:$0xff]
        %v610 = vld [vmem:[%s1 + $0x168] sm:$0xff]
        %v611 = vld [vmem:[%s1 + $0x170] sm:$0xff]
        %v612 = vld [vmem:[%s1 + $0x178] sm:$0xff]
        %s613 = scalar_lea.vmem %s1, 384
        %v614 = vld [vmem:[%s613] sm:$0xff]
        %v615 = vld [vmem:[%s613 + $0x8] sm:$0xff]
        %v616 = vld [vmem:[%s613 + $0x10] sm:$0xff]
        %v617 = vld [vmem:[%s613 + $0x18] sm:$0xff]
        %v618 = vld [vmem:[%s613 + $0x20] sm:$0xff]
        %v619 = vld [vmem:[%s613 + $0x28] sm:$0xff]
        %v620 = vld [vmem:[%s613 + $0x30] sm:$0xff]
        %v621 = vld [vmem:[%s613 + $0x38] sm:$0xff]
        %v622 = vld [vmem:[%s613 + $0x40] sm:$0xff]
        %v623 = vld [vmem:[%s613 + $0x48] sm:$0xff]
        %v624 = vld [vmem:[%s613 + $0x50] sm:$0xff]
        %v625 = vld [vmem:[%s613 + $0x58] sm:$0xff]
        %v626 = vld [vmem:[%s613 + $0x60] sm:$0xff]
        %v627 = vld [vmem:[%s613 + $0x68] sm:$0xff]
        %v628 = vld [vmem:[%s613 + $0x70] sm:$0xff]
        %v629 = vld [vmem:[%s613 + $0x78] sm:$0xff]
        %v630 = vld [vmem:[%s613 + $0x80] sm:$0xff]
        %v631 = vld [vmem:[%s613 + $0x88] sm:$0xff]
        %v632 = vld [vmem:[%s613 + $0x90] sm:$0xff]
        %v633 = vld [vmem:[%s613 + $0x98] sm:$0xff]
        %v634 = vld [vmem:[%s613 + $0xa0] sm:$0xff]
        %v635 = vld [vmem:[%s613 + $0xa8] sm:$0xff]
        %v636 = vld [vmem:[%s613 + $0xb0] sm:$0xff]
        %v637 = vld [vmem:[%s613 + $0xb8] sm:$0xff]
        %v638 = vld [vmem:[%s613 + $0xc0] sm:$0xff]
        %v639 = vld [vmem:[%s613 + $0xc8] sm:$0xff]
        %v640 = vld [vmem:[%s613 + $0xd0] sm:$0xff]
        %v641 = vld [vmem:[%s613 + $0xd8] sm:$0xff]
        %v642 = vld [vmem:[%s613 + $0xe0] sm:$0xff]
        %v643 = vld [vmem:[%s613 + $0xe8] sm:$0xff]
        %v644 = vld [vmem:[%s613 + $0xf0] sm:$0xff]
        %v645 = vld [vmem:[%s613 + $0xf8] sm:$0xff]
        %v646 = vld [vmem:[%s613 + $0x100] sm:$0xff]
        %v647 = vld [vmem:[%s613 + $0x108] sm:$0xff]
        %v648 = vld [vmem:[%s613 + $0x110] sm:$0xff]
        %v649 = vld [vmem:[%s613 + $0x118] sm:$0xff]
        %v650 = vld [vmem:[%s613 + $0x120] sm:$0xff]
        %v651 = vld [vmem:[%s613 + $0x128] sm:$0xff]
        %v652 = vld [vmem:[%s613 + $0x130] sm:$0xff]
        %v653 = vld [vmem:[%s613 + $0x138] sm:$0xff]
        %v654 = vld [vmem:[%s613 + $0x140] sm:$0xff]
        %v655 = vld [vmem:[%s613 + $0x148] sm:$0xff]
        %v656 = vld [vmem:[%s613 + $0x150] sm:$0xff]
        %v657 = vld [vmem:[%s613 + $0x158] sm:$0xff]
        %v658 = vld [vmem:[%s613 + $0x160] sm:$0xff]
        %v659 = vld [vmem:[%s613 + $0x168] sm:$0xff]
        %v660 = vld [vmem:[%s613 + $0x170] sm:$0xff]
        %v661 = vld [vmem:[%s613 + $0x178] sm:$0xff]
        %vm662 = vcmask 785408
        %v663 = vsel %vm662, %v537, 0
        %v665 = vsel %vm662, %v538, 0
        %v667 = vsel %vm662, %v539, 0
        %v669 = vsel %vm662, %v540, 0
        %671 = vmatprep.subr.mxu0 %v615
        %672 = vmatpush1.msra.mxu0 %v614
        %673 = vmatprep.subr.mxu0 %v619
        %674 = vmatpush1.msra.mxu0 %v618
        %675 = vmatprep.subr.mxu0 %v623
        %676 = vmatpush1.msra.mxu0 %v622
        %677 = vmatprep.subr.mxu0 %v627
        %678 = vmatpush1.msra.mxu0 %v626
        %679 = vmatprep.subr.mxu0 %v631
        %680 = vmatpush1.msra.mxu0 %v630
        %681 = vmatprep.subr.mxu0 %v635
        %682 = vmatpush1.msra.mxu0 %v634
        %683 = vmatprep.subr.mxu0 %v639
        %684 = vmatpush1.msra.mxu0 %v638
        %685 = vmatprep.subr.mxu0 %v643
        %686 = vmatpush1.msra.mxu0 %v642
        %687 = vmatprep.subr.mxu0 %v647
        %688 = vmatpush1.msra.mxu0 %v646
        %689 = vmatprep.subr.mxu0 %v651
        %690 = vmatpush1.msra.mxu0 %v650
        %691 = vmatprep.subr.mxu0 %v655
        %692 = vmatpush1.msra.mxu0 %v654
        %693 = vmatprep.subr.mxu0 %v659
        %694 = vmatpush1.msra.mxu0 %v658
        %695 = vmatprep.subr.mxu0 0.0
        %696 = vmatpush1.msra.mxu0 0.0
        %697 = vmatprep.subr.mxu0 0.0
        %698 = vmatpush1.msra.mxu0 0.0
        %699 = vmatprep.subr.mxu0 0.0
        %700 = vmatpush1.msra.mxu0 0.0
        %701 = vmatprep.subr.mxu0 0.0
        %702 = vmatpush1.msra.mxu0 0.0
        %703 = vmatprep.subr.mxu0 0.0
        %704 = vmatpush1.msra.mxu0 0.0
        %705 = vmatprep.subr.mxu0 0.0
        %706 = vmatpush1.msra.mxu0 0.0
        %707 = vmatprep.subr.mxu0 0.0
        %708 = vmatpush1.msra.mxu0 0.0
        %709 = vmatprep.subr.mxu0 0.0
        %710 = vmatpush1.msra.mxu0 0.0
        %711 = vmatprep.subr.mxu0 0.0
        %712 = vmatpush1.msra.mxu0 0.0
        %713 = vmatprep.subr.mxu0 0.0
        %714 = vmatpush1.msra.mxu0 0.0
        %715 = vmatprep.subr.mxu0 0.0
        %716 = vmatpush1.msra.mxu0 0.0
        %717 = vmatprep.subr.mxu0 0.0
        %718 = vmatpush1.msra.mxu0 0.0
        %719 = vmatprep.subr.mxu0 0.0
        %720 = vmatpush1.msra.mxu0 0.0
        %721 = vmatprep.subr.mxu0 0.0
        %722 = vmatpush1.msra.mxu0 0.0
        %723 = vmatprep.subr.mxu0 0.0
        %724 = vmatpush1.msra.mxu0 0.0
        %725 = vmatprep.subr.mxu0 0.0
        %726 = vmatpush1.msra.mxu0 0.0
        %727 = vmatprep.subr.mxu0 0.0
        %728 = vmatpush1.msra.mxu0 0.0
        %729 = vmatprep.subr.mxu0 0.0
        %730 = vmatpush1.msra.mxu0 0.0
        %731 = vmatprep.subr.mxu0 0.0
        %732 = vmatpush1.msra.mxu0 0.0
        %733 = vmatprep.subr.mxu0 0.0
        %734 = vmatpush1.msra.mxu0 0.0
        %735 = vmatprep.mubr.f32.mxu0 0.0
        %736 = vmatmul.mubr.f32.gmra.mrb[0].mxu0 %v663
        %v737 = vpop.f32.mrb[0].mxu0
        %v738 = vadd.f32 0.0, %v737
        %v739 = vpop.f32.mrb[0].mxu0
        %v740 = vadd.f32 0.0, %v739
        %741 = vmatprep.mubr.f32.mxu0 0.0
        %742 = vmatmul.mubr.f32.gmra.mrb[0].mxu0 %v665
        %v743 = vpop.f32.mrb[0].mxu0
        %v744 = vadd.f32 0.0, %v743
        %v745 = vpop.f32.mrb[0].mxu0
        %v746 = vadd.f32 0.0, %v745
        %747 = vmatprep.mubr.f32.mxu0 0.0
        %748 = vmatmul.mubr.f32.gmra.mrb[0].mxu0 %v667
        %v749 = vpop.f32.mrb[0].mxu0
        %v750 = vadd.f32 0.0, %v749
        %v751 = vpop.f32.mrb[0].mxu0
        %v752 = vadd.f32 0.0, %v751
        %753 = vmatprep.mubr.f32.mxu0 0.0
        %754 = vmatmul.mubr.f32.gmra.mrb[0].mxu0 %v669
        %v755 = vpop.f32.mrb[0].mxu0
        %v756 = vadd.f32 0.0, %v755
        %v757 = vpop.f32.mrb[0].mxu0
        %v758 = vadd.f32 0.0, %v757
        %759 = vdwg.mxu0
        %760 = vmatprep.subr.mxu0 %v617
        %761 = vmatpush1.msra.mxu0 %v616
        %762 = vmatprep.subr.mxu0 %v621
        %763 = vmatpush1.msra.mxu0 %v620
        %764 = vmatprep.subr.mxu0 %v625
        %765 = vmatpush1.msra.mxu0 %v624
        %766 = vmatprep.subr.mxu0 %v629
        %767 = vmatpush1.msra.mxu0 %v628
        %768 = vmatprep.subr.mxu0 %v633
        %769 = vmatpush1.msra.mxu0 %v632
        %770 = vmatprep.subr.mxu0 %v637
        %771 = vmatpush1.msra.mxu0 %v636
        %772 = vmatprep.subr.mxu0 %v641
        %773 = vmatpush1.msra.mxu0 %v640
        %774 = vmatprep.subr.mxu0 %v645
        %775 = vmatpush1.msra.mxu0 %v644
        %776 = vmatprep.subr.mxu0 %v649
        %777 = vmatpush1.msra.mxu0 %v648
        %778 = vmatprep.subr.mxu0 %v653
        %779 = vmatpush1.msra.mxu0 %v652
        %780 = vmatprep.subr.mxu0 %v657
        %781 = vmatpush1.msra.mxu0 %v656
        %782 = vmatprep.subr.mxu0 %v661
        %783 = vmatpush1.msra.mxu0 %v660
        %784 = vmatprep.subr.mxu0 0.0
        %785 = vmatpush1.msra.mxu0 0.0
        %786 = vmatprep.subr.mxu0 0.0
        %787 = vmatpush1.msra.mxu0 0.0
        %788 = vmatprep.subr.mxu0 0.0
        %789 = vmatpush1.msra.mxu0 0.0
        %790 = vmatprep.subr.mxu0 0.0
        %791 = vmatpush1.msra.mxu0 0.0
        %792 = vmatprep.subr.mxu0 0.0
        %793 = vmatpush1.msra.mxu0 0.0
        %794 = vmatprep.subr.mxu0 0.0
        %795 = vmatpush1.msra.mxu0 0.0
        %796 = vmatprep.subr.mxu0 0.0
        %797 = vmatpush1.msra.mxu0 0.0
        %798 = vmatprep.subr.mxu0 0.0
        %799 = vmatpush1.msra.mxu0 0.0
        %800 = vmatprep.subr.mxu0 0.0
        %801 = vmatpush1.msra.mxu0 0.0
        %802 = vmatprep.subr.mxu0 0.0
        %803 = vmatpush1.msra.mxu0 0.0
        %804 = vmatprep.subr.mxu0 0.0
        %805 = vmatpush1.msra.mxu0 0.0
        %806 = vmatprep.subr.mxu0 0.0
        %807 = vmatpush1.msra.mxu0 0.0
        %808 = vmatprep.subr.mxu0 0.0
        %809 = vmatpush1.msra.mxu0 0.0
        %810 = vmatprep.subr.mxu0 0.0
        %811 = vmatpush1.msra.mxu0 0.0
        %812 = vmatprep.subr.mxu0 0.0
        %813 = vmatpush1.msra.mxu0 0.0
        %814 = vmatprep.subr.mxu0 0.0
        %815 = vmatpush1.msra.mxu0 0.0
        %816 = vmatprep.subr.mxu0 0.0
        %817 = vmatpush1.msra.mxu0 0.0
        %818 = vmatprep.subr.mxu0 0.0
        %819 = vmatpush1.msra.mxu0 0.0
        %820 = vmatprep.subr.mxu0 0.0
        %821 = vmatpush1.msra.mxu0 0.0
        %822 = vmatprep.subr.mxu0 0.0
        %823 = vmatpush1.msra.mxu0 0.0
        %824 = vmatprep.mubr.f32.mxu0 0.0
        %825 = vmatmul.mubr.f32.gmra.mrb[0].mxu0 %v663
        %v826 = vpop.f32.mrb[0].mxu0
        %v827 = vadd.f32 0.0, %v826
        %v828 = vpop.f32.mrb[0].mxu0
        %v829 = vadd.f32 0.0, %v828
        %830 = vmatprep.mubr.f32.mxu0 0.0
        %831 = vmatmul.mubr.f32.gmra.mrb[0].mxu0 %v665
        %v832 = vpop.f32.mrb[0].mxu0
        %v833 = vadd.f32 0.0, %v832
        %v834 = vpop.f32.mrb[0].mxu0
        %v835 = vadd.f32 0.0, %v834
        %836 = vmatprep.mubr.f32.mxu0 0.0
        %837 = vmatmul.mubr.f32.gmra.mrb[0].mxu0 %v667
        %v838 = vpop.f32.mrb[0].mxu0
        %v839 = vadd.f32 0.0, %v838
        %v840 = vpop.f32.mrb[0].mxu0
        %v841 = vadd.f32 0.0, %v840
        %842 = vmatprep.mubr.f32.mxu0 0.0
        %843 = vmatmul.mubr.f32.gmra.mrb[0].mxu0 %v669
        %v844 = vpop.f32.mrb[0].mxu0
        %v845 = vadd.f32 0.0, %v844
        %v846 = vpop.f32.mrb[0].mxu0
        %v847 = vadd.f32 0.0, %v846
        %848 = vdwg.mxu0
        %v850 = vsel %vm662, %v554, 0
        %v852 = vsel %vm662, %v548, 0
        %v854 = vsel %vm662, %v550, 0
        %v856 = vsel %vm662, %v552, 0
        %858 = vmatprep.subr.mxu0 %v566
        %859 = vmatpush1.msra.mxu0 %v565
        %860 = vmatprep.subr.mxu0 %v570
        %861 = vmatpush1.msra.mxu0 %v569
        %862 = vmatprep.subr.mxu0 %v574
        %863 = vmatpush1.msra.mxu0 %v573
        %864 = vmatprep.subr.mxu0 %v578
        %865 = vmatpush1.msra.mxu0 %v577
        %866 = vmatprep.subr.mxu0 %v582
        %867 = vmatpush1.msra.mxu0 %v581
        %868 = vmatprep.subr.mxu0 %v586
        %869 = vmatpush1.msra.mxu0 %v585
        %870 = vmatprep.subr.mxu0 %v590
        %871 = vmatpush1.msra.mxu0 %v589
        %872 = vmatprep.subr.mxu0 %v594
        %873 = vmatpush1.msra.mxu0 %v593
        %874 = vmatprep.subr.mxu0 %v598
        %875 = vmatpush1.msra.mxu0 %v597
        %876 = vmatprep.subr.mxu0 %v602
        %877 = vmatpush1.msra.mxu0 %v601
        %878 = vmatprep.subr.mxu0 %v606
        %879 = vmatpush1.msra.mxu0 %v605
        %880 = vmatprep.subr.mxu0 %v610
        %881 = vmatpush1.msra.mxu0 %v609
        %882 = vmatprep.subr.mxu0 0.0
        %883 = vmatpush1.msra.mxu0 0.0
        %884 = vmatprep.subr.mxu0 0.0
        %885 = vmatpush1.msra.mxu0 0.0
        %886 = vmatprep.subr.mxu0 0.0
        %887 = vmatpush1.msra.mxu0 0.0
        %888 = vmatprep.subr.mxu0 0.0
        %889 = vmatpush1.msra.mxu0 0.0
        %890 = vmatprep.subr.mxu0 0.0
        %891 = vmatpush1.msra.mxu0 0.0
        %892 = vmatprep.subr.mxu0 0.0
        %893 = vmatpush1.msra.mxu0 0.0
        %894 = vmatprep.subr.mxu0 0.0
        %895 = vmatpush1.msra.mxu0 0.0
        %896 = vmatprep.subr.mxu0 0.0
        %897 = vmatpush1.msra.mxu0 0.0
        %898 = vmatprep.subr.mxu0 0.0
        %899 = vmatpush1.msra.mxu0 0.0
        %900 = vmatprep.subr.mxu0 0.0
        %901 = vmatpush1.msra.mxu0 0.0
        %902 = vmatprep.subr.mxu0 0.0
        %903 = vmatpush1.msra.mxu0 0.0
        %904 = vmatprep.subr.mxu0 0.0
        %905 = vmatpush1.msra.mxu0 0.0
        %906 = vmatprep.subr.mxu0 0.0
        %907 = vmatpush1.msra.mxu0 0.0
        %908 = vmatprep.subr.mxu0 0.0
        %909 = vmatpush1.msra.mxu0 0.0
        %910 = vmatprep.subr.mxu0 0.0
        %911 = vmatpush1.msra.mxu0 0.0
        %912 = vmatprep.subr.mxu0 0.0
        %913 = vmatpush1.msra.mxu0 0.0
        %914 = vmatprep.subr.mxu0 0.0
        %915 = vmatpush1.msra.mxu0 0.0
        %916 = vmatprep.subr.mxu0 0.0
        %917 = vmatpush1.msra.mxu0 0.0
        %918 = vmatprep.subr.mxu0 0.0
        %919 = vmatpush1.msra.mxu0 0.0
        %920 = vmatprep.subr.mxu0 0.0
        %921 = vmatpush1.msra.mxu0 0.0
        %922 = vmatprep.mubr.f32.mxu0 0.0
        %923 = vmatmul.mubr.f32.gmra.mrb[0].mxu0 %v850
        %v924 = vpop.f32.mrb[0].mxu0
        %v925 = vadd.f32 %v738, %v924
        %v926 = vpop.f32.mrb[0].mxu0
        %v927 = vadd.f32 %v740, %v926
        %928 = vmatprep.mubr.f32.mxu0 0.0
        %929 = vmatmul.mubr.f32.gmra.mrb[0].mxu0 %v852
        %v930 = vpop.f32.mrb[0].mxu0
        %v931 = vadd.f32 %v744, %v930
        %v932 = vpop.f32.mrb[0].mxu0
        %v933 = vadd.f32 %v746, %v932
        %934 = vmatprep.mubr.f32.mxu0 0.0
        %935 = vmatmul.mubr.f32.gmra.mrb[0].mxu0 %v854
        %v936 = vpop.f32.mrb[0].mxu0
        %v937 = vadd.f32 %v750, %v936
        %v938 = vpop.f32.mrb[0].mxu0
        %v939 = vadd.f32 %v752, %v938
        %940 = vmatprep.mubr.f32.mxu0 0.0
        %941 = vmatmul.mubr.f32.gmra.mrb[0].mxu0 %v856
        %v942 = vpop.f32.mrb[0].mxu0
        %v943 = vadd.f32 %v756, %v942
        %v944 = vpop.f32.mrb[0].mxu0
        %v945 = vadd.f32 %v758, %v944
        %946 = vdwg.mxu0
        %947 = vmatprep.subr.mxu0 %v568
        %948 = vmatpush1.msra.mxu0 %v567
        %949 = vmatprep.subr.mxu0 %v572
        %950 = vmatpush1.msra.mxu0 %v571
        %951 = vmatprep.subr.mxu0 %v576
        %952 = vmatpush1.msra.mxu0 %v575
        %953 = vmatprep.subr.mxu0 %v580
        %954 = vmatpush1.msra.mxu0 %v579
        %955 = vmatprep.subr.mxu0 %v584
        %956 = vmatpush1.msra.mxu0 %v583
        %957 = vmatprep.subr.mxu0 %v588
        %958 = vmatpush1.msra.mxu0 %v587
        %959 = vmatprep.subr.mxu0 %v592
        %960 = vmatpush1.msra.mxu0 %v591
        %961 = vmatprep.subr.mxu0 %v596
        %962 = vmatpush1.msra.mxu0 %v595
        %963 = vmatprep.subr.mxu0 %v600
        %964 = vmatpush1.msra.mxu0 %v599
        %965 = vmatprep.subr.mxu0 %v604
        %966 = vmatpush1.msra.mxu0 %v603
        %967 = vmatprep.subr.mxu0 %v608
        %968 = vmatpush1.msra.mxu0 %v607
        %969 = vmatprep.subr.mxu0 %v612
        %970 = vmatpush1.msra.mxu0 %v611
        %971 = vmatprep.subr.mxu0 0.0
        %972 = vmatpush1.msra.mxu0 0.0
        %973 = vmatprep.subr.mxu0 0.0
        %974 = vmatpush1.msra.mxu0 0.0
        %975 = vmatprep.subr.mxu0 0.0
        %976 = vmatpush1.msra.mxu0 0.0
        %977 = vmatprep.subr.mxu0 0.0
        %978 = vmatpush1.msra.mxu0 0.0
        %979 = vmatprep.subr.mxu0 0.0
        %980 = vmatpush1.msra.mxu0 0.0
        %981 = vmatprep.subr.mxu0 0.0
        %982 = vmatpush1.msra.mxu0 0.0
        %983 = vmatprep.subr.mxu0 0.0
        %984 = vmatpush1.msra.mxu0 0.0
        %985 = vmatprep.subr.mxu0 0.0
        %986 = vmatpush1.msra.mxu0 0.0
        %987 = vmatprep.subr.mxu0 0.0
        %988 = vmatpush1.msra.mxu0 0.0
        %989 = vmatprep.subr.mxu0 0.0
        %990 = vmatpush1.msra.mxu0 0.0
        %991 = vmatprep.subr.mxu0 0.0
        %992 = vmatpush1.msra.mxu0 0.0
        %993 = vmatprep.subr.mxu0 0.0
        %994 = vmatpush1.msra.mxu0 0.0
        %995 = vmatprep.subr.mxu0 0.0
        %996 = vmatpush1.msra.mxu0 0.0
        %997 = vmatprep.subr.mxu0 0.0
        %998 = vmatpush1.msra.mxu0 0.0
        %999 = vmatprep.subr.mxu0 0.0
        %1000 = vmatpush1.msra.mxu0 0.0
        %1001 = vmatprep.subr.mxu0 0.0
        %1002 = vmatpush1.msra.mxu0 0.0
        %1003 = vmatprep.subr.mxu0 0.0
        %1004 = vmatpush1.msra.mxu0 0.0
        %1005 = vmatprep.subr.mxu0 0.0
        %1006 = vmatpush1.msra.mxu0 0.0
        %1007 = vmatprep.subr.mxu0 0.0
        %1008 = vmatpush1.msra.mxu0 0.0
        %1009 = vmatprep.subr.mxu0 0.0
        %1010 = vmatpush1.msra.mxu0 0.0
        %1011 = vmatprep.mubr.f32.mxu0 0.0
        %1012 = vmatmul.mubr.f32.gmra.mrb[0].mxu0 %v850
        %v1013 = vpop.f32.mrb[0].mxu0
        %v1014 = vadd.f32 %v827, %v1013
        %v1015 = vpop.f32.mrb[0].mxu0
        %v1016 = vadd.f32 %v829, %v1015
        %1017 = vmatprep.mubr.f32.mxu0 0.0
        %1018 = vmatmul.mubr.f32.gmra.mrb[0].mxu0 %v852
        %v1019 = vpop.f32.mrb[0].mxu0
        %v1020 = vadd.f32 %v833, %v1019
        %v1021 = vpop.f32.mrb[0].mxu0
        %v1022 = vadd.f32 %v835, %v1021
        %1023 = vmatprep.mubr.f32.mxu0 0.0
        %1024 = vmatmul.mubr.f32.gmra.mrb[0].mxu0 %v854
        %v1025 = vpop.f32.mrb[0].mxu0
        %v1026 = vadd.f32 %v839, %v1025
        %v1027 = vpop.f32.mrb[0].mxu0
        %v1028 = vadd.f32 %v841, %v1027
        %1029 = vmatprep.mubr.f32.mxu0 0.0
        %1030 = vmatmul.mubr.f32.gmra.mrb[0].mxu0 %v856
        %v1031 = vpop.f32.mrb[0].mxu0
        %v1032 = vadd.f32 %v845, %v1031
        %v1033 = vpop.f32.mrb[0].mxu0
        %v1034 = vadd.f32 %v847, %v1033
        %1035 = vdwg.mxu0
        %s1036 = scalar_lea.vmem %s1, 768
        %v1037 = vld [vmem:[%s1036] sm:$0xff]
        %v1038 = vld [vmem:[%s1036 + $0x8] sm:$0xff]
        %v1039 = vld [vmem:[%s1036 + $0x10] sm:$0xff]
        %v1040 = vld [vmem:[%s1036 + $0x18] sm:$0xff]
        %v1041 = vld [vmem:[%s1036 + $0x20] sm:$0xff]
        %v1042 = vld [vmem:[%s1036 + $0x28] sm:$0xff]
        %v1043 = vld [vmem:[%s1036 + $0x30] sm:$0xff]
        %v1044 = vld [vmem:[%s1036 + $0x38] sm:$0xff]
        %v1045 = vld [vmem:[%s1036 + $0x40] sm:$0xff]
        %v1046 = vld [vmem:[%s1036 + $0x48] sm:$0xff]
        %v1047 = vld [vmem:[%s1036 + $0x50] sm:$0xff]
        %v1048 = vld [vmem:[%s1036 + $0x58] sm:$0xff]
        %v1049 = vld [vmem:[%s1036 + $0x60] sm:$0xff]
        %v1050 = vld [vmem:[%s1036 + $0x68] sm:$0xff]
        %v1051 = vld [vmem:[%s1036 + $0x70] sm:$0xff]
        %v1052 = vld [vmem:[%s1036 + $0x78] sm:$0xff]
        %v1053 = vld [vmem:[%s1036 + $0x80] sm:$0xff]
        %v1054 = vld [vmem:[%s1036 + $0x88] sm:$0xff]
        %v1055 = vld [vmem:[%s1036 + $0x90] sm:$0xff]
        %v1056 = vld [vmem:[%s1036 + $0x98] sm:$0xff]
        %v1057 = vld [vmem:[%s1036 + $0xa0] sm:$0xff]
        %v1058 = vld [vmem:[%s1036 + $0xa8] sm:$0xff]
        %v1059 = vld [vmem:[%s1036 + $0xb0] sm:$0xff]
        %v1060 = vld [vmem:[%s1036 + $0xb8] sm:$0xff]
        %v1061 = vld [vmem:[%s1036 + $0xc0] sm:$0xff]
        %v1062 = vld [vmem:[%s1036 + $0xc8] sm:$0xff]
        %v1063 = vld [vmem:[%s1036 + $0xd0] sm:$0xff]
        %v1064 = vld [vmem:[%s1036 + $0xd8] sm:$0xff]
        %v1065 = vld [vmem:[%s1036 + $0xe0] sm:$0xff]
        %v1066 = vld [vmem:[%s1036 + $0xe8] sm:$0xff]
        %v1067 = vld [vmem:[%s1036 + $0xf0] sm:$0xff]
        %v1068 = vld [vmem:[%s1036 + $0xf8] sm:$0xff]
        %v1069 = vld [vmem:[%s1036 + $0x100] sm:$0xff]
        %v1070 = vld [vmem:[%s1036 + $0x108] sm:$0xff]
        %v1071 = vld [vmem:[%s1036 + $0x110] sm:$0xff]
        %v1072 = vld [vmem:[%s1036 + $0x118] sm:$0xff]
        %v1073 = vld [vmem:[%s1036 + $0x120] sm:$0xff]
        %v1074 = vld [vmem:[%s1036 + $0x128] sm:$0xff]
        %v1075 = vld [vmem:[%s1036 + $0x130] sm:$0xff]
        %v1076 = vld [vmem:[%s1036 + $0x138] sm:$0xff]
        %v1077 = vld [vmem:[%s1036 + $0x140] sm:$0xff]
        %v1078 = vld [vmem:[%s1036 + $0x148] sm:$0xff]
        %v1079 = vld [vmem:[%s1036 + $0x150] sm:$0xff]
        %v1080 = vld [vmem:[%s1036 + $0x158] sm:$0xff]
        %v1081 = vld [vmem:[%s1036 + $0x160] sm:$0xff]
        %v1082 = vld [vmem:[%s1036 + $0x168] sm:$0xff]
        %v1083 = vld [vmem:[%s1036 + $0x170] sm:$0xff]
        %v1084 = vld [vmem:[%s1036 + $0x178] sm:$0xff]
        %v1085 = vsel %vm662, %v558, 0
        %v1087 = vsel %vm662, %v560, 0
        %v1089 = vsel %vm662, %v562, 0
        %v1092 = vsel %vm662, %v564, 0
        %1094 = vmatprep.subr.mxu0 %v1038
        %1095 = vmatpush1.msra.mxu0 %v1037
        %1096 = vmatprep.subr.mxu0 %v1042
        %1097 = vmatpush1.msra.mxu0 %v1041
        %1098 = vmatprep.subr.mxu0 %v1046
        %1099 = vmatpush1.msra.mxu0 %v1045
        %1100 = vmatprep.subr.mxu0 %v1050
        %1101 = vmatpush1.msra.mxu0 %v1049
        %1102 = vmatprep.subr.mxu0 %v1054
        %1103 = vmatpush1.msra.mxu0 %v1053
        %1104 = vmatprep.subr.mxu0 %v1058
        %1105 = vmatpush1.msra.mxu0 %v1057
        %1106 = vmatprep.subr.mxu0 %v1062
        %1107 = vmatpush1.msra.mxu0 %v1061
        %1108 = vmatprep.subr.mxu0 %v1066
        %1109 = vmatpush1.msra.mxu0 %v1065
        %1110 = vmatprep.subr.mxu0 %v1070
        %1111 = vmatpush1.msra.mxu0 %v1069
        %1112 = vmatprep.subr.mxu0 %v1074
        %1113 = vmatpush1.msra.mxu0 %v1073
        %1114 = vmatprep.subr.mxu0 %v1078
        %1115 = vmatpush1.msra.mxu0 %v1077
        %1116 = vmatprep.subr.mxu0 %v1082
        %1117 = vmatpush1.msra.mxu0 %v1081
        %1118 = vmatprep.subr.mxu0 0.0
        %1119 = vmatpush1.msra.mxu0 0.0
        %1120 = vmatprep.subr.mxu0 0.0
        %1121 = vmatpush1.msra.mxu0 0.0
        %1122 = vmatprep.subr.mxu0 0.0
        %1123 = vmatpush1.msra.mxu0 0.0
        %1124 = vmatprep.subr.mxu0 0.0
        %1125 = vmatpush1.msra.mxu0 0.0
        %1126 = vmatprep.subr.mxu0 0.0
        %1127 = vmatpush1.msra.mxu0 0.0
        %1128 = vmatprep.subr.mxu0 0.0
        %1129 = vmatpush1.msra.mxu0 0.0
        %1130 = vmatprep.subr.mxu0 0.0
        %1131 = vmatpush1.msra.mxu0 0.0
        %1132 = vmatprep.subr.mxu0 0.0
        %1133 = vmatpush1.msra.mxu0 0.0
        %1134 = vmatprep.subr.mxu0 0.0
        %1135 = vmatpush1.msra.mxu0 0.0
        %1136 = vmatprep.subr.mxu0 0.0
        %1137 = vmatpush1.msra.mxu0 0.0
        %1138 = vmatprep.subr.mxu0 0.0
        %1139 = vmatpush1.msra.mxu0 0.0
        %1140 = vmatprep.subr.mxu0 0.0
        %1141 = vmatpush1.msra.mxu0 0.0
        %1142 = vmatprep.subr.mxu0 0.0
        %1143 = vmatpush1.msra.mxu0 0.0
        %1144 = vmatprep.subr.mxu0 0.0
        %1145 = vmatpush1.msra.mxu0 0.0
        %1146 = vmatprep.subr.mxu0 0.0
        %1147 = vmatpush1.msra.mxu0 0.0
        %1148 = vmatprep.subr.mxu0 0.0
        %1149 = vmatpush1.msra.mxu0 0.0
        %1150 = vmatprep.subr.mxu0 0.0
        %1151 = vmatpush1.msra.mxu0 0.0
        %1152 = vmatprep.subr.mxu0 0.0
        %1153 = vmatpush1.msra.mxu0 0.0
        %1154 = vmatprep.subr.mxu0 0.0
        %1155 = vmatpush1.msra.mxu0 0.0
        %1156 = vmatprep.subr.mxu0 0.0
        %1157 = vmatpush1.msra.mxu0 0.0
        %1158 = vmatprep.mubr.f32.mxu0 0.0
        %1159 = vmatmul.mubr.f32.gmra.mrb[0].mxu0 %v1085
        %v1160 = vpop.f32.mrb[0].mxu0
        %v1161 = vadd.f32 0.0, %v1160
        %v1162 = vpop.f32.mrb[0].mxu0
        %v1163 = vadd.f32 0.0, %v1162
        %1164 = vmatprep.mubr.f32.mxu0 0.0
        %1165 = vmatmul.mubr.f32.gmra.mrb[0].mxu0 %v1087
        %v1166 = vpop.f32.mrb[0].mxu0
        %v1167 = vadd.f32 0.0, %v1166
        %v1168 = vpop.f32.mrb[0].mxu0
        %v1169 = vadd.f32 0.0, %v1168
        %1170 = vmatprep.mubr.f32.mxu0 0.0
        %1171 = vmatmul.mubr.f32.gmra.mrb[0].mxu0 %v1089
        %v1172 = vpop.f32.mrb[0].mxu0
        %v1173 = vadd.f32 0.0, %v1172
        %v1174 = vpop.f32.mrb[0].mxu0
        %v1175 = vadd.f32 0.0, %v1174
        %1176 = vmatprep.mubr.f32.mxu0 0.0
        %1177 = vmatmul.mubr.f32.gmra.mrb[0].mxu0 %v1092
        %v1178 = vpop.f32.mrb[0].mxu0
        %v1179 = vadd.f32 0.0, %v1178
        %v1180 = vpop.f32.mrb[0].mxu0
        %v1181 = vadd.f32 0.0, %v1180
        %1182 = vdwg.mxu0
        %1183 = vmatprep.subr.mxu0 %v1040
        %1184 = vmatpush1.msra.mxu0 %v1039
        %1185 = vmatprep.subr.mxu0 %v1044
        %1186 = vmatpush1.msra.mxu0 %v1043
        %1187 = vmatprep.subr.mxu0 %v1048
        %1188 = vmatpush1.msra.mxu0 %v1047
        %1189 = vmatprep.subr.mxu0 %v1052
        %1190 = vmatpush1.msra.mxu0 %v1051
        %1191 = vmatprep.subr.mxu0 %v1056
        %1192 = vmatpush1.msra.mxu0 %v1055
        %1193 = vmatprep.subr.mxu0 %v1060
        %1194 = vmatpush1.msra.mxu0 %v1059
        %1195 = vmatprep.subr.mxu0 %v1064
        %1196 = vmatpush1.msra.mxu0 %v1063
        %1197 = vmatprep.subr.mxu0 %v1068
        %1198 = vmatpush1.msra.mxu0 %v1067
        %1199 = vmatprep.subr.mxu0 %v1072
        %1200 = vmatpush1.msra.mxu0 %v1071
        %1201 = vmatprep.subr.mxu0 %v1076
        %1202 = vmatpush1.msra.mxu0 %v1075
        %1203 = vmatprep.subr.mxu0 %v1080
        %1204 = vmatpush1.msra.mxu0 %v1079
        %1205 = vmatprep.subr.mxu0 %v1084
        %1206 = vmatpush1.msra.mxu0 %v1083
        %1207 = vmatprep.subr.mxu0 0.0
        %1208 = vmatpush1.msra.mxu0 0.0
        %1209 = vmatprep.subr.mxu0 0.0
        %1210 = vmatpush1.msra.mxu0 0.0
        %1211 = vmatprep.subr.mxu0 0.0
        %1212 = vmatpush1.msra.mxu0 0.0
        %1213 = vmatprep.subr.mxu0 0.0
        %1214 = vmatpush1.msra.mxu0 0.0
        %1215 = vmatprep.subr.mxu0 0.0
        %1216 = vmatpush1.msra.mxu0 0.0
        %1217 = vmatprep.subr.mxu0 0.0
        %1218 = vmatpush1.msra.mxu0 0.0
        %1219 = vmatprep.subr.mxu0 0.0
        %1220 = vmatpush1.msra.mxu0 0.0
        %1221 = vmatprep.subr.mxu0 0.0
        %1222 = vmatpush1.msra.mxu0 0.0
        %1223 = vmatprep.subr.mxu0 0.0
        %1224 = vmatpush1.msra.mxu0 0.0
        %1225 = vmatprep.subr.mxu0 0.0
        %1226 = vmatpush1.msra.mxu0 0.0
        %1227 = vmatprep.subr.mxu0 0.0
        %1228 = vmatpush1.msra.mxu0 0.0
        %1229 = vmatprep.subr.mxu0 0.0
        %1230 = vmatpush1.msra.mxu0 0.0
        %1231 = vmatprep.subr.mxu0 0.0
        %1232 = vmatpush1.msra.mxu0 0.0
        %1233 = vmatprep.subr.mxu0 0.0
        %1234 = vmatpush1.msra.mxu0 0.0
        %1235 = vmatprep.subr.mxu0 0.0
        %1236 = vmatpush1.msra.mxu0 0.0
        %1237 = vmatprep.subr.mxu0 0.0
        %1238 = vmatpush1.msra.mxu0 0.0
        %1239 = vmatprep.subr.mxu0 0.0
        %1240 = vmatpush1.msra.mxu0 0.0
        %1241 = vmatprep.subr.mxu0 0.0
        %1242 = vmatpush1.msra.mxu0 0.0
        %1243 = vmatprep.subr.mxu0 0.0
        %1244 = vmatpush1.msra.mxu0 0.0
        %1245 = vmatprep.subr.mxu0 0.0
        %1246 = vmatpush1.msra.mxu0 0.0
        %1247 = vmatprep.mubr.f32.mxu0 0.0
        %1248 = vmatmul.mubr.f32.gmra.mrb[0].mxu0 %v1085
        %v1249 = vpop.f32.mrb[0].mxu0
        %v1250 = vadd.f32 0.0, %v1249
        %v1251 = vpop.f32.mrb[0].mxu0
        %v1252 = vadd.f32 0.0, %v1251
        %1253 = vmatprep.mubr.f32.mxu0 0.0
        %1254 = vmatmul.mubr.f32.gmra.mrb[0].mxu0 %v1087
        %v1255 = vpop.f32.mrb[0].mxu0
        %v1256 = vadd.f32 0.0, %v1255
        %v1257 = vpop.f32.mrb[0].mxu0
        %v1258 = vadd.f32 0.0, %v1257
        %1259 = vmatprep.mubr.f32.mxu0 0.0
        %1260 = vmatmul.mubr.f32.gmra.mrb[0].mxu0 %v1089
        %v1261 = vpop.f32.mrb[0].mxu0
        %v1262 = vadd.f32 0.0, %v1261
        %v1263 = vpop.f32.mrb[0].mxu0
        %v1264 = vadd.f32 0.0, %v1263
        %1265 = vmatprep.mubr.f32.mxu0 0.0
        %1266 = vmatmul.mubr.f32.gmra.mrb[0].mxu0 %v1092
        %v1267 = vpop.f32.mrb[0].mxu0
        %v1268 = vadd.f32 0.0, %v1267
        %v1269 = vpop.f32.mrb[0].mxu0
        %v1270 = vadd.f32 0.0, %v1269
        %1271 = vdwg.mxu0
        %v1272 = vadd.f32 %v925, %v1161
        %v1273 = vadd.f32 %v927, %v1163
        %v1274 = vadd.f32 %v1014, %v1250
        %v1275 = vadd.f32 %v1016, %v1252
        %v1276 = vadd.f32 %v931, %v1167
        %v1277 = vadd.f32 %v933, %v1169
        %v1278 = vadd.f32 %v1020, %v1256
        %v1279 = vadd.f32 %v1022, %v1258
        %v1280 = vadd.f32 %v937, %v1173
        %v1281 = vadd.f32 %v939, %v1175
        %v1282 = vadd.f32 %v1026, %v1262
        %v1283 = vadd.f32 %v1028, %v1264
        %v1284 = vadd.f32 %v943, %v1179
        %v1285 = vadd.f32 %v945, %v1181
        %v1286 = vadd.f32 %v1032, %v1268
        %v1287 = vadd.f32 %v1034, %v1270
        %v1288 = vld [vmem:[%s2] sm:$0xf]
        %v1290 = vlaneseq
        %v1291 = vshrl.u32 %v1290, 7
        %v1292 = vsub.s32 0, %v1291
        %v1293 = vrot.slane %v1288, %v1292
        %v1294 = vlaneseq
        %v1295 = vshrl.u32 %v1294, 7
        %v1296 = vsub.s32 1, %v1295
        %v1297 = vrot.slane %v1288, %v1296
        %v1298 = vlaneseq
        %v1299 = vshrl.u32 %v1298, 7
        %v1300 = vsub.s32 2, %v1299
        %v1301 = vrot.slane %v1288, %v1300
        %v1302 = vlaneseq
        %v1303 = vshrl.u32 %v1302, 7
        %v1304 = vsub.s32 3, %v1303
        %v1305 = vrot.slane %v1288, %v1304
        %v1310 = vadd.f32 %v1272, %v1293
        %v1311 = vadd.f32 %v1273, %v1297
        %v1312 = vadd.f32 %v1274, %v1301
        %v1313 = vadd.f32 %v1275, %v1305
        %v1314 = vadd.f32 %v1276, %v1293
        %v1315 = vadd.f32 %v1277, %v1297
        %v1316 = vadd.f32 %v1278, %v1301
        %v1317 = vadd.f32 %v1279, %v1305
        %v1318 = vadd.f32 %v1280, %v1293
        %v1319 = vadd.f32 %v1281, %v1297
        %v1320 = vadd.f32 %v1282, %v1301
        %v1321 = vadd.f32 %v1283, %v1305
        %v1322 = vadd.f32 %v1284, %v1293
        %v1323 = vadd.f32 %v1285, %v1297
        %v1324 = vadd.f32 %v1286, %v1301
        %v1325 = vadd.f32 %v1287, %v1305
        %v1326 = vmax.f32 %v1310, 0.0
        %v1327 = vmax.f32 %v1311, 0.0
        %v1328 = vmax.f32 %v1312, 0.0
        %v1329 = vmax.f32 %v1313, 0.0
        %v1330 = vmax.f32 %v1314, 0.0
        %v1331 = vmax.f32 %v1315, 0.0
        %v1332 = vmax.f32 %v1316, 0.0
        %v1333 = vmax.f32 %v1317, 0.0
        %v1334 = vmax.f32 %v1318, 0.0
        %v1335 = vmax.f32 %v1319, 0.0
        %v1336 = vmax.f32 %v1320, 0.0
        %v1337 = vmax.f32 %v1321, 0.0
        %v1338 = vmax.f32 %v1322, 0.0
        %v1339 = vmax.f32 %v1323, 0.0
        %v1340 = vmax.f32 %v1324, 0.0
        %v1341 = vmax.f32 %v1325, 0.0
        %1342 = vst [vmem:[%s523] sm:$0xff] %v1326
        %1343 = vst [vmem:[%s523 + $0x8] sm:$0xff] %v1327
        %1344 = vst [vmem:[%s523 + $0x10] sm:$0xff] %v1328
        %1345 = vst [vmem:[%s523 + $0x18] sm:$0xff] %v1329
        %1346 = vst [vmem:[%s523 + $0x20] sm:$0xff] %v1330
        %1347 = vst [vmem:[%s523 + $0x28] sm:$0xff] %v1331
        %1348 = vst [vmem:[%s523 + $0x30] sm:$0xff] %v1332
        %1349 = vst [vmem:[%s523 + $0x38] sm:$0xff] %v1333
        %1350 = vst [vmem:[%s523 + $0x40] sm:$0xff] %v1334
        %1351 = vst [vmem:[%s523 + $0x48] sm:$0xff] %v1335
        %1352 = vst [vmem:[%s523 + $0x50] sm:$0xff] %v1336
        %1353 = vst [vmem:[%s523 + $0x58] sm:$0xff] %v1337
        %1354 = vst [vmem:[%s523 + $0x60] sm:$0xff] %v1338
        %1355 = vst [vmem:[%s523 + $0x68] sm:$0xff] %v1339
        %1356 = vst [vmem:[%s523 + $0x70] sm:$0xff] %v1340
        %1357 = vst [vmem:[%s523 + $0x78] sm:$0xff] %v1341
        %v1358 = vmax.f32 %v1326, %v1328
        %v1359 = vmax.f32 %v1327, %v1329
        %v1360 = vmax.f32 %v1330, %v1332
        %v1361 = vmax.f32 %v1331, %v1333
        %v1362 = vmax.f32 %v1334, %v1336
        %v1363 = vmax.f32 %v1335, %v1337
        %v1364 = vmax.f32 %v1338, %v1340
        %v1365 = vmax.f32 %v1339, %v1341
        %v1374 = vcombine.low %v1358, %v1359
        %v1375 = vcombine.high %v1358, %v1359
        %v1377 = vunpack.c.l.s4 1983009808
        %v1378 = vunpack.c.0.s8 %v1377
        %v1379 = vlaneseq
        %v1380 = vshrl.u32 %v1379, 7
        %v1381 = vsub.s32 %v1378, %v1380
        %v1382 = vrot.slane %v1374, %v1381
        %v1384 = vunpack.c.l.s4 1983009808
        %v1385 = vunpack.c.0.s8 %v1384
        %v1386 = vlaneseq
        %v1387 = vshrl.u32 %v1386, 7
        %v1388 = vsub.s32 %v1385, %v1387
        %v1389 = vrot.slane %v1375, %v1388
        %v1390 = vcombine.high %v1382, %v1382
        %v1391 = vcombine.high %v1389, %v1389
        %v1392 = vcombine.low %v1360, %v1361
        %v1393 = vcombine.high %v1360, %v1361
        %v1395 = vunpack.c.l.s4 1983009808
        %v1396 = vunpack.c.0.s8 %v1395
        %v1397 = vlaneseq
        %v1398 = vshrl.u32 %v1397, 7
        %v1399 = vsub.s32 %v1396, %v1398
        %v1400 = vrot.slane %v1392, %v1399
        %v1402 = vunpack.c.l.s4 1983009808
        %v1403 = vunpack.c.0.s8 %v1402
        %v1404 = vlaneseq
        %v1405 = vshrl.u32 %v1404, 7
        %v1406 = vsub.s32 %v1403, %v1405
        %v1407 = vrot.slane %v1393, %v1406
        %v1408 = vcombine.high %v1400, %v1400
        %v1409 = vcombine.high %v1407, %v1407
        %v1410 = vcombine.low %v1362, %v1363
        %v1411 = vcombine.high %v1362, %v1363
        %v1413 = vunpack.c.l.s4 1983009808
        %v1414 = vunpack.c.0.s8 %v1413
        %v1415 = vlaneseq
        %v1416 = vshrl.u32 %v1415, 7
        %v1417 = vsub.s32 %v1414, %v1416
        %v1418 = vrot.slane %v1410, %v1417
        %v1420 = vunpack.c.l.s4 1983009808
        %v1421 = vunpack.c.0.s8 %v1420
        %v1422 = vlaneseq
        %v1423 = vshrl.u32 %v1422, 7
        %v1424 = vsub.s32 %v1421, %v1423
        %v1425 = vrot.slane %v1411, %v1424
        %v1426 = vcombine.high %v1418, %v1418
        %v1427 = vcombine.high %v1425, %v1425
        %v1428 = vcombine.low %v1364, %v1365
        %v1429 = vcombine.high %v1364, %v1365
        %v1431 = vunpack.c.l.s4 1983009808
        %v1432 = vunpack.c.0.s8 %v1431
        %v1433 = vlaneseq
        %v1434 = vshrl.u32 %v1433, 7
        %v1435 = vsub.s32 %v1432, %v1434
        %v1436 = vrot.slane %v1428, %v1435
        %v1438 = vunpack.c.l.s4 1983009808
        %v1439 = vunpack.c.0.s8 %v1438
        %v1440 = vlaneseq
        %v1441 = vshrl.u32 %v1440, 7
        %v1442 = vsub.s32 %v1439, %v1441
        %v1443 = vrot.slane %v1429, %v1442
        %v1444 = vcombine.high %v1436, %v1436
        %v1445 = vcombine.high %v1443, %v1443
        %v1447 = vunpack.c.l.s4 1983009808
        %v1448 = vunpack.c.0.s8 %v1447
        %v1449 = vlaneseq
        %v1450 = vshrl.u32 %v1449, 7
        %v1451 = vsub.s32 %v1448, %v1450
        %v1452 = vrot.slane %v1382, %v1451
        %v1453 = vcombine.high %v1452, %v1452
        %v1455 = vunpack.c.l.s4 1983009808
        %v1456 = vunpack.c.0.s8 %v1455
        %v1457 = vlaneseq
        %v1458 = vshrl.u32 %v1457, 7
        %v1459 = vsub.s32 %v1456, %v1458
        %v1460 = vrot.slane %v1390, %v1459
        %v1461 = vcombine.high %v1460, %v1460
        %v1463 = vunpack.c.l.s4 1983009808
        %v1464 = vunpack.c.0.s8 %v1463
        %v1465 = vlaneseq
        %v1466 = vshrl.u32 %v1465, 7
        %v1467 = vsub.s32 %v1464, %v1466
        %v1468 = vrot.slane %v1389, %v1467
        %v1469 = vcombine.high %v1468, %v1468
        %v1471 = vunpack.c.l.s4 1983009808
        %v1472 = vunpack.c.0.s8 %v1471
        %v1473 = vlaneseq
        %v1474 = vshrl.u32 %v1473, 7
        %v1475 = vsub.s32 %v1472, %v1474
        %v1476 = vrot.slane %v1391, %v1475
        %v1477 = vcombine.high %v1476, %v1476
        %v1479 = vunpack.c.l.s4 1983009808
        %v1480 = vunpack.c.0.s8 %v1479
        %v1481 = vlaneseq
        %v1482 = vshrl.u32 %v1481, 7
        %v1483 = vsub.s32 %v1480, %v1482
        %v1484 = vrot.slane %v1400, %v1483
        %v1485 = vcombine.high %v1484, %v1484
        %v1487 = vunpack.c.l.s4 1983009808
        %v1488 = vunpack.c.0.s8 %v1487
        %v1489 = vlaneseq
        %v1490 = vshrl.u32 %v1489, 7
        %v1491 = vsub.s32 %v1488, %v1490
        %v1492 = vrot.slane %v1408, %v1491
        %v1493 = vcombine.high %v1492, %v1492
        %v1495 = vunpack.c.l.s4 1983009808
        %v1496 = vunpack.c.0.s8 %v1495
        %v1497 = vlaneseq
        %v1498 = vshrl.u32 %v1497, 7
        %v1499 = vsub.s32 %v1496, %v1498
        %v1500 = vrot.slane %v1407, %v1499
        %v1501 = vcombine.high %v1500, %v1500
        %v1503 = vunpack.c.l.s4 1983009808
        %v1504 = vunpack.c.0.s8 %v1503
        %v1505 = vlaneseq
        %v1506 = vshrl.u32 %v1505, 7
        %v1507 = vsub.s32 %v1504, %v1506
        %v1508 = vrot.slane %v1409, %v1507
        %v1509 = vcombine.high %v1508, %v1508
        %v1511 = vunpack.c.l.s4 1983009808
        %v1512 = vunpack.c.0.s8 %v1511
        %v1513 = vlaneseq
        %v1514 = vshrl.u32 %v1513, 7
        %v1515 = vsub.s32 %v1512, %v1514
        %v1516 = vrot.slane %v1418, %v1515
        %v1517 = vcombine.high %v1516, %v1516
        %v1519 = vunpack.c.l.s4 1983009808
        %v1520 = vunpack.c.0.s8 %v1519
        %v1521 = vlaneseq
        %v1522 = vshrl.u32 %v1521, 7
        %v1523 = vsub.s32 %v1520, %v1522
        %v1524 = vrot.slane %v1426, %v1523
        %v1525 = vcombine.high %v1524, %v1524
        %v1527 = vunpack.c.l.s4 1983009808
        %v1528 = vunpack.c.0.s8 %v1527
        %v1529 = vlaneseq
        %v1530 = vshrl.u32 %v1529, 7
        %v1531 = vsub.s32 %v1528, %v1530
        %v1532 = vrot.slane %v1425, %v1531
        %v1533 = vcombine.high %v1532, %v1532
        %v1535 = vunpack.c.l.s4 1983009808
        %v1536 = vunpack.c.0.s8 %v1535
        %v1537 = vlaneseq
        %v1538 = vshrl.u32 %v1537, 7
        %v1539 = vsub.s32 %v1536, %v1538
        %v1540 = vrot.slane %v1427, %v1539
        %v1541 = vcombine.high %v1540, %v1540
        %v1543 = vunpack.c.l.s4 1983009808
        %v1544 = vunpack.c.0.s8 %v1543
        %v1545 = vlaneseq
        %v1546 = vshrl.u32 %v1545, 7
        %v1547 = vsub.s32 %v1544, %v1546
        %v1548 = vrot.slane %v1436, %v1547
        %v1549 = vcombine.high %v1548, %v1548
        %v1551 = vunpack.c.l.s4 1983009808
        %v1552 = vunpack.c.0.s8 %v1551
        %v1553 = vlaneseq
        %v1554 = vshrl.u32 %v1553, 7
        %v1555 = vsub.s32 %v1552, %v1554
        %v1556 = vrot.slane %v1444, %v1555
        %v1557 = vcombine.high %v1556, %v1556
        %v1559 = vunpack.c.l.s4 1983009808
        %v1560 = vunpack.c.0.s8 %v1559
        %v1561 = vlaneseq
        %v1562 = vshrl.u32 %v1561, 7
        %v1563 = vsub.s32 %v1560, %v1562
        %v1564 = vrot.slane %v1443, %v1563
        %v1565 = vcombine.high %v1564, %v1564
        %v1567 = vunpack.c.l.s4 1983009808
        %v1568 = vunpack.c.0.s8 %v1567
        %v1569 = vlaneseq
        %v1570 = vshrl.u32 %v1569, 7
        %v1571 = vsub.s32 %v1568, %v1570
        %v1572 = vrot.slane %v1445, %v1571
        %v1573 = vcombine.high %v1572, %v1572
        %vm1606 = vcmask 1041408
        %v1607 = vsel %vm1606, %v1452, -inf
        %v1608 = vrot.slane %v1607, 4
        %v1609 = vmax.f32 %v1607, %v1608
        %v1610 = vrot.slane %v1609, 2
        %v1611 = vmax.f32 %v1609, %v1610
        %v1612 = vrot.slane %v1611, 1
        %v1613 = vmax.f32 %v1611, %v1612
        %v1614 = vsel %vm1606, %v1453, -inf
        %v1615 = vrot.slane %v1614, 4
        %v1616 = vmax.f32 %v1614, %v1615
        %v1617 = vrot.slane %v1616, 2
        %v1618 = vmax.f32 %v1616, %v1617
        %v1619 = vrot.slane %v1618, 1
        %v1620 = vmax.f32 %v1618, %v1619
        %v1621 = vsel %vm1606, %v1460, -inf
        %v1622 = vrot.slane %v1621, 4
        %v1623 = vmax.f32 %v1621, %v1622
        %v1624 = vrot.slane %v1623, 2
        %v1625 = vmax.f32 %v1623, %v1624
        %v1626 = vrot.slane %v1625, 1
        %v1627 = vmax.f32 %v1625, %v1626
        %v1628 = vsel %vm1606, %v1461, -inf
        %v1629 = vrot.slane %v1628, 4
        %v1630 = vmax.f32 %v1628, %v1629
        %v1631 = vrot.slane %v1630, 2
        %v1632 = vmax.f32 %v1630, %v1631
        %v1633 = vrot.slane %v1632, 1
        %v1634 = vmax.f32 %v1632, %v1633
        %v1635 = vsel %vm1606, %v1468, -inf
        %v1636 = vrot.slane %v1635, 4
        %v1637 = vmax.f32 %v1635, %v1636
        %v1638 = vrot.slane %v1637, 2
        %v1639 = vmax.f32 %v1637, %v1638
        %v1640 = vrot.slane %v1639, 1
        %v1641 = vmax.f32 %v1639, %v1640
        %v1642 = vsel %vm1606, %v1469, -inf
        %v1643 = vrot.slane %v1642, 4
        %v1644 = vmax.f32 %v1642, %v1643
        %v1645 = vrot.slane %v1644, 2
        %v1646 = vmax.f32 %v1644, %v1645
        %v1647 = vrot.slane %v1646, 1
        %v1648 = vmax.f32 %v1646, %v1647
        %v1649 = vsel %vm1606, %v1476, -inf
        %v1650 = vrot.slane %v1649, 4
        %v1651 = vmax.f32 %v1649, %v1650
        %v1652 = vrot.slane %v1651, 2
        %v1653 = vmax.f32 %v1651, %v1652
        %v1654 = vrot.slane %v1653, 1
        %v1655 = vmax.f32 %v1653, %v1654
        %v1656 = vsel %vm1606, %v1477, -inf
        %v1657 = vrot.slane %v1656, 4
        %v1658 = vmax.f32 %v1656, %v1657
        %v1659 = vrot.slane %v1658, 2
        %v1660 = vmax.f32 %v1658, %v1659
        %v1661 = vrot.slane %v1660, 1
        %v1662 = vmax.f32 %v1660, %v1661
        %v1663 = vsel %vm1606, %v1484, -inf
        %v1664 = vrot.slane %v1663, 4
        %v1665 = vmax.f32 %v1663, %v1664
        %v1666 = vrot.slane %v1665, 2
        %v1667 = vmax.f32 %v1665, %v1666
        %v1668 = vrot.slane %v1667, 1
        %v1669 = vmax.f32 %v1667, %v1668
        %v1670 = vsel %vm1606, %v1485, -inf
        %v1671 = vrot.slane %v1670, 4
        %v1672 = vmax.f32 %v1670, %v1671
        %v1673 = vrot.slane %v1672, 2
        %v1674 = vmax.f32 %v1672, %v1673
        %v1675 = vrot.slane %v1674, 1
        %v1676 = vmax.f32 %v1674, %v1675
        %v1677 = vsel %vm1606, %v1492, -inf
        %v1678 = vrot.slane %v1677, 4
        %v1679 = vmax.f32 %v1677, %v1678
        %v1680 = vrot.slane %v1679, 2
        %v1681 = vmax.f32 %v1679, %v1680
        %v1682 = vrot.slane %v1681, 1
        %v1683 = vmax.f32 %v1681, %v1682
        %v1684 = vsel %vm1606, %v1493, -inf
        %v1685 = vrot.slane %v1684, 4
        %v1686 = vmax.f32 %v1684, %v1685
        %v1687 = vrot.slane %v1686, 2
        %v1688 = vmax.f32 %v1686, %v1687
        %v1689 = vrot.slane %v1688, 1
        %v1690 = vmax.f32 %v1688, %v1689
        %v1691 = vsel %vm1606, %v1500, -inf
        %v1692 = vrot.slane %v1691, 4
        %v1693 = vmax.f32 %v1691, %v1692
        %v1694 = vrot.slane %v1693, 2
        %v1695 = vmax.f32 %v1693, %v1694
        %v1696 = vrot.slane %v1695, 1
        %v1697 = vmax.f32 %v1695, %v1696
        %v1698 = vsel %vm1606, %v1501, -inf
        %v1699 = vrot.slane %v1698, 4
        %v1700 = vmax.f32 %v1698, %v1699
        %v1701 = vrot.slane %v1700, 2
        %v1702 = vmax.f32 %v1700, %v1701
        %v1703 = vrot.slane %v1702, 1
        %v1704 = vmax.f32 %v1702, %v1703
        %v1705 = vsel %vm1606, %v1508, -inf
        %v1706 = vrot.slane %v1705, 4
        %v1707 = vmax.f32 %v1705, %v1706
        %v1708 = vrot.slane %v1707, 2
        %v1709 = vmax.f32 %v1707, %v1708
        %v1710 = vrot.slane %v1709, 1
        %v1711 = vmax.f32 %v1709, %v1710
        %v1712 = vsel %vm1606, %v1509, -inf
        %v1713 = vrot.slane %v1712, 4
        %v1714 = vmax.f32 %v1712, %v1713
        %v1715 = vrot.slane %v1714, 2
        %v1716 = vmax.f32 %v1714, %v1715
        %v1717 = vrot.slane %v1716, 1
        %v1718 = vmax.f32 %v1716, %v1717
        %v1719 = vsel %vm1606, %v1516, -inf
        %v1720 = vrot.slane %v1719, 4
        %v1721 = vmax.f32 %v1719, %v1720
        %v1722 = vrot.slane %v1721, 2
        %v1723 = vmax.f32 %v1721, %v1722
        %v1724 = vrot.slane %v1723, 1
        %v1725 = vmax.f32 %v1723, %v1724
        %v1726 = vsel %vm1606, %v1517, -inf
        %v1727 = vrot.slane %v1726, 4
        %v1728 = vmax.f32 %v1726, %v1727
        %v1729 = vrot.slane %v1728, 2
        %v1730 = vmax.f32 %v1728, %v1729
        %v1731 = vrot.slane %v1730, 1
        %v1732 = vmax.f32 %v1730, %v1731
        %v1733 = vsel %vm1606, %v1524, -inf
        %v1734 = vrot.slane %v1733, 4
        %v1735 = vmax.f32 %v1733, %v1734
        %v1736 = vrot.slane %v1735, 2
        %v1737 = vmax.f32 %v1735, %v1736
        %v1738 = vrot.slane %v1737, 1
        %v1739 = vmax.f32 %v1737, %v1738
        %v1740 = vsel %vm1606, %v1525, -inf
        %v1741 = vrot.slane %v1740, 4
        %v1742 = vmax.f32 %v1740, %v1741
        %v1743 = vrot.slane %v1742, 2
        %v1744 = vmax.f32 %v1742, %v1743
        %v1745 = vrot.slane %v1744, 1
        %v1746 = vmax.f32 %v1744, %v1745
        %v1747 = vsel %vm1606, %v1532, -inf
        %v1748 = vrot.slane %v1747, 4
        %v1749 = vmax.f32 %v1747, %v1748
        %v1750 = vrot.slane %v1749, 2
        %v1751 = vmax.f32 %v1749, %v1750
        %v1752 = vrot.slane %v1751, 1
        %v1753 = vmax.f32 %v1751, %v1752
        %v1754 = vsel %vm1606, %v1533, -inf
        %v1755 = vrot.slane %v1754, 4
        %v1756 = vmax.f32 %v1754, %v1755
        %v1757 = vrot.slane %v1756, 2
        %v1758 = vmax.f32 %v1756, %v1757
        %v1759 = vrot.slane %v1758, 1
        %v1760 = vmax.f32 %v1758, %v1759
        %v1761 = vsel %vm1606, %v1540, -inf
        %v1762 = vrot.slane %v1761, 4
        %v1763 = vmax.f32 %v1761, %v1762
        %v1764 = vrot.slane %v1763, 2
        %v1765 = vmax.f32 %v1763, %v1764
        %v1766 = vrot.slane %v1765, 1
        %v1767 = vmax.f32 %v1765, %v1766
        %v1768 = vsel %vm1606, %v1541, -inf
        %v1769 = vrot.slane %v1768, 4
        %v1770 = vmax.f32 %v1768, %v1769
        %v1771 = vrot.slane %v1770, 2
        %v1772 = vmax.f32 %v1770, %v1771
        %v1773 = vrot.slane %v1772, 1
        %v1774 = vmax.f32 %v1772, %v1773
        %v1775 = vsel %vm1606, %v1548, -inf
        %v1776 = vrot.slane %v1775, 4
        %v1777 = vmax.f32 %v1775, %v1776
        %v1778 = vrot.slane %v1777, 2
        %v1779 = vmax.f32 %v1777, %v1778
        %v1780 = vrot.slane %v1779, 1
        %v1781 = vmax.f32 %v1779, %v1780
        %v1782 = vsel %vm1606, %v1549, -inf
        %v1783 = vrot.slane %v1782, 4
        %v1784 = vmax.f32 %v1782, %v1783
        %v1785 = vrot.slane %v1784, 2
        %v1786 = vmax.f32 %v1784, %v1785
        %v1787 = vrot.slane %v1786, 1
        %v1788 = vmax.f32 %v1786, %v1787
        %v1789 = vsel %vm1606, %v1556, -inf
        %v1790 = vrot.slane %v1789, 4
        %v1791 = vmax.f32 %v1789, %v1790
        %v1792 = vrot.slane %v1791, 2
        %v1793 = vmax.f32 %v1791, %v1792
        %v1794 = vrot.slane %v1793, 1
        %v1795 = vmax.f32 %v1793, %v1794
        %v1796 = vsel %vm1606, %v1557, -inf
        %v1797 = vrot.slane %v1796, 4
        %v1798 = vmax.f32 %v1796, %v1797
        %v1799 = vrot.slane %v1798, 2
        %v1800 = vmax.f32 %v1798, %v1799
        %v1801 = vrot.slane %v1800, 1
        %v1802 = vmax.f32 %v1800, %v1801
        %v1803 = vsel %vm1606, %v1564, -inf
        %v1804 = vrot.slane %v1803, 4
        %v1805 = vmax.f32 %v1803, %v1804
        %v1806 = vrot.slane %v1805, 2
        %v1807 = vmax.f32 %v1805, %v1806
        %v1808 = vrot.slane %v1807, 1
        %v1809 = vmax.f32 %v1807, %v1808
        %v1810 = vsel %vm1606, %v1565, -inf
        %v1811 = vrot.slane %v1810, 4
        %v1812 = vmax.f32 %v1810, %v1811
        %v1813 = vrot.slane %v1812, 2
        %v1814 = vmax.f32 %v1812, %v1813
        %v1815 = vrot.slane %v1814, 1
        %v1816 = vmax.f32 %v1814, %v1815
        %v1817 = vsel %vm1606, %v1572, -inf
        %v1818 = vrot.slane %v1817, 4
        %v1819 = vmax.f32 %v1817, %v1818
        %v1820 = vrot.slane %v1819, 2
        %v1821 = vmax.f32 %v1819, %v1820
        %v1822 = vrot.slane %v1821, 1
        %v1823 = vmax.f32 %v1821, %v1822
        %v1824 = vsel %vm1606, %v1573, -inf
        %v1825 = vrot.slane %v1824, 4
        %v1826 = vmax.f32 %v1824, %v1825
        %v1827 = vrot.slane %v1826, 2
        %v1828 = vmax.f32 %v1826, %v1827
        %v1829 = vrot.slane %v1828, 1
        %v1830 = vmax.f32 %v1828, %v1829
        %vm1861 = vcmask 1042434
        %v1862 = vsel %vm1861, %v1627, %v1613
        %vm1863 = vcmask 1043459
        %v1864 = vsel %vm1863, %v1641, %v1862
        %vm1865 = vcmask 1044484
        %v1866 = vsel %vm1865, %v1655, %v1864
        %vm1867 = vcmask 1045509
        %v1868 = vsel %vm1867, %v1669, %v1866
        %vm1869 = vcmask 1046534
        %v1870 = vsel %vm1869, %v1683, %v1868
        %vm1871 = vcmask 1047559
        %v1872 = vsel %vm1871, %v1697, %v1870
        %v1873 = vsel %vm1861, %v1634, %v1620
        %v1874 = vsel %vm1863, %v1648, %v1873
        %v1875 = vsel %vm1865, %v1662, %v1874
        %v1876 = vsel %vm1867, %v1676, %v1875
        %v1877 = vsel %vm1869, %v1690, %v1876
        %v1878 = vsel %vm1871, %v1704, %v1877
        %vm1879 = vcmask 1041409
        %v1880 = vsel %vm1879, %v1725, %v1711
        %v1881 = vsel %vm1861, %v1739, %v1880
        %v1882 = vsel %vm1863, %v1753, %v1881
        %v1883 = vsel %vm1865, %v1767, %v1882
        %v1884 = vsel %vm1867, %v1781, %v1883
        %v1885 = vsel %vm1869, %v1795, %v1884
        %v1886 = vsel %vm1871, %v1809, %v1885
        %v1887 = vsel %vm1879, %v1732, %v1718
        %v1888 = vsel %vm1861, %v1746, %v1887
        %v1889 = vsel %vm1863, %v1760, %v1888
        %v1890 = vsel %vm1865, %v1774, %v1889
        %v1891 = vsel %vm1867, %v1788, %v1890
        %v1892 = vsel %vm1869, %v1802, %v1891
        %v1893 = vsel %vm1871, %v1816, %v1892
        %v1898 = vsel %vm545, 0.0, %v1872
        %v1899 = vsel %vm545, 0.0, %v1878
        %v1902 = vsel %vm1879, %v1641, %v1627
        %v1903 = vsel %vm1861, %v1655, %v1902
        %v1904 = vsel %vm1863, %v1669, %v1903
        %v1905 = vsel %vm1865, %v1683, %v1904
        %v1906 = vsel %vm1867, %v1697, %v1905
        %v1907 = vsel %vm1869, %v1711, %v1906
        %v1908 = vsel %vm1871, %v1725, %v1907
        %v1909 = vsel %vm1879, %v1648, %v1634
        %v1910 = vsel %vm1861, %v1662, %v1909
        %v1911 = vsel %vm1863, %v1676, %v1910
        %v1912 = vsel %vm1865, %v1690, %v1911
        %v1913 = vsel %vm1867, %v1704, %v1912
        %v1914 = vsel %vm1869, %v1718, %v1913
        %v1915 = vsel %vm1871, %v1732, %v1914
        %v1916 = vsel %vm1879, %v1753, %v1739
        %v1917 = vsel %vm1861, %v1767, %v1916
        %v1918 = vsel %vm1863, %v1781, %v1917
        %v1919 = vsel %vm1865, %v1795, %v1918
        %v1920 = vsel %vm1867, %v1809, %v1919
        %v1921 = vsel %vm1869, %v1823, %v1920
        %v1922 = vsel %vm1879, %v1760, %v1746
        %v1923 = vsel %vm1861, %v1774, %v1922
        %v1924 = vsel %vm1863, %v1788, %v1923
        %v1925 = vsel %vm1865, %v1802, %v1924
        %v1926 = vsel %vm1867, %v1816, %v1925
        %v1927 = vsel %vm1869, %v1830, %v1926
        %v1932 = vsel %vm555, %v1921, 0.0
        %v1933 = vsel %vm555, %v1927, 0.0
        %v1934 = vld [vmem:[%s3] sm:$0xff]
        %v1935 = vld [vmem:[%s3 + $0x8] sm:$0xff]
        %v1936 = vld [vmem:[%s3 + $0x10] sm:$0xff]
        %v1937 = vld [vmem:[%s3 + $0x18] sm:$0xff]
        %v1938 = vld [vmem:[%s3 + $0x20] sm:$0xff]
        %v1939 = vld [vmem:[%s3 + $0x28] sm:$0xff]
        %v1940 = vld [vmem:[%s3 + $0x30] sm:$0xff]
        %v1941 = vld [vmem:[%s3 + $0x38] sm:$0xff]
        %v1942 = vld [vmem:[%s3 + $0x40] sm:$0xff]
        %v1943 = vld [vmem:[%s3 + $0x48] sm:$0xff]
        %v1944 = vld [vmem:[%s3 + $0x50] sm:$0xff]
        %v1945 = vld [vmem:[%s3 + $0x58] sm:$0xff]
        %v1946 = vld [vmem:[%s3 + $0x60] sm:$0xff]
        %v1947 = vld [vmem:[%s3 + $0x68] sm:$0xff]
        %v1948 = vld [vmem:[%s3 + $0x70] sm:$0xff]
        %v1949 = vld [vmem:[%s3 + $0x78] sm:$0xff]
        %v1950 = vld [vmem:[%s3 + $0x80] sm:$0xff]
        %v1951 = vld [vmem:[%s3 + $0x88] sm:$0xff]
        %v1952 = vld [vmem:[%s3 + $0x90] sm:$0xff]
        %v1953 = vld [vmem:[%s3 + $0x98] sm:$0xff]
        %v1954 = vld [vmem:[%s3 + $0xa0] sm:$0xff]
        %v1955 = vld [vmem:[%s3 + $0xa8] sm:$0xff]
        %v1956 = vld [vmem:[%s3 + $0xb0] sm:$0xff]
        %v1957 = vld [vmem:[%s3 + $0xb8] sm:$0xff]
        %v1958 = vld [vmem:[%s3 + $0xc0] sm:$0xff]
        %v1959 = vld [vmem:[%s3 + $0xc8] sm:$0xff]
        %v1960 = vld [vmem:[%s3 + $0xd0] sm:$0xff]
        %v1961 = vld [vmem:[%s3 + $0xd8] sm:$0xff]
        %v1962 = vld [vmem:[%s3 + $0xe0] sm:$0xff]
        %v1963 = vld [vmem:[%s3 + $0xe8] sm:$0xff]
        %v1964 = vld [vmem:[%s3 + $0xf0] sm:$0xff]
        %v1965 = vld [vmem:[%s3 + $0xf8] sm:$0xff]
        %v1966 = vld [vmem:[%s3 + $0x100] sm:$0xff]
        %v1967 = vld [vmem:[%s3 + $0x108] sm:$0xff]
        %v1968 = vld [vmem:[%s3 + $0x110] sm:$0xff]
        %v1969 = vld [vmem:[%s3 + $0x118] sm:$0xff]
        %v1970 = vld [vmem:[%s3 + $0x120] sm:$0xff]
        %v1971 = vld [vmem:[%s3 + $0x128] sm:$0xff]
        %v1972 = vld [vmem:[%s3 + $0x130] sm:$0xff]
        %v1973 = vld [vmem:[%s3 + $0x138] sm:$0xff]
        %v1974 = vld [vmem:[%s3 + $0x140] sm:$0xff]
        %v1975 = vld [vmem:[%s3 + $0x148] sm:$0xff]
        %v1976 = vld [vmem:[%s3 + $0x150] sm:$0xff]
        %v1977 = vld [vmem:[%s3 + $0x158] sm:$0xff]
        %v1978 = vld [vmem:[%s3 + $0x160] sm:$0xff]
        %v1979 = vld [vmem:[%s3 + $0x168] sm:$0xff]
        %v1980 = vld [vmem:[%s3 + $0x170] sm:$0xff]
        %v1981 = vld [vmem:[%s3 + $0x178] sm:$0xff]
        %v1982 = vld [vmem:[%s3 + $0x180] sm:$0xff]
        %v1983 = vld [vmem:[%s3 + $0x188] sm:$0xff]
        %v1984 = vld [vmem:[%s3 + $0x190] sm:$0xff]
        %v1985 = vld [vmem:[%s3 + $0x198] sm:$0xff]
        %v1986 = vld [vmem:[%s3 + $0x1a0] sm:$0xff]
        %v1987 = vld [vmem:[%s3 + $0x1a8] sm:$0xff]
        %v1988 = vld [vmem:[%s3 + $0x1b0] sm:$0xff]
        %v1989 = vld [vmem:[%s3 + $0x1b8] sm:$0xff]
        %v1990 = vld [vmem:[%s3 + $0x1c0] sm:$0xff]
        %v1991 = vld [vmem:[%s3 + $0x1c8] sm:$0xff]
        %v1992 = vld [vmem:[%s3 + $0x1d0] sm:$0xff]
        %v1993 = vld [vmem:[%s3 + $0x1d8] sm:$0xff]
        %v1994 = vld [vmem:[%s3 + $0x1e0] sm:$0xff]
        %v1995 = vld [vmem:[%s3 + $0x1e8] sm:$0xff]
        %v1996 = vld [vmem:[%s3 + $0x1f0] sm:$0xff]
        %v1997 = vld [vmem:[%s3 + $0x1f8] sm:$0xff]
        %v1998 = vld [vmem:[%s3 + $0x200] sm:$0xff]
        %v1999 = vld [vmem:[%s3 + $0x208] sm:$0xff]
        %v2000 = vld [vmem:[%s3 + $0x210] sm:$0xff]
        %v2001 = vld [vmem:[%s3 + $0x218] sm:$0xff]
        %v2002 = vld [vmem:[%s3 + $0x220] sm:$0xff]
        %v2003 = vld [vmem:[%s3 + $0x228] sm:$0xff]
        %v2004 = vld [vmem:[%s3 + $0x230] sm:$0xff]
        %v2005 = vld [vmem:[%s3 + $0x238] sm:$0xff]
        %v2006 = vld [vmem:[%s3 + $0x240] sm:$0xff]
        %v2007 = vld [vmem:[%s3 + $0x248] sm:$0xff]
        %v2008 = vld [vmem:[%s3 + $0x250] sm:$0xff]
        %v2009 = vld [vmem:[%s3 + $0x258] sm:$0xff]
        %v2010 = vld [vmem:[%s3 + $0x260] sm:$0xff]
        %v2011 = vld [vmem:[%s3 + $0x268] sm:$0xff]
        %v2012 = vld [vmem:[%s3 + $0x270] sm:$0xff]
        %v2013 = vld [vmem:[%s3 + $0x278] sm:$0xff]
        %v2014 = vld [vmem:[%s3 + $0x280] sm:$0xff]
        %v2015 = vld [vmem:[%s3 + $0x288] sm:$0xff]
        %v2016 = vld [vmem:[%s3 + $0x290] sm:$0xff]
        %v2017 = vld [vmem:[%s3 + $0x298] sm:$0xff]
        %v2018 = vld [vmem:[%s3 + $0x2a0] sm:$0xff]
        %v2019 = vld [vmem:[%s3 + $0x2a8] sm:$0xff]
        %v2020 = vld [vmem:[%s3 + $0x2b0] sm:$0xff]
        %v2021 = vld [vmem:[%s3 + $0x2b8] sm:$0xff]
        %v2022 = vld [vmem:[%s3 + $0x2c0] sm:$0xff]
        %v2023 = vld [vmem:[%s3 + $0x2c8] sm:$0xff]
        %v2024 = vld [vmem:[%s3 + $0x2d0] sm:$0xff]
        %v2025 = vld [vmem:[%s3 + $0x2d8] sm:$0xff]
        %v2026 = vld [vmem:[%s3 + $0x2e0] sm:$0xff]
        %v2027 = vld [vmem:[%s3 + $0x2e8] sm:$0xff]
        %v2028 = vld [vmem:[%s3 + $0x2f0] sm:$0xff]
        %v2029 = vld [vmem:[%s3 + $0x2f8] sm:$0xff]
        %v2030 = vld [vmem:[%s3 + $0x300] sm:$0xff]
        %v2031 = vld [vmem:[%s3 + $0x308] sm:$0xff]
        %v2032 = vld [vmem:[%s3 + $0x310] sm:$0xff]
        %v2033 = vld [vmem:[%s3 + $0x318] sm:$0xff]
        %v2034 = vld [vmem:[%s3 + $0x320] sm:$0xff]
        %v2035 = vld [vmem:[%s3 + $0x328] sm:$0xff]
        %v2036 = vld [vmem:[%s3 + $0x330] sm:$0xff]
        %v2037 = vld [vmem:[%s3 + $0x338] sm:$0xff]
        %v2038 = vld [vmem:[%s3 + $0x340] sm:$0xff]
        %v2039 = vld [vmem:[%s3 + $0x348] sm:$0xff]
        %v2040 = vld [vmem:[%s3 + $0x350] sm:$0xff]
        %v2041 = vld [vmem:[%s3 + $0x358] sm:$0xff]
        %v2042 = vld [vmem:[%s3 + $0x360] sm:$0xff]
        %v2043 = vld [vmem:[%s3 + $0x368] sm:$0xff]
        %v2044 = vld [vmem:[%s3 + $0x370] sm:$0xff]
        %v2045 = vld [vmem:[%s3 + $0x378] sm:$0xff]
        %v2046 = vld [vmem:[%s3 + $0x380] sm:$0xff]
        %v2047 = vld [vmem:[%s3 + $0x388] sm:$0xff]
        %v2048 = vld [vmem:[%s3 + $0x390] sm:$0xff]
        %v2049 = vld [vmem:[%s3 + $0x398] sm:$0xff]
        %v2050 = vld [vmem:[%s3 + $0x3a0] sm:$0xff]
        %v2051 = vld [vmem:[%s3 + $0x3a8] sm:$0xff]
        %v2052 = vld [vmem:[%s3 + $0x3b0] sm:$0xff]
        %v2053 = vld [vmem:[%s3 + $0x3b8] sm:$0xff]
        %v2054 = vld [vmem:[%s3 + $0x3c0] sm:$0xff]
        %v2055 = vld [vmem:[%s3 + $0x3c8] sm:$0xff]
        %v2056 = vld [vmem:[%s3 + $0x3d0] sm:$0xff]
        %v2057 = vld [vmem:[%s3 + $0x3d8] sm:$0xff]
        %v2058 = vld [vmem:[%s3 + $0x3e0] sm:$0xff]
        %v2059 = vld [vmem:[%s3 + $0x3e8] sm:$0xff]
        %v2060 = vld [vmem:[%s3 + $0x3f0] sm:$0xff]
        %v2061 = vld [vmem:[%s3 + $0x3f8] sm:$0xff]
        %s2062 = scalar_lea.vmem %s3, 1024
        %v2063 = vld [vmem:[%s2062] sm:$0xff]
        %v2064 = vld [vmem:[%s2062 + $0x8] sm:$0xff]
        %v2065 = vld [vmem:[%s2062 + $0x10] sm:$0xff]
        %v2066 = vld [vmem:[%s2062 + $0x18] sm:$0xff]
        %v2067 = vld [vmem:[%s2062 + $0x20] sm:$0xff]
        %v2068 = vld [vmem:[%s2062 + $0x28] sm:$0xff]
        %v2069 = vld [vmem:[%s2062 + $0x30] sm:$0xff]
        %v2070 = vld [vmem:[%s2062 + $0x38] sm:$0xff]
        %v2071 = vld [vmem:[%s2062 + $0x40] sm:$0xff]
        %v2072 = vld [vmem:[%s2062 + $0x48] sm:$0xff]
        %v2073 = vld [vmem:[%s2062 + $0x50] sm:$0xff]
        %v2074 = vld [vmem:[%s2062 + $0x58] sm:$0xff]
        %v2075 = vld [vmem:[%s2062 + $0x60] sm:$0xff]
        %v2076 = vld [vmem:[%s2062 + $0x68] sm:$0xff]
        %v2077 = vld [vmem:[%s2062 + $0x70] sm:$0xff]
        %v2078 = vld [vmem:[%s2062 + $0x78] sm:$0xff]
        %v2079 = vld [vmem:[%s2062 + $0x80] sm:$0xff]
        %v2080 = vld [vmem:[%s2062 + $0x88] sm:$0xff]
        %v2081 = vld [vmem:[%s2062 + $0x90] sm:$0xff]
        %v2082 = vld [vmem:[%s2062 + $0x98] sm:$0xff]
        %v2083 = vld [vmem:[%s2062 + $0xa0] sm:$0xff]
        %v2084 = vld [vmem:[%s2062 + $0xa8] sm:$0xff]
        %v2085 = vld [vmem:[%s2062 + $0xb0] sm:$0xff]
        %v2086 = vld [vmem:[%s2062 + $0xb8] sm:$0xff]
        %v2087 = vld [vmem:[%s2062 + $0xc0] sm:$0xff]
        %v2088 = vld [vmem:[%s2062 + $0xc8] sm:$0xff]
        %v2089 = vld [vmem:[%s2062 + $0xd0] sm:$0xff]
        %v2090 = vld [vmem:[%s2062 + $0xd8] sm:$0xff]
        %v2091 = vld [vmem:[%s2062 + $0xe0] sm:$0xff]
        %v2092 = vld [vmem:[%s2062 + $0xe8] sm:$0xff]
        %v2093 = vld [vmem:[%s2062 + $0xf0] sm:$0xff]
        %v2094 = vld [vmem:[%s2062 + $0xf8] sm:$0xff]
        %v2095 = vld [vmem:[%s2062 + $0x100] sm:$0xff]
        %v2096 = vld [vmem:[%s2062 + $0x108] sm:$0xff]
        %v2097 = vld [vmem:[%s2062 + $0x110] sm:$0xff]
        %v2098 = vld [vmem:[%s2062 + $0x118] sm:$0xff]
        %v2099 = vld [vmem:[%s2062 + $0x120] sm:$0xff]
        %v2100 = vld [vmem:[%s2062 + $0x128] sm:$0xff]
        %v2101 = vld [vmem:[%s2062 + $0x130] sm:$0xff]
        %v2102 = vld [vmem:[%s2062 + $0x138] sm:$0xff]
        %v2103 = vld [vmem:[%s2062 + $0x140] sm:$0xff]
        %v2104 = vld [vmem:[%s2062 + $0x148] sm:$0xff]
        %v2105 = vld [vmem:[%s2062 + $0x150] sm:$0xff]
        %v2106 = vld [vmem:[%s2062 + $0x158] sm:$0xff]
        %v2107 = vld [vmem:[%s2062 + $0x160] sm:$0xff]
        %v2108 = vld [vmem:[%s2062 + $0x168] sm:$0xff]
        %v2109 = vld [vmem:[%s2062 + $0x170] sm:$0xff]
        %v2110 = vld [vmem:[%s2062 + $0x178] sm:$0xff]
        %v2111 = vld [vmem:[%s2062 + $0x180] sm:$0xff]
        %v2112 = vld [vmem:[%s2062 + $0x188] sm:$0xff]
        %v2113 = vld [vmem:[%s2062 + $0x190] sm:$0xff]
        %v2114 = vld [vmem:[%s2062 + $0x198] sm:$0xff]
        %v2115 = vld [vmem:[%s2062 + $0x1a0] sm:$0xff]
        %v2116 = vld [vmem:[%s2062 + $0x1a8] sm:$0xff]
        %v2117 = vld [vmem:[%s2062 + $0x1b0] sm:$0xff]
        %v2118 = vld [vmem:[%s2062 + $0x1b8] sm:$0xff]
        %v2119 = vld [vmem:[%s2062 + $0x1c0] sm:$0xff]
        %v2120 = vld [vmem:[%s2062 + $0x1c8] sm:$0xff]
        %v2121 = vld [vmem:[%s2062 + $0x1d0] sm:$0xff]
        %v2122 = vld [vmem:[%s2062 + $0x1d8] sm:$0xff]
        %v2123 = vld [vmem:[%s2062 + $0x1e0] sm:$0xff]
        %v2124 = vld [vmem:[%s2062 + $0x1e8] sm:$0xff]
        %v2125 = vld [vmem:[%s2062 + $0x1f0] sm:$0xff]
        %v2126 = vld [vmem:[%s2062 + $0x1f8] sm:$0xff]
        %v2127 = vld [vmem:[%s2062 + $0x200] sm:$0xff]
        %v2128 = vld [vmem:[%s2062 + $0x208] sm:$0xff]
        %v2129 = vld [vmem:[%s2062 + $0x210] sm:$0xff]
        %v2130 = vld [vmem:[%s2062 + $0x218] sm:$0xff]
        %v2131 = vld [vmem:[%s2062 + $0x220] sm:$0xff]
        %v2132 = vld [vmem:[%s2062 + $0x228] sm:$0xff]
        %v2133 = vld [vmem:[%s2062 + $0x230] sm:$0xff]
        %v2134 = vld [vmem:[%s2062 + $0x238] sm:$0xff]
        %v2135 = vld [vmem:[%s2062 + $0x240] sm:$0xff]
        %v2136 = vld [vmem:[%s2062 + $0x248] sm:$0xff]
        %v2137 = vld [vmem:[%s2062 + $0x250] sm:$0xff]
        %v2138 = vld [vmem:[%s2062 + $0x258] sm:$0xff]
        %v2139 = vld [vmem:[%s2062 + $0x260] sm:$0xff]
        %v2140 = vld [vmem:[%s2062 + $0x268] sm:$0xff]
        %v2141 = vld [vmem:[%s2062 + $0x270] sm:$0xff]
        %v2142 = vld [vmem:[%s2062 + $0x278] sm:$0xff]
        %v2143 = vld [vmem:[%s2062 + $0x280] sm:$0xff]
        %v2144 = vld [vmem:[%s2062 + $0x288] sm:$0xff]
        %v2145 = vld [vmem:[%s2062 + $0x290] sm:$0xff]
        %v2146 = vld [vmem:[%s2062 + $0x298] sm:$0xff]
        %v2147 = vld [vmem:[%s2062 + $0x2a0] sm:$0xff]
        %v2148 = vld [vmem:[%s2062 + $0x2a8] sm:$0xff]
        %v2149 = vld [vmem:[%s2062 + $0x2b0] sm:$0xff]
        %v2150 = vld [vmem:[%s2062 + $0x2b8] sm:$0xff]
        %v2151 = vld [vmem:[%s2062 + $0x2c0] sm:$0xff]
        %v2152 = vld [vmem:[%s2062 + $0x2c8] sm:$0xff]
        %v2153 = vld [vmem:[%s2062 + $0x2d0] sm:$0xff]
        %v2154 = vld [vmem:[%s2062 + $0x2d8] sm:$0xff]
        %v2155 = vld [vmem:[%s2062 + $0x2e0] sm:$0xff]
        %v2156 = vld [vmem:[%s2062 + $0x2e8] sm:$0xff]
        %v2157 = vld [vmem:[%s2062 + $0x2f0] sm:$0xff]
        %v2158 = vld [vmem:[%s2062 + $0x2f8] sm:$0xff]
        %v2159 = vld [vmem:[%s2062 + $0x300] sm:$0xff]
        %v2160 = vld [vmem:[%s2062 + $0x308] sm:$0xff]
        %v2161 = vld [vmem:[%s2062 + $0x310] sm:$0xff]
        %v2162 = vld [vmem:[%s2062 + $0x318] sm:$0xff]
        %v2163 = vld [vmem:[%s2062 + $0x320] sm:$0xff]
        %v2164 = vld [vmem:[%s2062 + $0x328] sm:$0xff]
        %v2165 = vld [vmem:[%s2062 + $0x330] sm:$0xff]
        %v2166 = vld [vmem:[%s2062 + $0x338] sm:$0xff]
        %v2167 = vld [vmem:[%s2062 + $0x340] sm:$0xff]
        %v2168 = vld [vmem:[%s2062 + $0x348] sm:$0xff]
        %v2169 = vld [vmem:[%s2062 + $0x350] sm:$0xff]
        %v2170 = vld [vmem:[%s2062 + $0x358] sm:$0xff]
        %v2171 = vld [vmem:[%s2062 + $0x360] sm:$0xff]
        %v2172 = vld [vmem:[%s2062 + $0x368] sm:$0xff]
        %v2173 = vld [vmem:[%s2062 + $0x370] sm:$0xff]
        %v2174 = vld [vmem:[%s2062 + $0x378] sm:$0xff]
        %v2175 = vld [vmem:[%s2062 + $0x380] sm:$0xff]
        %v2176 = vld [vmem:[%s2062 + $0x388] sm:$0xff]
        %v2177 = vld [vmem:[%s2062 + $0x390] sm:$0xff]
        %v2178 = vld [vmem:[%s2062 + $0x398] sm:$0xff]
        %v2179 = vld [vmem:[%s2062 + $0x3a0] sm:$0xff]
        %v2180 = vld [vmem:[%s2062 + $0x3a8] sm:$0xff]
        %v2181 = vld [vmem:[%s2062 + $0x3b0] sm:$0xff]
        %v2182 = vld [vmem:[%s2062 + $0x3b8] sm:$0xff]
        %v2183 = vld [vmem:[%s2062 + $0x3c0] sm:$0xff]
        %v2184 = vld [vmem:[%s2062 + $0x3c8] sm:$0xff]
        %v2185 = vld [vmem:[%s2062 + $0x3d0] sm:$0xff]
        %v2186 = vld [vmem:[%s2062 + $0x3d8] sm:$0xff]
        %v2187 = vld [vmem:[%s2062 + $0x3e0] sm:$0xff]
        %v2188 = vld [vmem:[%s2062 + $0x3e8] sm:$0xff]
        %v2189 = vld [vmem:[%s2062 + $0x3f0] sm:$0xff]
        %v2190 = vld [vmem:[%s2062 + $0x3f8] sm:$0xff]
        %v2191 = vsel %vm1879, %v1627, %v1613
        %v2192 = vsel %vm1861, %v1641, %v2191
        %v2193 = vsel %vm1863, %v1655, %v2192
        %v2194 = vsel %vm1865, %v1669, %v2193
        %v2195 = vsel %vm1867, %v1683, %v2194
        %v2196 = vsel %vm1869, %v1697, %v2195
        %v2197 = vsel %vm1871, %v1711, %v2196
        %v2198 = vsel %vm1879, %v1634, %v1620
        %v2199 = vsel %vm1861, %v1648, %v2198
        %v2200 = vsel %vm1863, %v1662, %v2199
        %v2201 = vsel %vm1865, %v1676, %v2200
        %v2202 = vsel %vm1867, %v1690, %v2201
        %v2203 = vsel %vm1869, %v1704, %v2202
        %v2204 = vsel %vm1871, %v1718, %v2203
        %v2205 = vsel %vm1879, %v1739, %v1725
        %v2206 = vsel %vm1861, %v1753, %v2205
        %v2207 = vsel %vm1863, %v1767, %v2206
        %v2208 = vsel %vm1865, %v1781, %v2207
        %v2209 = vsel %vm1867, %v1795, %v2208
        %v2210 = vsel %vm1869, %v1809, %v2209
        %v2211 = vsel %vm1871, %v1823, %v2210
        %v2212 = vsel %vm1879, %v1746, %v1732
        %v2213 = vsel %vm1861, %v1760, %v2212
        %v2214 = vsel %vm1863, %v1774, %v2213
        %v2215 = vsel %vm1865, %v1788, %v2214
        %v2216 = vsel %vm1867, %v1802, %v2215
        %v2217 = vsel %vm1869, %v1816, %v2216
        %v2218 = vsel %vm1871, %v1830, %v2217
        %2223 = vmatprep.subr.mxu0 %v2064
        %2224 = vmatpush1.msra.mxu0 %v2063
        %2225 = vmatprep.subr.mxu0 %v2068
        %2226 = vmatpush1.msra.mxu0 %v2067
        %2227 = vmatprep.subr.mxu0 %v2072
        %2228 = vmatpush1.msra.mxu0 %v2071
        %2229 = vmatprep.subr.mxu0 %v2076
        %2230 = vmatpush1.msra.mxu0 %v2075
        %2231 = vmatprep.subr.mxu0 %v2080
        %2232 = vmatpush1.msra.mxu0 %v2079
        %2233 = vmatprep.subr.mxu0 %v2084
        %2234 = vmatpush1.msra.mxu0 %v2083
        %2235 = vmatprep.subr.mxu0 %v2088
        %2236 = vmatpush1.msra.mxu0 %v2087
        %2237 = vmatprep.subr.mxu0 %v2092
        %2238 = vmatpush1.msra.mxu0 %v2091
        %2239 = vmatprep.subr.mxu0 %v2096
        %2240 = vmatpush1.msra.mxu0 %v2095
        %2241 = vmatprep.subr.mxu0 %v2100
        %2242 = vmatpush1.msra.mxu0 %v2099
        %2243 = vmatprep.subr.mxu0 %v2104
        %2244 = vmatpush1.msra.mxu0 %v2103
        %2245 = vmatprep.subr.mxu0 %v2108
        %2246 = vmatpush1.msra.mxu0 %v2107
        %2247 = vmatprep.subr.mxu0 %v2112
        %2248 = vmatpush1.msra.mxu0 %v2111
        %2249 = vmatprep.subr.mxu0 %v2116
        %2250 = vmatpush1.msra.mxu0 %v2115
        %2251 = vmatprep.subr.mxu0 %v2120
        %2252 = vmatpush1.msra.mxu0 %v2119
        %2253 = vmatprep.subr.mxu0 %v2124
        %2254 = vmatpush1.msra.mxu0 %v2123
        %2255 = vmatprep.subr.mxu0 %v2128
        %2256 = vmatpush1.msra.mxu0 %v2127
        %2257 = vmatprep.subr.mxu0 %v2132
        %2258 = vmatpush1.msra.mxu0 %v2131
        %2259 = vmatprep.subr.mxu0 %v2136
        %2260 = vmatpush1.msra.mxu0 %v2135
        %2261 = vmatprep.subr.mxu0 %v2140
        %2262 = vmatpush1.msra.mxu0 %v2139
        %2263 = vmatprep.subr.mxu0 %v2144
        %2264 = vmatpush1.msra.mxu0 %v2143
        %2265 = vmatprep.subr.mxu0 %v2148
        %2266 = vmatpush1.msra.mxu0 %v2147
        %2267 = vmatprep.subr.mxu0 %v2152
        %2268 = vmatpush1.msra.mxu0 %v2151
        %2269 = vmatprep.subr.mxu0 %v2156
        %2270 = vmatpush1.msra.mxu0 %v2155
        %2271 = vmatprep.subr.mxu0 %v2160
        %2272 = vmatpush1.msra.mxu0 %v2159
        %2273 = vmatprep.subr.mxu0 %v2164
        %2274 = vmatpush1.msra.mxu0 %v2163
        %2275 = vmatprep.subr.mxu0 %v2168
        %2276 = vmatpush1.msra.mxu0 %v2167
        %2277 = vmatprep.subr.mxu0 %v2172
        %2278 = vmatpush1.msra.mxu0 %v2171
        %2279 = vmatprep.subr.mxu0 %v2176
        %2280 = vmatpush1.msra.mxu0 %v2175
        %2281 = vmatprep.subr.mxu0 %v2180
        %2282 = vmatpush1.msra.mxu0 %v2179
        %2283 = vmatprep.subr.mxu0 %v2184
        %2284 = vmatpush1.msra.mxu0 %v2183
        %2285 = vmatprep.subr.mxu0 %v2188
        %2286 = vmatpush1.msra.mxu0 %v2187
        %2287 = vmatprep.mubr.f32.mxu0 %v2204
        %2288 = vmatmul.mubr.f32.gmra.mrb[0].mxu0 %v2197
        %v2289 = vpop.f32.mrb[0].mxu0
        %v2290 = vadd.f32 0.0, %v2289
        %v2291 = vpop.f32.mrb[0].mxu0
        %v2292 = vadd.f32 0.0, %v2291
        %2293 = vmatprep.mubr.f32.mxu0 %v2218
        %2294 = vmatmul.mubr.f32.gmra.mrb[0].mxu0 %v2211
        %v2295 = vpop.f32.mrb[0].mxu0
        %v2296 = vadd.f32 0.0, %v2295
        %v2297 = vpop.f32.mrb[0].mxu0
        %v2298 = vadd.f32 0.0, %v2297
        %2299 = vdwg.mxu0
        %2300 = vmatprep.subr.mxu0 %v2066
        %2301 = vmatpush1.msra.mxu0 %v2065
        %2302 = vmatprep.subr.mxu0 %v2070
        %2303 = vmatpush1.msra.mxu0 %v2069
        %2304 = vmatprep.subr.mxu0 %v2074
        %2305 = vmatpush1.msra.mxu0 %v2073
        %2306 = vmatprep.subr.mxu0 %v2078
        %2307 = vmatpush1.msra.mxu0 %v2077
        %2308 = vmatprep.subr.mxu0 %v2082
        %2309 = vmatpush1.msra.mxu0 %v2081
        %2310 = vmatprep.subr.mxu0 %v2086
        %2311 = vmatpush1.msra.mxu0 %v2085
        %2312 = vmatprep.subr.mxu0 %v2090
        %2313 = vmatpush1.msra.mxu0 %v2089
        %2314 = vmatprep.subr.mxu0 %v2094
        %2315 = vmatpush1.msra.mxu0 %v2093
        %2316 = vmatprep.subr.mxu0 %v2098
        %2317 = vmatpush1.msra.mxu0 %v2097
        %2318 = vmatprep.subr.mxu0 %v2102
        %2319 = vmatpush1.msra.mxu0 %v2101
        %2320 = vmatprep.subr.mxu0 %v2106
        %2321 = vmatpush1.msra.mxu0 %v2105
        %2322 = vmatprep.subr.mxu0 %v2110
        %2323 = vmatpush1.msra.mxu0 %v2109
        %2324 = vmatprep.subr.mxu0 %v2114
        %2325 = vmatpush1.msra.mxu0 %v2113
        %2326 = vmatprep.subr.mxu0 %v2118
        %2327 = vmatpush1.msra.mxu0 %v2117
        %2328 = vmatprep.subr.mxu0 %v2122
        %2329 = vmatpush1.msra.mxu0 %v2121
        %2330 = vmatprep.subr.mxu0 %v2126
        %2331 = vmatpush1.msra.mxu0 %v2125
        %2332 = vmatprep.subr.mxu0 %v2130
        %2333 = vmatpush1.msra.mxu0 %v2129
        %2334 = vmatprep.subr.mxu0 %v2134
        %2335 = vmatpush1.msra.mxu0 %v2133
        %2336 = vmatprep.subr.mxu0 %v2138
        %2337 = vmatpush1.msra.mxu0 %v2137
        %2338 = vmatprep.subr.mxu0 %v2142
        %2339 = vmatpush1.msra.mxu0 %v2141
        %2340 = vmatprep.subr.mxu0 %v2146
        %2341 = vmatpush1.msra.mxu0 %v2145
        %2342 = vmatprep.subr.mxu0 %v2150
        %2343 = vmatpush1.msra.mxu0 %v2149
        %2344 = vmatprep.subr.mxu0 %v2154
        %2345 = vmatpush1.msra.mxu0 %v2153
        %2346 = vmatprep.subr.mxu0 %v2158
        %2347 = vmatpush1.msra.mxu0 %v2157
        %2348 = vmatprep.subr.mxu0 %v2162
        %2349 = vmatpush1.msra.mxu0 %v2161
        %2350 = vmatprep.subr.mxu0 %v2166
        %2351 = vmatpush1.msra.mxu0 %v2165
        %2352 = vmatprep.subr.mxu0 %v2170
        %2353 = vmatpush1.msra.mxu0 %v2169
        %2354 = vmatprep.subr.mxu0 %v2174
        %2355 = vmatpush1.msra.mxu0 %v2173
        %2356 = vmatprep.subr.mxu0 %v2178
        %2357 = vmatpush1.msra.mxu0 %v2177
        %2358 = vmatprep.subr.mxu0 %v2182
        %2359 = vmatpush1.msra.mxu0 %v2181
        %2360 = vmatprep.subr.mxu0 %v2186
        %2361 = vmatpush1.msra.mxu0 %v2185
        %2362 = vmatprep.subr.mxu0 %v2190
        %2363 = vmatpush1.msra.mxu0 %v2189
        %2364 = vmatprep.mubr.f32.mxu0 %v2204
        %2365 = vmatmul.mubr.f32.gmra.mrb[0].mxu0 %v2197
        %v2366 = vpop.f32.mrb[0].mxu0
        %v2367 = vadd.f32 0.0, %v2366
        %v2368 = vpop.f32.mrb[0].mxu0
        %v2369 = vadd.f32 0.0, %v2368
        %2370 = vmatprep.mubr.f32.mxu0 %v2218
        %2371 = vmatmul.mubr.f32.gmra.mrb[0].mxu0 %v2211
        %v2372 = vpop.f32.mrb[0].mxu0
        %v2373 = vadd.f32 0.0, %v2372
        %v2374 = vpop.f32.mrb[0].mxu0
        %v2375 = vadd.f32 0.0, %v2374
        %2376 = vdwg.mxu0
        %2377 = vmatprep.subr.mxu0 %v1935
        %2378 = vmatpush1.msra.mxu0 %v1934
        %2379 = vmatprep.subr.mxu0 %v1939
        %2380 = vmatpush1.msra.mxu0 %v1938
        %2381 = vmatprep.subr.mxu0 %v1943
        %2382 = vmatpush1.msra.mxu0 %v1942
        %2383 = vmatprep.subr.mxu0 %v1947
        %2384 = vmatpush1.msra.mxu0 %v1946
        %2385 = vmatprep.subr.mxu0 %v1951
        %2386 = vmatpush1.msra.mxu0 %v1950
        %2387 = vmatprep.subr.mxu0 %v1955
        %2388 = vmatpush1.msra.mxu0 %v1954
        %2389 = vmatprep.subr.mxu0 %v1959
        %2390 = vmatpush1.msra.mxu0 %v1958
        %2391 = vmatprep.subr.mxu0 %v1963
        %2392 = vmatpush1.msra.mxu0 %v1962
        %2393 = vmatprep.subr.mxu0 %v1967
        %2394 = vmatpush1.msra.mxu0 %v1966
        %2395 = vmatprep.subr.mxu0 %v1971
        %2396 = vmatpush1.msra.mxu0 %v1970
        %2397 = vmatprep.subr.mxu0 %v1975
        %2398 = vmatpush1.msra.mxu0 %v1974
        %2399 = vmatprep.subr.mxu0 %v1979
        %2400 = vmatpush1.msra.mxu0 %v1978
        %2401 = vmatprep.subr.mxu0 %v1983
        %2402 = vmatpush1.msra.mxu0 %v1982
        %2403 = vmatprep.subr.mxu0 %v1987
        %2404 = vmatpush1.msra.mxu0 %v1986
        %2405 = vmatprep.subr.mxu0 %v1991
        %2406 = vmatpush1.msra.mxu0 %v1990
        %2407 = vmatprep.subr.mxu0 %v1995
        %2408 = vmatpush1.msra.mxu0 %v1994
        %2409 = vmatprep.subr.mxu0 %v1999
        %2410 = vmatpush1.msra.mxu0 %v1998
        %2411 = vmatprep.subr.mxu0 %v2003
        %2412 = vmatpush1.msra.mxu0 %v2002
        %2413 = vmatprep.subr.mxu0 %v2007
        %2414 = vmatpush1.msra.mxu0 %v2006
        %2415 = vmatprep.subr.mxu0 %v2011
        %2416 = vmatpush1.msra.mxu0 %v2010
        %2417 = vmatprep.subr.mxu0 %v2015
        %2418 = vmatpush1.msra.mxu0 %v2014
        %2419 = vmatprep.subr.mxu0 %v2019
        %2420 = vmatpush1.msra.mxu0 %v2018
        %2421 = vmatprep.subr.mxu0 %v2023
        %2422 = vmatpush1.msra.mxu0 %v2022
        %2423 = vmatprep.subr.mxu0 %v2027
        %2424 = vmatpush1.msra.mxu0 %v2026
        %2425 = vmatprep.subr.mxu0 %v2031
        %2426 = vmatpush1.msra.mxu0 %v2030
        %2427 = vmatprep.subr.mxu0 %v2035
        %2428 = vmatpush1.msra.mxu0 %v2034
        %2429 = vmatprep.subr.mxu0 %v2039
        %2430 = vmatpush1.msra.mxu0 %v2038
        %2431 = vmatprep.subr.mxu0 %v2043
        %2432 = vmatpush1.msra.mxu0 %v2042
        %2433 = vmatprep.subr.mxu0 %v2047
        %2434 = vmatpush1.msra.mxu0 %v2046
        %2435 = vmatprep.subr.mxu0 %v2051
        %2436 = vmatpush1.msra.mxu0 %v2050
        %2437 = vmatprep.subr.mxu0 %v2055
        %2438 = vmatpush1.msra.mxu0 %v2054
        %2439 = vmatprep.subr.mxu0 %v2059
        %2440 = vmatpush1.msra.mxu0 %v2058
        %2441 = vmatprep.mubr.f32.mxu0 %v1899
        %2442 = vmatmul.mubr.f32.gmra.mrb[0].mxu0 %v1898
        %v2443 = vpop.f32.mrb[0].mxu0
        %v2444 = vadd.f32 %v2290, %v2443
        %v2445 = vpop.f32.mrb[0].mxu0
        %v2446 = vadd.f32 %v2292, %v2445
        %2447 = vmatprep.mubr.f32.mxu0 %v1893
        %2448 = vmatmul.mubr.f32.gmra.mrb[0].mxu0 %v1886
        %v2449 = vpop.f32.mrb[0].mxu0
        %v2450 = vadd.f32 %v2296, %v2449
        %v2451 = vpop.f32.mrb[0].mxu0
        %v2452 = vadd.f32 %v2298, %v2451
        %2453 = vdwg.mxu0
        %2454 = vmatprep.subr.mxu0 %v1937
        %2455 = vmatpush1.msra.mxu0 %v1936
        %2456 = vmatprep.subr.mxu0 %v1941
        %2457 = vmatpush1.msra.mxu0 %v1940
        %2458 = vmatprep.subr.mxu0 %v1945
        %2459 = vmatpush1.msra.mxu0 %v1944
        %2460 = vmatprep.subr.mxu0 %v1949
        %2461 = vmatpush1.msra.mxu0 %v1948
        %2462 = vmatprep.subr.mxu0 %v1953
        %2463 = vmatpush1.msra.mxu0 %v1952
        %2464 = vmatprep.subr.mxu0 %v1957
        %2465 = vmatpush1.msra.mxu0 %v1956
        %2466 = vmatprep.subr.mxu0 %v1961
        %2467 = vmatpush1.msra.mxu0 %v1960
        %2468 = vmatprep.subr.mxu0 %v1965
        %2469 = vmatpush1.msra.mxu0 %v1964
        %2470 = vmatprep.subr.mxu0 %v1969
        %2471 = vmatpush1.msra.mxu0 %v1968
        %2472 = vmatprep.subr.mxu0 %v1973
        %2473 = vmatpush1.msra.mxu0 %v1972
        %2474 = vmatprep.subr.mxu0 %v1977
        %2475 = vmatpush1.msra.mxu0 %v1976
        %2476 = vmatprep.subr.mxu0 %v1981
        %2477 = vmatpush1.msra.mxu0 %v1980
        %2478 = vmatprep.subr.mxu0 %v1985
        %2479 = vmatpush1.msra.mxu0 %v1984
        %2480 = vmatprep.subr.mxu0 %v1989
        %2481 = vmatpush1.msra.mxu0 %v1988
        %2482 = vmatprep.subr.mxu0 %v1993
        %2483 = vmatpush1.msra.mxu0 %v1992
        %2484 = vmatprep.subr.mxu0 %v1997
        %2485 = vmatpush1.msra.mxu0 %v1996
        %2486 = vmatprep.subr.mxu0 %v2001
        %2487 = vmatpush1.msra.mxu0 %v2000
        %2488 = vmatprep.subr.mxu0 %v2005
        %2489 = vmatpush1.msra.mxu0 %v2004
        %2490 = vmatprep.subr.mxu0 %v2009
        %2491 = vmatpush1.msra.mxu0 %v2008
        %2492 = vmatprep.subr.mxu0 %v2013
        %2493 = vmatpush1.msra.mxu0 %v2012
        %2494 = vmatprep.subr.mxu0 %v2017
        %2495 = vmatpush1.msra.mxu0 %v2016
        %2496 = vmatprep.subr.mxu0 %v2021
        %2497 = vmatpush1.msra.mxu0 %v2020
        %2498 = vmatprep.subr.mxu0 %v2025
        %2499 = vmatpush1.msra.mxu0 %v2024
        %2500 = vmatprep.subr.mxu0 %v2029
        %2501 = vmatpush1.msra.mxu0 %v2028
        %2502 = vmatprep.subr.mxu0 %v2033
        %2503 = vmatpush1.msra.mxu0 %v2032
        %2504 = vmatprep.subr.mxu0 %v2037
        %2505 = vmatpush1.msra.mxu0 %v2036
        %2506 = vmatprep.subr.mxu0 %v2041
        %2507 = vmatpush1.msra.mxu0 %v2040
        %2508 = vmatprep.subr.mxu0 %v2045
        %2509 = vmatpush1.msra.mxu0 %v2044
        %2510 = vmatprep.subr.mxu0 %v2049
        %2511 = vmatpush1.msra.mxu0 %v2048
        %2512 = vmatprep.subr.mxu0 %v2053
        %2513 = vmatpush1.msra.mxu0 %v2052
        %2514 = vmatprep.subr.mxu0 %v2057
        %2515 = vmatpush1.msra.mxu0 %v2056
        %2516 = vmatprep.subr.mxu0 %v2061
        %2517 = vmatpush1.msra.mxu0 %v2060
        %2518 = vmatprep.mubr.f32.mxu0 %v1899
        %2519 = vmatmul.mubr.f32.gmra.mrb[0].mxu0 %v1898
        %v2520 = vpop.f32.mrb[0].mxu0
        %v2521 = vadd.f32 %v2367, %v2520
        %v2522 = vpop.f32.mrb[0].mxu0
        %v2523 = vadd.f32 %v2369, %v2522
        %2524 = vmatprep.mubr.f32.mxu0 %v1893
        %2525 = vmatmul.mubr.f32.gmra.mrb[0].mxu0 %v1886
        %v2526 = vpop.f32.mrb[0].mxu0
        %v2527 = vadd.f32 %v2373, %v2526
        %v2528 = vpop.f32.mrb[0].mxu0
        %v2529 = vadd.f32 %v2375, %v2528
        %2530 = vdwg.mxu0
        %s2531 = scalar_lea.vmem %s3, 2048
        %v2532 = vld [vmem:[%s2531] sm:$0xff]
        %v2533 = vld [vmem:[%s2531 + $0x8] sm:$0xff]
        %v2534 = vld [vmem:[%s2531 + $0x10] sm:$0xff]
        %v2535 = vld [vmem:[%s2531 + $0x18] sm:$0xff]
        %v2536 = vld [vmem:[%s2531 + $0x20] sm:$0xff]
        %v2537 = vld [vmem:[%s2531 + $0x28] sm:$0xff]
        %v2538 = vld [vmem:[%s2531 + $0x30] sm:$0xff]
        %v2539 = vld [vmem:[%s2531 + $0x38] sm:$0xff]
        %v2540 = vld [vmem:[%s2531 + $0x40] sm:$0xff]
        %v2541 = vld [vmem:[%s2531 + $0x48] sm:$0xff]
        %v2542 = vld [vmem:[%s2531 + $0x50] sm:$0xff]
        %v2543 = vld [vmem:[%s2531 + $0x58] sm:$0xff]
        %v2544 = vld [vmem:[%s2531 + $0x60] sm:$0xff]
        %v2545 = vld [vmem:[%s2531 + $0x68] sm:$0xff]
        %v2546 = vld [vmem:[%s2531 + $0x70] sm:$0xff]
        %v2547 = vld [vmem:[%s2531 + $0x78] sm:$0xff]
        %v2548 = vld [vmem:[%s2531 + $0x80] sm:$0xff]
        %v2549 = vld [vmem:[%s2531 + $0x88] sm:$0xff]
        %v2550 = vld [vmem:[%s2531 + $0x90] sm:$0xff]
        %v2551 = vld [vmem:[%s2531 + $0x98] sm:$0xff]
        %v2552 = vld [vmem:[%s2531 + $0xa0] sm:$0xff]
        %v2553 = vld [vmem:[%s2531 + $0xa8] sm:$0xff]
        %v2554 = vld [vmem:[%s2531 + $0xb0] sm:$0xff]
        %v2555 = vld [vmem:[%s2531 + $0xb8] sm:$0xff]
        %v2556 = vld [vmem:[%s2531 + $0xc0] sm:$0xff]
        %v2557 = vld [vmem:[%s2531 + $0xc8] sm:$0xff]
        %v2558 = vld [vmem:[%s2531 + $0xd0] sm:$0xff]
        %v2559 = vld [vmem:[%s2531 + $0xd8] sm:$0xff]
        %v2560 = vld [vmem:[%s2531 + $0xe0] sm:$0xff]
        %v2561 = vld [vmem:[%s2531 + $0xe8] sm:$0xff]
        %v2562 = vld [vmem:[%s2531 + $0xf0] sm:$0xff]
        %v2563 = vld [vmem:[%s2531 + $0xf8] sm:$0xff]
        %v2564 = vld [vmem:[%s2531 + $0x100] sm:$0xff]
        %v2565 = vld [vmem:[%s2531 + $0x108] sm:$0xff]
        %v2566 = vld [vmem:[%s2531 + $0x110] sm:$0xff]
        %v2567 = vld [vmem:[%s2531 + $0x118] sm:$0xff]
        %v2568 = vld [vmem:[%s2531 + $0x120] sm:$0xff]
        %v2569 = vld [vmem:[%s2531 + $0x128] sm:$0xff]
        %v2570 = vld [vmem:[%s2531 + $0x130] sm:$0xff]
        %v2571 = vld [vmem:[%s2531 + $0x138] sm:$0xff]
        %v2572 = vld [vmem:[%s2531 + $0x140] sm:$0xff]
        %v2573 = vld [vmem:[%s2531 + $0x148] sm:$0xff]
        %v2574 = vld [vmem:[%s2531 + $0x150] sm:$0xff]
        %v2575 = vld [vmem:[%s2531 + $0x158] sm:$0xff]
        %v2576 = vld [vmem:[%s2531 + $0x160] sm:$0xff]
        %v2577 = vld [vmem:[%s2531 + $0x168] sm:$0xff]
        %v2578 = vld [vmem:[%s2531 + $0x170] sm:$0xff]
        %v2579 = vld [vmem:[%s2531 + $0x178] sm:$0xff]
        %v2580 = vld [vmem:[%s2531 + $0x180] sm:$0xff]
        %v2581 = vld [vmem:[%s2531 + $0x188] sm:$0xff]
        %v2582 = vld [vmem:[%s2531 + $0x190] sm:$0xff]
        %v2583 = vld [vmem:[%s2531 + $0x198] sm:$0xff]
        %v2584 = vld [vmem:[%s2531 + $0x1a0] sm:$0xff]
        %v2585 = vld [vmem:[%s2531 + $0x1a8] sm:$0xff]
        %v2586 = vld [vmem:[%s2531 + $0x1b0] sm:$0xff]
        %v2587 = vld [vmem:[%s2531 + $0x1b8] sm:$0xff]
        %v2588 = vld [vmem:[%s2531 + $0x1c0] sm:$0xff]
        %v2589 = vld [vmem:[%s2531 + $0x1c8] sm:$0xff]
        %v2590 = vld [vmem:[%s2531 + $0x1d0] sm:$0xff]
        %v2591 = vld [vmem:[%s2531 + $0x1d8] sm:$0xff]
        %v2592 = vld [vmem:[%s2531 + $0x1e0] sm:$0xff]
        %v2593 = vld [vmem:[%s2531 + $0x1e8] sm:$0xff]
        %v2594 = vld [vmem:[%s2531 + $0x1f0] sm:$0xff]
        %v2595 = vld [vmem:[%s2531 + $0x1f8] sm:$0xff]
        %v2596 = vld [vmem:[%s2531 + $0x200] sm:$0xff]
        %v2597 = vld [vmem:[%s2531 + $0x208] sm:$0xff]
        %v2598 = vld [vmem:[%s2531 + $0x210] sm:$0xff]
        %v2599 = vld [vmem:[%s2531 + $0x218] sm:$0xff]
        %v2600 = vld [vmem:[%s2531 + $0x220] sm:$0xff]
        %v2601 = vld [vmem:[%s2531 + $0x228] sm:$0xff]
        %v2602 = vld [vmem:[%s2531 + $0x230] sm:$0xff]
        %v2603 = vld [vmem:[%s2531 + $0x238] sm:$0xff]
        %v2604 = vld [vmem:[%s2531 + $0x240] sm:$0xff]
        %v2605 = vld [vmem:[%s2531 + $0x248] sm:$0xff]
        %v2606 = vld [vmem:[%s2531 + $0x250] sm:$0xff]
        %v2607 = vld [vmem:[%s2531 + $0x258] sm:$0xff]
        %v2608 = vld [vmem:[%s2531 + $0x260] sm:$0xff]
        %v2609 = vld [vmem:[%s2531 + $0x268] sm:$0xff]
        %v2610 = vld [vmem:[%s2531 + $0x270] sm:$0xff]
        %v2611 = vld [vmem:[%s2531 + $0x278] sm:$0xff]
        %v2612 = vld [vmem:[%s2531 + $0x280] sm:$0xff]
        %v2613 = vld [vmem:[%s2531 + $0x288] sm:$0xff]
        %v2614 = vld [vmem:[%s2531 + $0x290] sm:$0xff]
        %v2615 = vld [vmem:[%s2531 + $0x298] sm:$0xff]
        %v2616 = vld [vmem:[%s2531 + $0x2a0] sm:$0xff]
        %v2617 = vld [vmem:[%s2531 + $0x2a8] sm:$0xff]
        %v2618 = vld [vmem:[%s2531 + $0x2b0] sm:$0xff]
        %v2619 = vld [vmem:[%s2531 + $0x2b8] sm:$0xff]
        %v2620 = vld [vmem:[%s2531 + $0x2c0] sm:$0xff]
        %v2621 = vld [vmem:[%s2531 + $0x2c8] sm:$0xff]
        %v2622 = vld [vmem:[%s2531 + $0x2d0] sm:$0xff]
        %v2623 = vld [vmem:[%s2531 + $0x2d8] sm:$0xff]
        %v2624 = vld [vmem:[%s2531 + $0x2e0] sm:$0xff]
        %v2625 = vld [vmem:[%s2531 + $0x2e8] sm:$0xff]
        %v2626 = vld [vmem:[%s2531 + $0x2f0] sm:$0xff]
        %v2627 = vld [vmem:[%s2531 + $0x2f8] sm:$0xff]
        %v2628 = vld [vmem:[%s2531 + $0x300] sm:$0xff]
        %v2629 = vld [vmem:[%s2531 + $0x308] sm:$0xff]
        %v2630 = vld [vmem:[%s2531 + $0x310] sm:$0xff]
        %v2631 = vld [vmem:[%s2531 + $0x318] sm:$0xff]
        %v2632 = vld [vmem:[%s2531 + $0x320] sm:$0xff]
        %v2633 = vld [vmem:[%s2531 + $0x328] sm:$0xff]
        %v2634 = vld [vmem:[%s2531 + $0x330] sm:$0xff]
        %v2635 = vld [vmem:[%s2531 + $0x338] sm:$0xff]
        %v2636 = vld [vmem:[%s2531 + $0x340] sm:$0xff]
        %v2637 = vld [vmem:[%s2531 + $0x348] sm:$0xff]
        %v2638 = vld [vmem:[%s2531 + $0x350] sm:$0xff]
        %v2639 = vld [vmem:[%s2531 + $0x358] sm:$0xff]
        %v2640 = vld [vmem:[%s2531 + $0x360] sm:$0xff]
        %v2641 = vld [vmem:[%s2531 + $0x368] sm:$0xff]
        %v2642 = vld [vmem:[%s2531 + $0x370] sm:$0xff]
        %v2643 = vld [vmem:[%s2531 + $0x378] sm:$0xff]
        %v2644 = vld [vmem:[%s2531 + $0x380] sm:$0xff]
        %v2645 = vld [vmem:[%s2531 + $0x388] sm:$0xff]
        %v2646 = vld [vmem:[%s2531 + $0x390] sm:$0xff]
        %v2647 = vld [vmem:[%s2531 + $0x398] sm:$0xff]
        %v2648 = vld [vmem:[%s2531 + $0x3a0] sm:$0xff]
        %v2649 = vld [vmem:[%s2531 + $0x3a8] sm:$0xff]
        %v2650 = vld [vmem:[%s2531 + $0x3b0] sm:$0xff]
        %v2651 = vld [vmem:[%s2531 + $0x3b8] sm:$0xff]
        %v2652 = vld [vmem:[%s2531 + $0x3c0] sm:$0xff]
        %v2653 = vld [vmem:[%s2531 + $0x3c8] sm:$0xff]
        %v2654 = vld [vmem:[%s2531 + $0x3d0] sm:$0xff]
        %v2655 = vld [vmem:[%s2531 + $0x3d8] sm:$0xff]
        %v2656 = vld [vmem:[%s2531 + $0x3e0] sm:$0xff]
        %v2657 = vld [vmem:[%s2531 + $0x3e8] sm:$0xff]
        %v2658 = vld [vmem:[%s2531 + $0x3f0] sm:$0xff]
        %v2659 = vld [vmem:[%s2531 + $0x3f8] sm:$0xff]
        %2660 = vmatprep.subr.mxu0 %v2533
        %2661 = vmatpush1.msra.mxu0 %v2532
        %2662 = vmatprep.subr.mxu0 %v2537
        %2663 = vmatpush1.msra.mxu0 %v2536
        %2664 = vmatprep.subr.mxu0 %v2541
        %2665 = vmatpush1.msra.mxu0 %v2540
        %2666 = vmatprep.subr.mxu0 %v2545
        %2667 = vmatpush1.msra.mxu0 %v2544
        %2668 = vmatprep.subr.mxu0 %v2549
        %2669 = vmatpush1.msra.mxu0 %v2548
        %2670 = vmatprep.subr.mxu0 %v2553
        %2671 = vmatpush1.msra.mxu0 %v2552
        %2672 = vmatprep.subr.mxu0 %v2557
        %2673 = vmatpush1.msra.mxu0 %v2556
        %2674 = vmatprep.subr.mxu0 %v2561
        %2675 = vmatpush1.msra.mxu0 %v2560
        %2676 = vmatprep.subr.mxu0 %v2565
        %2677 = vmatpush1.msra.mxu0 %v2564
        %2678 = vmatprep.subr.mxu0 %v2569
        %2679 = vmatpush1.msra.mxu0 %v2568
        %2680 = vmatprep.subr.mxu0 %v2573
        %2681 = vmatpush1.msra.mxu0 %v2572
        %2682 = vmatprep.subr.mxu0 %v2577
        %2683 = vmatpush1.msra.mxu0 %v2576
        %2684 = vmatprep.subr.mxu0 %v2581
        %2685 = vmatpush1.msra.mxu0 %v2580
        %2686 = vmatprep.subr.mxu0 %v2585
        %2687 = vmatpush1.msra.mxu0 %v2584
        %2688 = vmatprep.subr.mxu0 %v2589
        %2689 = vmatpush1.msra.mxu0 %v2588
        %2690 = vmatprep.subr.mxu0 %v2593
        %2691 = vmatpush1.msra.mxu0 %v2592
        %2692 = vmatprep.subr.mxu0 %v2597
        %2693 = vmatpush1.msra.mxu0 %v2596
        %2694 = vmatprep.subr.mxu0 %v2601
        %2695 = vmatpush1.msra.mxu0 %v2600
        %2696 = vmatprep.subr.mxu0 %v2605
        %2697 = vmatpush1.msra.mxu0 %v2604
        %2698 = vmatprep.subr.mxu0 %v2609
        %2699 = vmatpush1.msra.mxu0 %v2608
        %2700 = vmatprep.subr.mxu0 %v2613
        %2701 = vmatpush1.msra.mxu0 %v2612
        %2702 = vmatprep.subr.mxu0 %v2617
        %2703 = vmatpush1.msra.mxu0 %v2616
        %2704 = vmatprep.subr.mxu0 %v2621
        %2705 = vmatpush1.msra.mxu0 %v2620
        %2706 = vmatprep.subr.mxu0 %v2625
        %2707 = vmatpush1.msra.mxu0 %v2624
        %2708 = vmatprep.subr.mxu0 %v2629
        %2709 = vmatpush1.msra.mxu0 %v2628
        %2710 = vmatprep.subr.mxu0 %v2633
        %2711 = vmatpush1.msra.mxu0 %v2632
        %2712 = vmatprep.subr.mxu0 %v2637
        %2713 = vmatpush1.msra.mxu0 %v2636
        %2714 = vmatprep.subr.mxu0 %v2641
        %2715 = vmatpush1.msra.mxu0 %v2640
        %2716 = vmatprep.subr.mxu0 %v2645
        %2717 = vmatpush1.msra.mxu0 %v2644
        %2718 = vmatprep.subr.mxu0 %v2649
        %2719 = vmatpush1.msra.mxu0 %v2648
        %2720 = vmatprep.subr.mxu0 %v2653
        %2721 = vmatpush1.msra.mxu0 %v2652
        %2722 = vmatprep.subr.mxu0 %v2657
        %2723 = vmatpush1.msra.mxu0 %v2656
        %2724 = vmatprep.mubr.f32.mxu0 %v1915
        %2725 = vmatmul.mubr.f32.gmra.mrb[0].mxu0 %v1908
        %v2726 = vpop.f32.mrb[0].mxu0
        %v2727 = vadd.f32 0.0, %v2726
        %v2728 = vpop.f32.mrb[0].mxu0
        %v2729 = vadd.f32 0.0, %v2728
        %2730 = vmatprep.mubr.f32.mxu0 %v1933
        %2731 = vmatmul.mubr.f32.gmra.mrb[0].mxu0 %v1932
        %v2732 = vpop.f32.mrb[0].mxu0
        %v2733 = vadd.f32 0.0, %v2732
        %v2734 = vpop.f32.mrb[0].mxu0
        %v2735 = vadd.f32 0.0, %v2734
        %2736 = vdwg.mxu0
        %2737 = vmatprep.subr.mxu0 %v2535
        %2738 = vmatpush1.msra.mxu0 %v2534
        %2739 = vmatprep.subr.mxu0 %v2539
        %2740 = vmatpush1.msra.mxu0 %v2538
        %2741 = vmatprep.subr.mxu0 %v2543
        %2742 = vmatpush1.msra.mxu0 %v2542
        %2743 = vmatprep.subr.mxu0 %v2547
        %2744 = vmatpush1.msra.mxu0 %v2546
        %2745 = vmatprep.subr.mxu0 %v2551
        %2746 = vmatpush1.msra.mxu0 %v2550
        %2747 = vmatprep.subr.mxu0 %v2555
        %2748 = vmatpush1.msra.mxu0 %v2554
        %2749 = vmatprep.subr.mxu0 %v2559
        %2750 = vmatpush1.msra.mxu0 %v2558
        %2751 = vmatprep.subr.mxu0 %v2563
        %2752 = vmatpush1.msra.mxu0 %v2562
        %2753 = vmatprep.subr.mxu0 %v2567
        %2754 = vmatpush1.msra.mxu0 %v2566
        %2755 = vmatprep.subr.mxu0 %v2571
        %2756 = vmatpush1.msra.mxu0 %v2570
        %2757 = vmatprep.subr.mxu0 %v2575
        %2758 = vmatpush1.msra.mxu0 %v2574
        %2759 = vmatprep.subr.mxu0 %v2579
        %2760 = vmatpush1.msra.mxu0 %v2578
        %2761 = vmatprep.subr.mxu0 %v2583
        %2762 = vmatpush1.msra.mxu0 %v2582
        %2763 = vmatprep.subr.mxu0 %v2587
        %2764 = vmatpush1.msra.mxu0 %v2586
        %2765 = vmatprep.subr.mxu0 %v2591
        %2766 = vmatpush1.msra.mxu0 %v2590
        %2767 = vmatprep.subr.mxu0 %v2595
        %2768 = vmatpush1.msra.mxu0 %v2594
        %2769 = vmatprep.subr.mxu0 %v2599
        %2770 = vmatpush1.msra.mxu0 %v2598
        %2771 = vmatprep.subr.mxu0 %v2603
        %2772 = vmatpush1.msra.mxu0 %v2602
        %2773 = vmatprep.subr.mxu0 %v2607
        %2774 = vmatpush1.msra.mxu0 %v2606
        %2775 = vmatprep.subr.mxu0 %v2611
        %2776 = vmatpush1.msra.mxu0 %v2610
        %2777 = vmatprep.subr.mxu0 %v2615
        %2778 = vmatpush1.msra.mxu0 %v2614
        %2779 = vmatprep.subr.mxu0 %v2619
        %2780 = vmatpush1.msra.mxu0 %v2618
        %2781 = vmatprep.subr.mxu0 %v2623
        %2782 = vmatpush1.msra.mxu0 %v2622
        %2783 = vmatprep.subr.mxu0 %v2627
        %2784 = vmatpush1.msra.mxu0 %v2626
        %2785 = vmatprep.subr.mxu0 %v2631
        %2786 = vmatpush1.msra.mxu0 %v2630
        %2787 = vmatprep.subr.mxu0 %v2635
        %2788 = vmatpush1.msra.mxu0 %v2634
        %2789 = vmatprep.subr.mxu0 %v2639
        %2790 = vmatpush1.msra.mxu0 %v2638
        %2791 = vmatprep.subr.mxu0 %v2643
        %2792 = vmatpush1.msra.mxu0 %v2642
        %2793 = vmatprep.subr.mxu0 %v2647
        %2794 = vmatpush1.msra.mxu0 %v2646
        %2795 = vmatprep.subr.mxu0 %v2651
        %2796 = vmatpush1.msra.mxu0 %v2650
        %2797 = vmatprep.subr.mxu0 %v2655
        %2798 = vmatpush1.msra.mxu0 %v2654
        %2799 = vmatprep.subr.mxu0 %v2659
        %2800 = vmatpush1.msra.mxu0 %v2658
        %2801 = vmatprep.mubr.f32.mxu0 %v1915
        %2802 = vmatmul.mubr.f32.gmra.mrb[0].mxu0 %v1908
        %v2803 = vpop.f32.mrb[0].mxu0
        %v2804 = vadd.f32 0.0, %v2803
        %v2805 = vpop.f32.mrb[0].mxu0
        %v2806 = vadd.f32 0.0, %v2805
        %2807 = vmatprep.mubr.f32.mxu0 %v1933
        %2808 = vmatmul.mubr.f32.gmra.mrb[0].mxu0 %v1932
        %v2809 = vpop.f32.mrb[0].mxu0
        %v2810 = vadd.f32 0.0, %v2809
        %v2811 = vpop.f32.mrb[0].mxu0
        %v2812 = vadd.f32 0.0, %v2811
        %2813 = vdwg.mxu0
        %v2814 = vadd.f32 %v2444, %v2727
        %v2815 = vadd.f32 %v2446, %v2729
        %v2816 = vadd.f32 %v2521, %v2804
        %v2817 = vadd.f32 %v2523, %v2806
        %v2818 = vadd.f32 %v2450, %v2733
        %v2819 = vadd.f32 %v2452, %v2735
        %v2820 = vadd.f32 %v2527, %v2810
        %v2821 = vadd.f32 %v2529, %v2812
        %v2822 = vld [vmem:[%s4] sm:$0xf]
        %v2824 = vlaneseq
        %v2825 = vshrl.u32 %v2824, 7
        %v2826 = vsub.s32 0, %v2825
        %v2827 = vrot.slane %v2822, %v2826
        %v2828 = vlaneseq
        %v2829 = vshrl.u32 %v2828, 7
        %v2830 = vsub.s32 1, %v2829
        %v2831 = vrot.slane %v2822, %v2830
        %v2832 = vlaneseq
        %v2833 = vshrl.u32 %v2832, 7
        %v2834 = vsub.s32 2, %v2833
        %v2835 = vrot.slane %v2822, %v2834
        %v2836 = vlaneseq
        %v2837 = vshrl.u32 %v2836, 7
        %v2838 = vsub.s32 3, %v2837
        %v2839 = vrot.slane %v2822, %v2838
        %v2844 = vadd.f32 %v2814, %v2827
        %v2845 = vadd.f32 %v2815, %v2831
        %v2846 = vadd.f32 %v2816, %v2835
        %v2847 = vadd.f32 %v2817, %v2839
        %v2848 = vadd.f32 %v2818, %v2827
        %v2849 = vadd.f32 %v2819, %v2831
        %v2850 = vadd.f32 %v2820, %v2835
        %v2851 = vadd.f32 %v2821, %v2839
        %v2852 = vmax.f32 %v2844, 0.0
        %v2853 = vmax.f32 %v2845, 0.0
        %v2854 = vmax.f32 %v2846, 0.0
        %v2855 = vmax.f32 %v2847, 0.0
        %v2856 = vmax.f32 %v2848, 0.0
        %v2857 = vmax.f32 %v2849, 0.0
        %v2858 = vmax.f32 %v2850, 0.0
        %v2859 = vmax.f32 %v2851, 0.0
        %2860 = vst [vmem:[%s528] sm:$0xff] %v2852
        %2861 = vst [vmem:[%s528 + $0x8] sm:$0xff] %v2853
        %2862 = vst [vmem:[%s528 + $0x10] sm:$0xff] %v2854
        %2863 = vst [vmem:[%s528 + $0x18] sm:$0xff] %v2855
        %2864 = vst [vmem:[%s528 + $0x20] sm:$0xff] %v2856
        %2865 = vst [vmem:[%s528 + $0x28] sm:$0xff] %v2857
        %2866 = vst [vmem:[%s528 + $0x30] sm:$0xff] %v2858
        %2867 = vst [vmem:[%s528 + $0x38] sm:$0xff] %v2859
        %v2868 = vmax.f32 %v2852, %v2854
        %v2869 = vmax.f32 %v2853, %v2855
        %v2870 = vmax.f32 %v2856, %v2858
        %v2871 = vmax.f32 %v2857, %v2859
        %v2876 = vcombine.low %v2868, %v2869
        %v2877 = vcombine.high %v2868, %v2869
        %v2879 = vunpack.c.l.s4 1983009808
        %v2880 = vunpack.c.0.s8 %v2879
        %v2881 = vlaneseq
        %v2882 = vshrl.u32 %v2881, 7
        %v2883 = vsub.s32 %v2880, %v2882
        %v2884 = vrot.slane %v2876, %v2883
        %v2886 = vunpack.c.l.s4 1983009808
        %v2887 = vunpack.c.0.s8 %v2886
        %v2888 = vlaneseq
        %v2889 = vshrl.u32 %v2888, 7
        %v2890 = vsub.s32 %v2887, %v2889
        %v2891 = vrot.slane %v2877, %v2890
        %v2892 = vcombine.high %v2884, %v2884
        %v2893 = vcombine.high %v2891, %v2891
        %v2894 = vcombine.low %v2870, %v2871
        %v2895 = vcombine.high %v2870, %v2871
        %v2897 = vunpack.c.l.s4 1983009808
        %v2898 = vunpack.c.0.s8 %v2897
        %v2899 = vlaneseq
        %v2900 = vshrl.u32 %v2899, 7
        %v2901 = vsub.s32 %v2898, %v2900
        %v2902 = vrot.slane %v2894, %v2901
        %v2904 = vunpack.c.l.s4 1983009808
        %v2905 = vunpack.c.0.s8 %v2904
        %v2906 = vlaneseq
        %v2907 = vshrl.u32 %v2906, 7
        %v2908 = vsub.s32 %v2905, %v2907
        %v2909 = vrot.slane %v2895, %v2908
        %v2910 = vcombine.high %v2902, %v2902
        %v2911 = vcombine.high %v2909, %v2909
        %v2913 = vunpack.c.l.s4 1983009808
        %v2914 = vunpack.c.0.s8 %v2913
        %v2915 = vlaneseq
        %v2916 = vshrl.u32 %v2915, 7
        %v2917 = vsub.s32 %v2914, %v2916
        %v2918 = vrot.slane %v2884, %v2917
        %v2919 = vcombine.high %v2918, %v2918
        %v2921 = vunpack.c.l.s4 1983009808
        %v2922 = vunpack.c.0.s8 %v2921
        %v2923 = vlaneseq
        %v2924 = vshrl.u32 %v2923, 7
        %v2925 = vsub.s32 %v2922, %v2924
        %v2926 = vrot.slane %v2892, %v2925
        %v2927 = vcombine.high %v2926, %v2926
        %v2929 = vunpack.c.l.s4 1983009808
        %v2930 = vunpack.c.0.s8 %v2929
        %v2931 = vlaneseq
        %v2932 = vshrl.u32 %v2931, 7
        %v2933 = vsub.s32 %v2930, %v2932
        %v2934 = vrot.slane %v2891, %v2933
        %v2935 = vcombine.high %v2934, %v2934
        %v2937 = vunpack.c.l.s4 1983009808
        %v2938 = vunpack.c.0.s8 %v2937
        %v2939 = vlaneseq
        %v2940 = vshrl.u32 %v2939, 7
        %v2941 = vsub.s32 %v2938, %v2940
        %v2942 = vrot.slane %v2893, %v2941
        %v2943 = vcombine.high %v2942, %v2942
        %v2945 = vunpack.c.l.s4 1983009808
        %v2946 = vunpack.c.0.s8 %v2945
        %v2947 = vlaneseq
        %v2948 = vshrl.u32 %v2947, 7
        %v2949 = vsub.s32 %v2946, %v2948
        %v2950 = vrot.slane %v2902, %v2949
        %v2951 = vcombine.high %v2950, %v2950
        %v2953 = vunpack.c.l.s4 1983009808
        %v2954 = vunpack.c.0.s8 %v2953
        %v2955 = vlaneseq
        %v2956 = vshrl.u32 %v2955, 7
        %v2957 = vsub.s32 %v2954, %v2956
        %v2958 = vrot.slane %v2910, %v2957
        %v2959 = vcombine.high %v2958, %v2958
        %v2961 = vunpack.c.l.s4 1983009808
        %v2962 = vunpack.c.0.s8 %v2961
        %v2963 = vlaneseq
        %v2964 = vshrl.u32 %v2963, 7
        %v2965 = vsub.s32 %v2962, %v2964
        %v2966 = vrot.slane %v2909, %v2965
        %v2967 = vcombine.high %v2966, %v2966
        %v2969 = vunpack.c.l.s4 1983009808
        %v2970 = vunpack.c.0.s8 %v2969
        %v2971 = vlaneseq
        %v2972 = vshrl.u32 %v2971, 7
        %v2973 = vsub.s32 %v2970, %v2972
        %v2974 = vrot.slane %v2911, %v2973
        %v2975 = vcombine.high %v2974, %v2974
        %v2992 = vsel %vm1606, %v2918, -inf
        %v2993 = vrot.slane %v2992, 4
        %v2994 = vmax.f32 %v2992, %v2993
        %v2995 = vrot.slane %v2994, 2
        %v2996 = vmax.f32 %v2994, %v2995
        %v2997 = vrot.slane %v2996, 1
        %v2998 = vmax.f32 %v2996, %v2997
        %v2999 = vsel %vm1606, %v2919, -inf
        %v3000 = vrot.slane %v2999, 4
        %v3001 = vmax.f32 %v2999, %v3000
        %v3002 = vrot.slane %v3001, 2
        %v3003 = vmax.f32 %v3001, %v3002
        %v3004 = vrot.slane %v3003, 1
        %v3005 = vmax.f32 %v3003, %v3004
        %v3006 = vsel %vm1606, %v2926, -inf
        %v3007 = vrot.slane %v3006, 4
        %v3008 = vmax.f32 %v3006, %v3007
        %v3009 = vrot.slane %v3008, 2
        %v3010 = vmax.f32 %v3008, %v3009
        %v3011 = vrot.slane %v3010, 1
        %v3012 = vmax.f32 %v3010, %v3011
        %v3013 = vsel %vm1606, %v2927, -inf
        %v3014 = vrot.slane %v3013, 4
        %v3015 = vmax.f32 %v3013, %v3014
        %v3016 = vrot.slane %v3015, 2
        %v3017 = vmax.f32 %v3015, %v3016
        %v3018 = vrot.slane %v3017, 1
        %v3019 = vmax.f32 %v3017, %v3018
        %v3020 = vsel %vm1606, %v2934, -inf
        %v3021 = vrot.slane %v3020, 4
        %v3022 = vmax.f32 %v3020, %v3021
        %v3023 = vrot.slane %v3022, 2
        %v3024 = vmax.f32 %v3022, %v3023
        %v3025 = vrot.slane %v3024, 1
        %v3026 = vmax.f32 %v3024, %v3025
        %v3027 = vsel %vm1606, %v2935, -inf
        %v3028 = vrot.slane %v3027, 4
        %v3029 = vmax.f32 %v3027, %v3028
        %v3030 = vrot.slane %v3029, 2
        %v3031 = vmax.f32 %v3029, %v3030
        %v3032 = vrot.slane %v3031, 1
        %v3033 = vmax.f32 %v3031, %v3032
        %v3034 = vsel %vm1606, %v2942, -inf
        %v3035 = vrot.slane %v3034, 4
        %v3036 = vmax.f32 %v3034, %v3035
        %v3037 = vrot.slane %v3036, 2
        %v3038 = vmax.f32 %v3036, %v3037
        %v3039 = vrot.slane %v3038, 1
        %v3040 = vmax.f32 %v3038, %v3039
        %v3041 = vsel %vm1606, %v2943, -inf
        %v3042 = vrot.slane %v3041, 4
        %v3043 = vmax.f32 %v3041, %v3042
        %v3044 = vrot.slane %v3043, 2
        %v3045 = vmax.f32 %v3043, %v3044
        %v3046 = vrot.slane %v3045, 1
        %v3047 = vmax.f32 %v3045, %v3046
        %v3048 = vsel %vm1606, %v2950, -inf
        %v3049 = vrot.slane %v3048, 4
        %v3050 = vmax.f32 %v3048, %v3049
        %v3051 = vrot.slane %v3050, 2
        %v3052 = vmax.f32 %v3050, %v3051
        %v3053 = vrot.slane %v3052, 1
        %v3054 = vmax.f32 %v3052, %v3053
        %v3055 = vsel %vm1606, %v2951, -inf
        %v3056 = vrot.slane %v3055, 4
        %v3057 = vmax.f32 %v3055, %v3056
        %v3058 = vrot.slane %v3057, 2
        %v3059 = vmax.f32 %v3057, %v3058
        %v3060 = vrot.slane %v3059, 1
        %v3061 = vmax.f32 %v3059, %v3060
        %v3062 = vsel %vm1606, %v2958, -inf
        %v3063 = vrot.slane %v3062, 4
        %v3064 = vmax.f32 %v3062, %v3063
        %v3065 = vrot.slane %v3064, 2
        %v3066 = vmax.f32 %v3064, %v3065
        %v3067 = vrot.slane %v3066, 1
        %v3068 = vmax.f32 %v3066, %v3067
        %v3069 = vsel %vm1606, %v2959, -inf
        %v3070 = vrot.slane %v3069, 4
        %v3071 = vmax.f32 %v3069, %v3070
        %v3072 = vrot.slane %v3071, 2
        %v3073 = vmax.f32 %v3071, %v3072
        %v3074 = vrot.slane %v3073, 1
        %v3075 = vmax.f32 %v3073, %v3074
        %v3076 = vsel %vm1606, %v2966, -inf
        %v3077 = vrot.slane %v3076, 4
        %v3078 = vmax.f32 %v3076, %v3077
        %v3079 = vrot.slane %v3078, 2
        %v3080 = vmax.f32 %v3078, %v3079
        %v3081 = vrot.slane %v3080, 1
        %v3082 = vmax.f32 %v3080, %v3081
        %v3083 = vsel %vm1606, %v2967, -inf
        %v3084 = vrot.slane %v3083, 4
        %v3085 = vmax.f32 %v3083, %v3084
        %v3086 = vrot.slane %v3085, 2
        %v3087 = vmax.f32 %v3085, %v3086
        %v3088 = vrot.slane %v3087, 1
        %v3089 = vmax.f32 %v3087, %v3088
        %v3090 = vsel %vm1606, %v2974, -inf
        %v3091 = vrot.slane %v3090, 4
        %v3092 = vmax.f32 %v3090, %v3091
        %v3093 = vrot.slane %v3092, 2
        %v3094 = vmax.f32 %v3092, %v3093
        %v3095 = vrot.slane %v3094, 1
        %v3096 = vmax.f32 %v3094, %v3095
        %v3097 = vsel %vm1606, %v2975, -inf
        %v3098 = vrot.slane %v3097, 4
        %v3099 = vmax.f32 %v3097, %v3098
        %v3100 = vrot.slane %v3099, 2
        %v3101 = vmax.f32 %v3099, %v3100
        %v3102 = vrot.slane %v3101, 1
        %v3103 = vmax.f32 %v3101, %v3102
        %v3118 = vsel %vm1861, %v3012, %v2998
        %v3119 = vsel %vm1863, %v3026, %v3118
        %v3120 = vsel %vm1865, %v3040, %v3119
        %v3121 = vsel %vm1867, %v3054, %v3120
        %v3122 = vsel %vm1869, %v3068, %v3121
        %v3123 = vsel %vm1871, %v3082, %v3122
        %v3124 = vsel %vm1861, %v3019, %v3005
        %v3125 = vsel %vm1863, %v3033, %v3124
        %v3126 = vsel %vm1865, %v3047, %v3125
        %v3127 = vsel %vm1867, %v3061, %v3126
        %v3128 = vsel %vm1869, %v3075, %v3127
        %v3129 = vsel %vm1871, %v3089, %v3128
        %v3132 = vsel %vm545, 0.0, %v3123
        %v3133 = vsel %vm545, 0.0, %v3129
        %v3136 = vsel %vm1879, %v3026, %v3012
        %v3137 = vsel %vm1861, %v3040, %v3136
        %v3138 = vsel %vm1863, %v3054, %v3137
        %v3139 = vsel %vm1865, %v3068, %v3138
        %v3140 = vsel %vm1867, %v3082, %v3139
        %v3141 = vsel %vm1869, %v3096, %v3140
        %v3142 = vsel %vm1879, %v3033, %v3019
        %v3143 = vsel %vm1861, %v3047, %v3142
        %v3144 = vsel %vm1863, %v3061, %v3143
        %v3145 = vsel %vm1865, %v3075, %v3144
        %v3146 = vsel %vm1867, %v3089, %v3145
        %v3147 = vsel %vm1869, %v3103, %v3146
        %v3150 = vsel %vm555, %v3141, 0.0
        %v3151 = vsel %vm555, %v3147, 0.0
        %v3152 = vld [vmem:[%s5] sm:$0xff]
        %v3153 = vld [vmem:[%s5 + $0x8] sm:$0xff]
        %v3154 = vld [vmem:[%s5 + $0x10] sm:$0xff]
        %v3155 = vld [vmem:[%s5 + $0x18] sm:$0xff]
        %v3156 = vld [vmem:[%s5 + $0x20] sm:$0xff]
        %v3157 = vld [vmem:[%s5 + $0x28] sm:$0xff]
        %v3158 = vld [vmem:[%s5 + $0x30] sm:$0xff]
        %v3159 = vld [vmem:[%s5 + $0x38] sm:$0xff]
        %v3160 = vld [vmem:[%s5 + $0x40] sm:$0xff]
        %v3161 = vld [vmem:[%s5 + $0x48] sm:$0xff]
        %v3162 = vld [vmem:[%s5 + $0x50] sm:$0xff]
        %v3163 = vld [vmem:[%s5 + $0x58] sm:$0xff]
        %v3164 = vld [vmem:[%s5 + $0x60] sm:$0xff]
        %v3165 = vld [vmem:[%s5 + $0x68] sm:$0xff]
        %v3166 = vld [vmem:[%s5 + $0x70] sm:$0xff]
        %v3167 = vld [vmem:[%s5 + $0x78] sm:$0xff]
        %v3168 = vld [vmem:[%s5 + $0x80] sm:$0xff]
        %v3169 = vld [vmem:[%s5 + $0x88] sm:$0xff]
        %v3170 = vld [vmem:[%s5 + $0x90] sm:$0xff]
        %v3171 = vld [vmem:[%s5 + $0x98] sm:$0xff]
        %v3172 = vld [vmem:[%s5 + $0xa0] sm:$0xff]
        %v3173 = vld [vmem:[%s5 + $0xa8] sm:$0xff]
        %v3174 = vld [vmem:[%s5 + $0xb0] sm:$0xff]
        %v3175 = vld [vmem:[%s5 + $0xb8] sm:$0xff]
        %v3176 = vld [vmem:[%s5 + $0xc0] sm:$0xff]
        %v3177 = vld [vmem:[%s5 + $0xc8] sm:$0xff]
        %v3178 = vld [vmem:[%s5 + $0xd0] sm:$0xff]
        %v3179 = vld [vmem:[%s5 + $0xd8] sm:$0xff]
        %v3180 = vld [vmem:[%s5 + $0xe0] sm:$0xff]
        %v3181 = vld [vmem:[%s5 + $0xe8] sm:$0xff]
        %v3182 = vld [vmem:[%s5 + $0xf0] sm:$0xff]
        %v3183 = vld [vmem:[%s5 + $0xf8] sm:$0xff]
        %v3184 = vld [vmem:[%s5 + $0x100] sm:$0xff]
        %v3185 = vld [vmem:[%s5 + $0x108] sm:$0xff]
        %v3186 = vld [vmem:[%s5 + $0x110] sm:$0xff]
        %v3187 = vld [vmem:[%s5 + $0x118] sm:$0xff]
        %v3188 = vld [vmem:[%s5 + $0x120] sm:$0xff]
        %v3189 = vld [vmem:[%s5 + $0x128] sm:$0xff]
        %v3190 = vld [vmem:[%s5 + $0x130] sm:$0xff]
        %v3191 = vld [vmem:[%s5 + $0x138] sm:$0xff]
        %v3192 = vld [vmem:[%s5 + $0x140] sm:$0xff]
        %v3193 = vld [vmem:[%s5 + $0x148] sm:$0xff]
        %v3194 = vld [vmem:[%s5 + $0x150] sm:$0xff]
        %v3195 = vld [vmem:[%s5 + $0x158] sm:$0xff]
        %v3196 = vld [vmem:[%s5 + $0x160] sm:$0xff]
        %v3197 = vld [vmem:[%s5 + $0x168] sm:$0xff]
        %v3198 = vld [vmem:[%s5 + $0x170] sm:$0xff]
        %v3199 = vld [vmem:[%s5 + $0x178] sm:$0xff]
        %v3200 = vld [vmem:[%s5 + $0x180] sm:$0xff]
        %v3201 = vld [vmem:[%s5 + $0x188] sm:$0xff]
        %v3202 = vld [vmem:[%s5 + $0x190] sm:$0xff]
        %v3203 = vld [vmem:[%s5 + $0x198] sm:$0xff]
        %v3204 = vld [vmem:[%s5 + $0x1a0] sm:$0xff]
        %v3205 = vld [vmem:[%s5 + $0x1a8] sm:$0xff]
        %v3206 = vld [vmem:[%s5 + $0x1b0] sm:$0xff]
        %v3207 = vld [vmem:[%s5 + $0x1b8] sm:$0xff]
        %v3208 = vld [vmem:[%s5 + $0x1c0] sm:$0xff]
        %v3209 = vld [vmem:[%s5 + $0x1c8] sm:$0xff]
        %v3210 = vld [vmem:[%s5 + $0x1d0] sm:$0xff]
        %v3211 = vld [vmem:[%s5 + $0x1d8] sm:$0xff]
        %v3212 = vld [vmem:[%s5 + $0x1e0] sm:$0xff]
        %v3213 = vld [vmem:[%s5 + $0x1e8] sm:$0xff]
        %v3214 = vld [vmem:[%s5 + $0x1f0] sm:$0xff]
        %v3215 = vld [vmem:[%s5 + $0x1f8] sm:$0xff]
        %v3216 = vld [vmem:[%s5 + $0x200] sm:$0xff]
        %v3217 = vld [vmem:[%s5 + $0x208] sm:$0xff]
        %v3218 = vld [vmem:[%s5 + $0x210] sm:$0xff]
        %v3219 = vld [vmem:[%s5 + $0x218] sm:$0xff]
        %v3220 = vld [vmem:[%s5 + $0x220] sm:$0xff]
        %v3221 = vld [vmem:[%s5 + $0x228] sm:$0xff]
        %v3222 = vld [vmem:[%s5 + $0x230] sm:$0xff]
        %v3223 = vld [vmem:[%s5 + $0x238] sm:$0xff]
        %v3224 = vld [vmem:[%s5 + $0x240] sm:$0xff]
        %v3225 = vld [vmem:[%s5 + $0x248] sm:$0xff]
        %v3226 = vld [vmem:[%s5 + $0x250] sm:$0xff]
        %v3227 = vld [vmem:[%s5 + $0x258] sm:$0xff]
        %v3228 = vld [vmem:[%s5 + $0x260] sm:$0xff]
        %v3229 = vld [vmem:[%s5 + $0x268] sm:$0xff]
        %v3230 = vld [vmem:[%s5 + $0x270] sm:$0xff]
        %v3231 = vld [vmem:[%s5 + $0x278] sm:$0xff]
        %v3232 = vld [vmem:[%s5 + $0x280] sm:$0xff]
        %v3233 = vld [vmem:[%s5 + $0x288] sm:$0xff]
        %v3234 = vld [vmem:[%s5 + $0x290] sm:$0xff]
        %v3235 = vld [vmem:[%s5 + $0x298] sm:$0xff]
        %v3236 = vld [vmem:[%s5 + $0x2a0] sm:$0xff]
        %v3237 = vld [vmem:[%s5 + $0x2a8] sm:$0xff]
        %v3238 = vld [vmem:[%s5 + $0x2b0] sm:$0xff]
        %v3239 = vld [vmem:[%s5 + $0x2b8] sm:$0xff]
        %v3240 = vld [vmem:[%s5 + $0x2c0] sm:$0xff]
        %v3241 = vld [vmem:[%s5 + $0x2c8] sm:$0xff]
        %v3242 = vld [vmem:[%s5 + $0x2d0] sm:$0xff]
        %v3243 = vld [vmem:[%s5 + $0x2d8] sm:$0xff]
        %v3244 = vld [vmem:[%s5 + $0x2e0] sm:$0xff]
        %v3245 = vld [vmem:[%s5 + $0x2e8] sm:$0xff]
        %v3246 = vld [vmem:[%s5 + $0x2f0] sm:$0xff]
        %v3247 = vld [vmem:[%s5 + $0x2f8] sm:$0xff]
        %v3248 = vld [vmem:[%s5 + $0x300] sm:$0xff]
        %v3249 = vld [vmem:[%s5 + $0x308] sm:$0xff]
        %v3250 = vld [vmem:[%s5 + $0x310] sm:$0xff]
        %v3251 = vld [vmem:[%s5 + $0x318] sm:$0xff]
        %v3252 = vld [vmem:[%s5 + $0x320] sm:$0xff]
        %v3253 = vld [vmem:[%s5 + $0x328] sm:$0xff]
        %v3254 = vld [vmem:[%s5 + $0x330] sm:$0xff]
        %v3255 = vld [vmem:[%s5 + $0x338] sm:$0xff]
        %v3256 = vld [vmem:[%s5 + $0x340] sm:$0xff]
        %v3257 = vld [vmem:[%s5 + $0x348] sm:$0xff]
        %v3258 = vld [vmem:[%s5 + $0x350] sm:$0xff]
        %v3259 = vld [vmem:[%s5 + $0x358] sm:$0xff]
        %v3260 = vld [vmem:[%s5 + $0x360] sm:$0xff]
        %v3261 = vld [vmem:[%s5 + $0x368] sm:$0xff]
        %v3262 = vld [vmem:[%s5 + $0x370] sm:$0xff]
        %v3263 = vld [vmem:[%s5 + $0x378] sm:$0xff]
        %v3264 = vld [vmem:[%s5 + $0x380] sm:$0xff]
        %v3265 = vld [vmem:[%s5 + $0x388] sm:$0xff]
        %v3266 = vld [vmem:[%s5 + $0x390] sm:$0xff]
        %v3267 = vld [vmem:[%s5 + $0x398] sm:$0xff]
        %v3268 = vld [vmem:[%s5 + $0x3a0] sm:$0xff]
        %v3269 = vld [vmem:[%s5 + $0x3a8] sm:$0xff]
        %v3270 = vld [vmem:[%s5 + $0x3b0] sm:$0xff]
        %v3271 = vld [vmem:[%s5 + $0x3b8] sm:$0xff]
        %v3272 = vld [vmem:[%s5 + $0x3c0] sm:$0xff]
        %v3273 = vld [vmem:[%s5 + $0x3c8] sm:$0xff]
        %v3274 = vld [vmem:[%s5 + $0x3d0] sm:$0xff]
        %v3275 = vld [vmem:[%s5 + $0x3d8] sm:$0xff]
        %v3276 = vld [vmem:[%s5 + $0x3e0] sm:$0xff]
        %v3277 = vld [vmem:[%s5 + $0x3e8] sm:$0xff]
        %v3278 = vld [vmem:[%s5 + $0x3f0] sm:$0xff]
        %v3279 = vld [vmem:[%s5 + $0x3f8] sm:$0xff]
        %s3280 = scalar_lea.vmem %s5, 1024
        %v3281 = vld [vmem:[%s3280] sm:$0xff]
        %v3282 = vld [vmem:[%s3280 + $0x8] sm:$0xff]
        %v3283 = vld [vmem:[%s3280 + $0x10] sm:$0xff]
        %v3284 = vld [vmem:[%s3280 + $0x18] sm:$0xff]
        %v3285 = vld [vmem:[%s3280 + $0x20] sm:$0xff]
        %v3286 = vld [vmem:[%s3280 + $0x28] sm:$0xff]
        %v3287 = vld [vmem:[%s3280 + $0x30] sm:$0xff]
        %v3288 = vld [vmem:[%s3280 + $0x38] sm:$0xff]
        %v3289 = vld [vmem:[%s3280 + $0x40] sm:$0xff]
        %v3290 = vld [vmem:[%s3280 + $0x48] sm:$0xff]
        %v3291 = vld [vmem:[%s3280 + $0x50] sm:$0xff]
        %v3292 = vld [vmem:[%s3280 + $0x58] sm:$0xff]
        %v3293 = vld [vmem:[%s3280 + $0x60] sm:$0xff]
        %v3294 = vld [vmem:[%s3280 + $0x68] sm:$0xff]
        %v3295 = vld [vmem:[%s3280 + $0x70] sm:$0xff]
        %v3296 = vld [vmem:[%s3280 + $0x78] sm:$0xff]
        %v3297 = vld [vmem:[%s3280 + $0x80] sm:$0xff]
        %v3298 = vld [vmem:[%s3280 + $0x88] sm:$0xff]
        %v3299 = vld [vmem:[%s3280 + $0x90] sm:$0xff]
        %v3300 = vld [vmem:[%s3280 + $0x98] sm:$0xff]
        %v3301 = vld [vmem:[%s3280 + $0xa0] sm:$0xff]
        %v3302 = vld [vmem:[%s3280 + $0xa8] sm:$0xff]
        %v3303 = vld [vmem:[%s3280 + $0xb0] sm:$0xff]
        %v3304 = vld [vmem:[%s3280 + $0xb8] sm:$0xff]
        %v3305 = vld [vmem:[%s3280 + $0xc0] sm:$0xff]
        %v3306 = vld [vmem:[%s3280 + $0xc8] sm:$0xff]
        %v3307 = vld [vmem:[%s3280 + $0xd0] sm:$0xff]
        %v3308 = vld [vmem:[%s3280 + $0xd8] sm:$0xff]
        %v3309 = vld [vmem:[%s3280 + $0xe0] sm:$0xff]
        %v3310 = vld [vmem:[%s3280 + $0xe8] sm:$0xff]
        %v3311 = vld [vmem:[%s3280 + $0xf0] sm:$0xff]
        %v3312 = vld [vmem:[%s3280 + $0xf8] sm:$0xff]
        %v3313 = vld [vmem:[%s3280 + $0x100] sm:$0xff]
        %v3314 = vld [vmem:[%s3280 + $0x108] sm:$0xff]
        %v3315 = vld [vmem:[%s3280 + $0x110] sm:$0xff]
        %v3316 = vld [vmem:[%s3280 + $0x118] sm:$0xff]
        %v3317 = vld [vmem:[%s3280 + $0x120] sm:$0xff]
        %v3318 = vld [vmem:[%s3280 + $0x128] sm:$0xff]
        %v3319 = vld [vmem:[%s3280 + $0x130] sm:$0xff]
        %v3320 = vld [vmem:[%s3280 + $0x138] sm:$0xff]
        %v3321 = vld [vmem:[%s3280 + $0x140] sm:$0xff]
        %v3322 = vld [vmem:[%s3280 + $0x148] sm:$0xff]
        %v3323 = vld [vmem:[%s3280 + $0x150] sm:$0xff]
        %v3324 = vld [vmem:[%s3280 + $0x158] sm:$0xff]
        %v3325 = vld [vmem:[%s3280 + $0x160] sm:$0xff]
        %v3326 = vld [vmem:[%s3280 + $0x168] sm:$0xff]
        %v3327 = vld [vmem:[%s3280 + $0x170] sm:$0xff]
        %v3328 = vld [vmem:[%s3280 + $0x178] sm:$0xff]
        %v3329 = vld [vmem:[%s3280 + $0x180] sm:$0xff]
        %v3330 = vld [vmem:[%s3280 + $0x188] sm:$0xff]
        %v3331 = vld [vmem:[%s3280 + $0x190] sm:$0xff]
        %v3332 = vld [vmem:[%s3280 + $0x198] sm:$0xff]
        %v3333 = vld [vmem:[%s3280 + $0x1a0] sm:$0xff]
        %v3334 = vld [vmem:[%s3280 + $0x1a8] sm:$0xff]
        %v3335 = vld [vmem:[%s3280 + $0x1b0] sm:$0xff]
        %v3336 = vld [vmem:[%s3280 + $0x1b8] sm:$0xff]
        %v3337 = vld [vmem:[%s3280 + $0x1c0] sm:$0xff]
        %v3338 = vld [vmem:[%s3280 + $0x1c8] sm:$0xff]
        %v3339 = vld [vmem:[%s3280 + $0x1d0] sm:$0xff]
        %v3340 = vld [vmem:[%s3280 + $0x1d8] sm:$0xff]
        %v3341 = vld [vmem:[%s3280 + $0x1e0] sm:$0xff]
        %v3342 = vld [vmem:[%s3280 + $0x1e8] sm:$0xff]
        %v3343 = vld [vmem:[%s3280 + $0x1f0] sm:$0xff]
        %v3344 = vld [vmem:[%s3280 + $0x1f8] sm:$0xff]
        %v3345 = vld [vmem:[%s3280 + $0x200] sm:$0xff]
        %v3346 = vld [vmem:[%s3280 + $0x208] sm:$0xff]
        %v3347 = vld [vmem:[%s3280 + $0x210] sm:$0xff]
        %v3348 = vld [vmem:[%s3280 + $0x218] sm:$0xff]
        %v3349 = vld [vmem:[%s3280 + $0x220] sm:$0xff]
        %v3350 = vld [vmem:[%s3280 + $0x228] sm:$0xff]
        %v3351 = vld [vmem:[%s3280 + $0x230] sm:$0xff]
        %v3352 = vld [vmem:[%s3280 + $0x238] sm:$0xff]
        %v3353 = vld [vmem:[%s3280 + $0x240] sm:$0xff]
        %v3354 = vld [vmem:[%s3280 + $0x248] sm:$0xff]
        %v3355 = vld [vmem:[%s3280 + $0x250] sm:$0xff]
        %v3356 = vld [vmem:[%s3280 + $0x258] sm:$0xff]
        %v3357 = vld [vmem:[%s3280 + $0x260] sm:$0xff]
        %v3358 = vld [vmem:[%s3280 + $0x268] sm:$0xff]
        %v3359 = vld [vmem:[%s3280 + $0x270] sm:$0xff]
        %v3360 = vld [vmem:[%s3280 + $0x278] sm:$0xff]
        %v3361 = vld [vmem:[%s3280 + $0x280] sm:$0xff]
        %v3362 = vld [vmem:[%s3280 + $0x288] sm:$0xff]
        %v3363 = vld [vmem:[%s3280 + $0x290] sm:$0xff]
        %v3364 = vld [vmem:[%s3280 + $0x298] sm:$0xff]
        %v3365 = vld [vmem:[%s3280 + $0x2a0] sm:$0xff]
        %v3366 = vld [vmem:[%s3280 + $0x2a8] sm:$0xff]
        %v3367 = vld [vmem:[%s3280 + $0x2b0] sm:$0xff]
        %v3368 = vld [vmem:[%s3280 + $0x2b8] sm:$0xff]
        %v3369 = vld [vmem:[%s3280 + $0x2c0] sm:$0xff]
        %v3370 = vld [vmem:[%s3280 + $0x2c8] sm:$0xff]
        %v3371 = vld [vmem:[%s3280 + $0x2d0] sm:$0xff]
        %v3372 = vld [vmem:[%s3280 + $0x2d8] sm:$0xff]
        %v3373 = vld [vmem:[%s3280 + $0x2e0] sm:$0xff]
        %v3374 = vld [vmem:[%s3280 + $0x2e8] sm:$0xff]
        %v3375 = vld [vmem:[%s3280 + $0x2f0] sm:$0xff]
        %v3376 = vld [vmem:[%s3280 + $0x2f8] sm:$0xff]
        %v3377 = vld [vmem:[%s3280 + $0x300] sm:$0xff]
        %v3378 = vld [vmem:[%s3280 + $0x308] sm:$0xff]
        %v3379 = vld [vmem:[%s3280 + $0x310] sm:$0xff]
        %v3380 = vld [vmem:[%s3280 + $0x318] sm:$0xff]
        %v3381 = vld [vmem:[%s3280 + $0x320] sm:$0xff]
        %v3382 = vld [vmem:[%s3280 + $0x328] sm:$0xff]
        %v3383 = vld [vmem:[%s3280 + $0x330] sm:$0xff]
        %v3384 = vld [vmem:[%s3280 + $0x338] sm:$0xff]
        %v3385 = vld [vmem:[%s3280 + $0x340] sm:$0xff]
        %v3386 = vld [vmem:[%s3280 + $0x348] sm:$0xff]
        %v3387 = vld [vmem:[%s3280 + $0x350] sm:$0xff]
        %v3388 = vld [vmem:[%s3280 + $0x358] sm:$0xff]
        %v3389 = vld [vmem:[%s3280 + $0x360] sm:$0xff]
        %v3390 = vld [vmem:[%s3280 + $0x368] sm:$0xff]
        %v3391 = vld [vmem:[%s3280 + $0x370] sm:$0xff]
        %v3392 = vld [vmem:[%s3280 + $0x378] sm:$0xff]
        %v3393 = vld [vmem:[%s3280 + $0x380] sm:$0xff]
        %v3394 = vld [vmem:[%s3280 + $0x388] sm:$0xff]
        %v3395 = vld [vmem:[%s3280 + $0x390] sm:$0xff]
        %v3396 = vld [vmem:[%s3280 + $0x398] sm:$0xff]
        %v3397 = vld [vmem:[%s3280 + $0x3a0] sm:$0xff]
        %v3398 = vld [vmem:[%s3280 + $0x3a8] sm:$0xff]
        %v3399 = vld [vmem:[%s3280 + $0x3b0] sm:$0xff]
        %v3400 = vld [vmem:[%s3280 + $0x3b8] sm:$0xff]
        %v3401 = vld [vmem:[%s3280 + $0x3c0] sm:$0xff]
        %v3402 = vld [vmem:[%s3280 + $0x3c8] sm:$0xff]
        %v3403 = vld [vmem:[%s3280 + $0x3d0] sm:$0xff]
        %v3404 = vld [vmem:[%s3280 + $0x3d8] sm:$0xff]
        %v3405 = vld [vmem:[%s3280 + $0x3e0] sm:$0xff]
        %v3406 = vld [vmem:[%s3280 + $0x3e8] sm:$0xff]
        %v3407 = vld [vmem:[%s3280 + $0x3f0] sm:$0xff]
        %v3408 = vld [vmem:[%s3280 + $0x3f8] sm:$0xff]
        %v3409 = vsel %vm1879, %v3012, %v2998
        %v3410 = vsel %vm1861, %v3026, %v3409
        %v3411 = vsel %vm1863, %v3040, %v3410
        %v3412 = vsel %vm1865, %v3054, %v3411
        %v3413 = vsel %vm1867, %v3068, %v3412
        %v3414 = vsel %vm1869, %v3082, %v3413
        %v3415 = vsel %vm1871, %v3096, %v3414
        %v3416 = vsel %vm1879, %v3019, %v3005
        %v3417 = vsel %vm1861, %v3033, %v3416
        %v3418 = vsel %vm1863, %v3047, %v3417
        %v3419 = vsel %vm1865, %v3061, %v3418
        %v3420 = vsel %vm1867, %v3075, %v3419
        %v3421 = vsel %vm1869, %v3089, %v3420
        %v3422 = vsel %vm1871, %v3103, %v3421
        %3425 = vmatprep.subr.mxu0 %v3282
        %3426 = vmatpush1.msra.mxu0 %v3281
        %3427 = vmatprep.subr.mxu0 %v3286
        %3428 = vmatpush1.msra.mxu0 %v3285
        %3429 = vmatprep.subr.mxu0 %v3290
        %3430 = vmatpush1.msra.mxu0 %v3289
        %3431 = vmatprep.subr.mxu0 %v3294
        %3432 = vmatpush1.msra.mxu0 %v3293
        %3433 = vmatprep.subr.mxu0 %v3298
        %3434 = vmatpush1.msra.mxu0 %v3297
        %3435 = vmatprep.subr.mxu0 %v3302
        %3436 = vmatpush1.msra.mxu0 %v3301
        %3437 = vmatprep.subr.mxu0 %v3306
        %3438 = vmatpush1.msra.mxu0 %v3305
        %3439 = vmatprep.subr.mxu0 %v3310
        %3440 = vmatpush1.msra.mxu0 %v3309
        %3441 = vmatprep.subr.mxu0 %v3314
        %3442 = vmatpush1.msra.mxu0 %v3313
        %3443 = vmatprep.subr.mxu0 %v3318
        %3444 = vmatpush1.msra.mxu0 %v3317
        %3445 = vmatprep.subr.mxu0 %v3322
        %3446 = vmatpush1.msra.mxu0 %v3321
        %3447 = vmatprep.subr.mxu0 %v3326
        %3448 = vmatpush1.msra.mxu0 %v3325
        %3449 = vmatprep.subr.mxu0 %v3330
        %3450 = vmatpush1.msra.mxu0 %v3329
        %3451 = vmatprep.subr.mxu0 %v3334
        %3452 = vmatpush1.msra.mxu0 %v3333
        %3453 = vmatprep.subr.mxu0 %v3338
        %3454 = vmatpush1.msra.mxu0 %v3337
        %3455 = vmatprep.subr.mxu0 %v3342
        %3456 = vmatpush1.msra.mxu0 %v3341
        %3457 = vmatprep.subr.mxu0 %v3346
        %3458 = vmatpush1.msra.mxu0 %v3345
        %3459 = vmatprep.subr.mxu0 %v3350
        %3460 = vmatpush1.msra.mxu0 %v3349
        %3461 = vmatprep.subr.mxu0 %v3354
        %3462 = vmatpush1.msra.mxu0 %v3353
        %3463 = vmatprep.subr.mxu0 %v3358
        %3464 = vmatpush1.msra.mxu0 %v3357
        %3465 = vmatprep.subr.mxu0 %v3362
        %3466 = vmatpush1.msra.mxu0 %v3361
        %3467 = vmatprep.subr.mxu0 %v3366
        %3468 = vmatpush1.msra.mxu0 %v3365
        %3469 = vmatprep.subr.mxu0 %v3370
        %3470 = vmatpush1.msra.mxu0 %v3369
        %3471 = vmatprep.subr.mxu0 %v3374
        %3472 = vmatpush1.msra.mxu0 %v3373
        %3473 = vmatprep.subr.mxu0 %v3378
        %3474 = vmatpush1.msra.mxu0 %v3377
        %3475 = vmatprep.subr.mxu0 %v3382
        %3476 = vmatpush1.msra.mxu0 %v3381
        %3477 = vmatprep.subr.mxu0 %v3386
        %3478 = vmatpush1.msra.mxu0 %v3385
        %3479 = vmatprep.subr.mxu0 %v3390
        %3480 = vmatpush1.msra.mxu0 %v3389
        %3481 = vmatprep.subr.mxu0 %v3394
        %3482 = vmatpush1.msra.mxu0 %v3393
        %3483 = vmatprep.subr.mxu0 %v3398
        %3484 = vmatpush1.msra.mxu0 %v3397
        %3485 = vmatprep.subr.mxu0 %v3402
        %3486 = vmatpush1.msra.mxu0 %v3401
        %3487 = vmatprep.subr.mxu0 %v3406
        %3488 = vmatpush1.msra.mxu0 %v3405
        %3489 = vmatprep.mubr.f32.mxu0 %v3422
        %3490 = vmatmul.mubr.f32.gmra.mrb[0].mxu0 %v3415
        %v3491 = vpop.f32.mrb[0].mxu0
        %v3492 = vadd.f32 0.0, %v3491
        %v3493 = vpop.f32.mrb[0].mxu0
        %v3494 = vadd.f32 0.0, %v3493
        %3495 = vdwg.mxu0
        %3496 = vmatprep.subr.mxu0 %v3284
        %3497 = vmatpush1.msra.mxu0 %v3283
        %3498 = vmatprep.subr.mxu0 %v3288
        %3499 = vmatpush1.msra.mxu0 %v3287
        %3500 = vmatprep.subr.mxu0 %v3292
        %3501 = vmatpush1.msra.mxu0 %v3291
        %3502 = vmatprep.subr.mxu0 %v3296
        %3503 = vmatpush1.msra.mxu0 %v3295
        %3504 = vmatprep.subr.mxu0 %v3300
        %3505 = vmatpush1.msra.mxu0 %v3299
        %3506 = vmatprep.subr.mxu0 %v3304
        %3507 = vmatpush1.msra.mxu0 %v3303
        %3508 = vmatprep.subr.mxu0 %v3308
        %3509 = vmatpush1.msra.mxu0 %v3307
        %3510 = vmatprep.subr.mxu0 %v3312
        %3511 = vmatpush1.msra.mxu0 %v3311
        %3512 = vmatprep.subr.mxu0 %v3316
        %3513 = vmatpush1.msra.mxu0 %v3315
        %3514 = vmatprep.subr.mxu0 %v3320
        %3515 = vmatpush1.msra.mxu0 %v3319
        %3516 = vmatprep.subr.mxu0 %v3324
        %3517 = vmatpush1.msra.mxu0 %v3323
        %3518 = vmatprep.subr.mxu0 %v3328
        %3519 = vmatpush1.msra.mxu0 %v3327
        %3520 = vmatprep.subr.mxu0 %v3332
        %3521 = vmatpush1.msra.mxu0 %v3331
        %3522 = vmatprep.subr.mxu0 %v3336
        %3523 = vmatpush1.msra.mxu0 %v3335
        %3524 = vmatprep.subr.mxu0 %v3340
        %3525 = vmatpush1.msra.mxu0 %v3339
        %3526 = vmatprep.subr.mxu0 %v3344
        %3527 = vmatpush1.msra.mxu0 %v3343
        %3528 = vmatprep.subr.mxu0 %v3348
        %3529 = vmatpush1.msra.mxu0 %v3347
        %3530 = vmatprep.subr.mxu0 %v3352
        %3531 = vmatpush1.msra.mxu0 %v3351
        %3532 = vmatprep.subr.mxu0 %v3356
        %3533 = vmatpush1.msra.mxu0 %v3355
        %3534 = vmatprep.subr.mxu0 %v3360
        %3535 = vmatpush1.msra.mxu0 %v3359
        %3536 = vmatprep.subr.mxu0 %v3364
        %3537 = vmatpush1.msra.mxu0 %v3363
        %3538 = vmatprep.subr.mxu0 %v3368
        %3539 = vmatpush1.msra.mxu0 %v3367
        %3540 = vmatprep.subr.mxu0 %v3372
        %3541 = vmatpush1.msra.mxu0 %v3371
        %3542 = vmatprep.subr.mxu0 %v3376
        %3543 = vmatpush1.msra.mxu0 %v3375
        %3544 = vmatprep.subr.mxu0 %v3380
        %3545 = vmatpush1.msra.mxu0 %v3379
        %3546 = vmatprep.subr.mxu0 %v3384
        %3547 = vmatpush1.msra.mxu0 %v3383
        %3548 = vmatprep.subr.mxu0 %v3388
        %3549 = vmatpush1.msra.mxu0 %v3387
        %3550 = vmatprep.subr.mxu0 %v3392
        %3551 = vmatpush1.msra.mxu0 %v3391
        %3552 = vmatprep.subr.mxu0 %v3396
        %3553 = vmatpush1.msra.mxu0 %v3395
        %3554 = vmatprep.subr.mxu0 %v3400
        %3555 = vmatpush1.msra.mxu0 %v3399
        %3556 = vmatprep.subr.mxu0 %v3404
        %3557 = vmatpush1.msra.mxu0 %v3403
        %3558 = vmatprep.subr.mxu0 %v3408
        %3559 = vmatpush1.msra.mxu0 %v3407
        %3560 = vmatprep.mubr.f32.mxu0 %v3422
        %3561 = vmatmul.mubr.f32.gmra.mrb[0].mxu0 %v3415
        %v3562 = vpop.f32.mrb[0].mxu0
        %v3563 = vadd.f32 0.0, %v3562
        %v3564 = vpop.f32.mrb[0].mxu0
        %v3565 = vadd.f32 0.0, %v3564
        %3566 = vdwg.mxu0
        %3567 = vmatprep.subr.mxu0 %v3153
        %3568 = vmatpush1.msra.mxu0 %v3152
        %3569 = vmatprep.subr.mxu0 %v3157
        %3570 = vmatpush1.msra.mxu0 %v3156
        %3571 = vmatprep.subr.mxu0 %v3161
        %3572 = vmatpush1.msra.mxu0 %v3160
        %3573 = vmatprep.subr.mxu0 %v3165
        %3574 = vmatpush1.msra.mxu0 %v3164
        %3575 = vmatprep.subr.mxu0 %v3169
        %3576 = vmatpush1.msra.mxu0 %v3168
        %3577 = vmatprep.subr.mxu0 %v3173
        %3578 = vmatpush1.msra.mxu0 %v3172
        %3579 = vmatprep.subr.mxu0 %v3177
        %3580 = vmatpush1.msra.mxu0 %v3176
        %3581 = vmatprep.subr.mxu0 %v3181
        %3582 = vmatpush1.msra.mxu0 %v3180
        %3583 = vmatprep.subr.mxu0 %v3185
        %3584 = vmatpush1.msra.mxu0 %v3184
        %3585 = vmatprep.subr.mxu0 %v3189
        %3586 = vmatpush1.msra.mxu0 %v3188
        %3587 = vmatprep.subr.mxu0 %v3193
        %3588 = vmatpush1.msra.mxu0 %v3192
        %3589 = vmatprep.subr.mxu0 %v3197
        %3590 = vmatpush1.msra.mxu0 %v3196
        %3591 = vmatprep.subr.mxu0 %v3201
        %3592 = vmatpush1.msra.mxu0 %v3200
        %3593 = vmatprep.subr.mxu0 %v3205
        %3594 = vmatpush1.msra.mxu0 %v3204
        %3595 = vmatprep.subr.mxu0 %v3209
        %3596 = vmatpush1.msra.mxu0 %v3208
        %3597 = vmatprep.subr.mxu0 %v3213
        %3598 = vmatpush1.msra.mxu0 %v3212
        %3599 = vmatprep.subr.mxu0 %v3217
        %3600 = vmatpush1.msra.mxu0 %v3216
        %3601 = vmatprep.subr.mxu0 %v3221
        %3602 = vmatpush1.msra.mxu0 %v3220
        %3603 = vmatprep.subr.mxu0 %v3225
        %3604 = vmatpush1.msra.mxu0 %v3224
        %3605 = vmatprep.subr.mxu0 %v3229
        %3606 = vmatpush1.msra.mxu0 %v3228
        %3607 = vmatprep.subr.mxu0 %v3233
        %3608 = vmatpush1.msra.mxu0 %v3232
        %3609 = vmatprep.subr.mxu0 %v3237
        %3610 = vmatpush1.msra.mxu0 %v3236
        %3611 = vmatprep.subr.mxu0 %v3241
        %3612 = vmatpush1.msra.mxu0 %v3240
        %3613 = vmatprep.subr.mxu0 %v3245
        %3614 = vmatpush1.msra.mxu0 %v3244
        %3615 = vmatprep.subr.mxu0 %v3249
        %3616 = vmatpush1.msra.mxu0 %v3248
        %3617 = vmatprep.subr.mxu0 %v3253
        %3618 = vmatpush1.msra.mxu0 %v3252
        %3619 = vmatprep.subr.mxu0 %v3257
        %3620 = vmatpush1.msra.mxu0 %v3256
        %3621 = vmatprep.subr.mxu0 %v3261
        %3622 = vmatpush1.msra.mxu0 %v3260
        %3623 = vmatprep.subr.mxu0 %v3265
        %3624 = vmatpush1.msra.mxu0 %v3264
        %3625 = vmatprep.subr.mxu0 %v3269
        %3626 = vmatpush1.msra.mxu0 %v3268
        %3627 = vmatprep.subr.mxu0 %v3273
        %3628 = vmatpush1.msra.mxu0 %v3272
        %3629 = vmatprep.subr.mxu0 %v3277
        %3630 = vmatpush1.msra.mxu0 %v3276
        %3631 = vmatprep.mubr.f32.mxu0 %v3133
        %3632 = vmatmul.mubr.f32.gmra.mrb[0].mxu0 %v3132
        %v3633 = vpop.f32.mrb[0].mxu0
        %v3634 = vadd.f32 %v3492, %v3633
        %v3635 = vpop.f32.mrb[0].mxu0
        %v3636 = vadd.f32 %v3494, %v3635
        %3637 = vdwg.mxu0
        %3638 = vmatprep.subr.mxu0 %v3155
        %3639 = vmatpush1.msra.mxu0 %v3154
        %3640 = vmatprep.subr.mxu0 %v3159
        %3641 = vmatpush1.msra.mxu0 %v3158
        %3642 = vmatprep.subr.mxu0 %v3163
        %3643 = vmatpush1.msra.mxu0 %v3162
        %3644 = vmatprep.subr.mxu0 %v3167
        %3645 = vmatpush1.msra.mxu0 %v3166
        %3646 = vmatprep.subr.mxu0 %v3171
        %3647 = vmatpush1.msra.mxu0 %v3170
        %3648 = vmatprep.subr.mxu0 %v3175
        %3649 = vmatpush1.msra.mxu0 %v3174
        %3650 = vmatprep.subr.mxu0 %v3179
        %3651 = vmatpush1.msra.mxu0 %v3178
        %3652 = vmatprep.subr.mxu0 %v3183
        %3653 = vmatpush1.msra.mxu0 %v3182
        %3654 = vmatprep.subr.mxu0 %v3187
        %3655 = vmatpush1.msra.mxu0 %v3186
        %3656 = vmatprep.subr.mxu0 %v3191
        %3657 = vmatpush1.msra.mxu0 %v3190
        %3658 = vmatprep.subr.mxu0 %v3195
        %3659 = vmatpush1.msra.mxu0 %v3194
        %3660 = vmatprep.subr.mxu0 %v3199
        %3661 = vmatpush1.msra.mxu0 %v3198
        %3662 = vmatprep.subr.mxu0 %v3203
        %3663 = vmatpush1.msra.mxu0 %v3202
        %3664 = vmatprep.subr.mxu0 %v3207
        %3665 = vmatpush1.msra.mxu0 %v3206
        %3666 = vmatprep.subr.mxu0 %v3211
        %3667 = vmatpush1.msra.mxu0 %v3210
        %3668 = vmatprep.subr.mxu0 %v3215
        %3669 = vmatpush1.msra.mxu0 %v3214
        %3670 = vmatprep.subr.mxu0 %v3219
        %3671 = vmatpush1.msra.mxu0 %v3218
        %3672 = vmatprep.subr.mxu0 %v3223
        %3673 = vmatpush1.msra.mxu0 %v3222
        %3674 = vmatprep.subr.mxu0 %v3227
        %3675 = vmatpush1.msra.mxu0 %v3226
        %3676 = vmatprep.subr.mxu0 %v3231
        %3677 = vmatpush1.msra.mxu0 %v3230
        %3678 = vmatprep.subr.mxu0 %v3235
        %3679 = vmatpush1.msra.mxu0 %v3234
        %3680 = vmatprep.subr.mxu0 %v3239
        %3681 = vmatpush1.msra.mxu0 %v3238
        %3682 = vmatprep.subr.mxu0 %v3243
        %3683 = vmatpush1.msra.mxu0 %v3242
        %3684 = vmatprep.subr.mxu0 %v3247
        %3685 = vmatpush1.msra.mxu0 %v3246
        %3686 = vmatprep.subr.mxu0 %v3251
        %3687 = vmatpush1.msra.mxu0 %v3250
        %3688 = vmatprep.subr.mxu0 %v3255
        %3689 = vmatpush1.msra.mxu0 %v3254
        %3690 = vmatprep.subr.mxu0 %v3259
        %3691 = vmatpush1.msra.mxu0 %v3258
        %3692 = vmatprep.subr.mxu0 %v3263
        %3693 = vmatpush1.msra.mxu0 %v3262
        %3694 = vmatprep.subr.mxu0 %v3267
        %3695 = vmatpush1.msra.mxu0 %v3266
        %3696 = vmatprep.subr.mxu0 %v3271
        %3697 = vmatpush1.msra.mxu0 %v3270
        %3698 = vmatprep.subr.mxu0 %v3275
        %3699 = vmatpush1.msra.mxu0 %v3274
        %3700 = vmatprep.subr.mxu0 %v3279
        %3701 = vmatpush1.msra.mxu0 %v3278
        %3702 = vmatprep.mubr.f32.mxu0 %v3133
        %3703 = vmatmul.mubr.f32.gmra.mrb[0].mxu0 %v3132
        %v3704 = vpop.f32.mrb[0].mxu0
        %v3705 = vadd.f32 %v3563, %v3704
        %v3706 = vpop.f32.mrb[0].mxu0
        %v3707 = vadd.f32 %v3565, %v3706
        %3708 = vdwg.mxu0
        %s3709 = scalar_lea.vmem %s5, 2048
        %v3710 = vld [vmem:[%s3709] sm:$0xff]
        %v3711 = vld [vmem:[%s3709 + $0x8] sm:$0xff]
        %v3712 = vld [vmem:[%s3709 + $0x10] sm:$0xff]
        %v3713 = vld [vmem:[%s3709 + $0x18] sm:$0xff]
        %v3714 = vld [vmem:[%s3709 + $0x20] sm:$0xff]
        %v3715 = vld [vmem:[%s3709 + $0x28] sm:$0xff]
        %v3716 = vld [vmem:[%s3709 + $0x30] sm:$0xff]
        %v3717 = vld [vmem:[%s3709 + $0x38] sm:$0xff]
        %v3718 = vld [vmem:[%s3709 + $0x40] sm:$0xff]
        %v3719 = vld [vmem:[%s3709 + $0x48] sm:$0xff]
        %v3720 = vld [vmem:[%s3709 + $0x50] sm:$0xff]
        %v3721 = vld [vmem:[%s3709 + $0x58] sm:$0xff]
        %v3722 = vld [vmem:[%s3709 + $0x60] sm:$0xff]
        %v3723 = vld [vmem:[%s3709 + $0x68] sm:$0xff]
        %v3724 = vld [vmem:[%s3709 + $0x70] sm:$0xff]
        %v3725 = vld [vmem:[%s3709 + $0x78] sm:$0xff]
        %v3726 = vld [vmem:[%s3709 + $0x80] sm:$0xff]
        %v3727 = vld [vmem:[%s3709 + $0x88] sm:$0xff]
        %v3728 = vld [vmem:[%s3709 + $0x90] sm:$0xff]
        %v3729 = vld [vmem:[%s3709 + $0x98] sm:$0xff]
        %v3730 = vld [vmem:[%s3709 + $0xa0] sm:$0xff]
        %v3731 = vld [vmem:[%s3709 + $0xa8] sm:$0xff]
        %v3732 = vld [vmem:[%s3709 + $0xb0] sm:$0xff]
        %v3733 = vld [vmem:[%s3709 + $0xb8] sm:$0xff]
        %v3734 = vld [vmem:[%s3709 + $0xc0] sm:$0xff]
        %v3735 = vld [vmem:[%s3709 + $0xc8] sm:$0xff]
        %v3736 = vld [vmem:[%s3709 + $0xd0] sm:$0xff]
        %v3737 = vld [vmem:[%s3709 + $0xd8] sm:$0xff]
        %v3738 = vld [vmem:[%s3709 + $0xe0] sm:$0xff]
        %v3739 = vld [vmem:[%s3709 + $0xe8] sm:$0xff]
        %v3740 = vld [vmem:[%s3709 + $0xf0] sm:$0xff]
        %v3741 = vld [vmem:[%s3709 + $0xf8] sm:$0xff]
        %v3742 = vld [vmem:[%s3709 + $0x100] sm:$0xff]
        %v3743 = vld [vmem:[%s3709 + $0x108] sm:$0xff]
        %v3744 = vld [vmem:[%s3709 + $0x110] sm:$0xff]
        %v3745 = vld [vmem:[%s3709 + $0x118] sm:$0xff]
        %v3746 = vld [vmem:[%s3709 + $0x120] sm:$0xff]
        %v3747 = vld [vmem:[%s3709 + $0x128] sm:$0xff]
        %v3748 = vld [vmem:[%s3709 + $0x130] sm:$0xff]
        %v3749 = vld [vmem:[%s3709 + $0x138] sm:$0xff]
        %v3750 = vld [vmem:[%s3709 + $0x140] sm:$0xff]
        %v3751 = vld [vmem:[%s3709 + $0x148] sm:$0xff]
        %v3752 = vld [vmem:[%s3709 + $0x150] sm:$0xff]
        %v3753 = vld [vmem:[%s3709 + $0x158] sm:$0xff]
        %v3754 = vld [vmem:[%s3709 + $0x160] sm:$0xff]
        %v3755 = vld [vmem:[%s3709 + $0x168] sm:$0xff]
        %v3756 = vld [vmem:[%s3709 + $0x170] sm:$0xff]
        %v3757 = vld [vmem:[%s3709 + $0x178] sm:$0xff]
        %v3758 = vld [vmem:[%s3709 + $0x180] sm:$0xff]
        %v3759 = vld [vmem:[%s3709 + $0x188] sm:$0xff]
        %v3760 = vld [vmem:[%s3709 + $0x190] sm:$0xff]
        %v3761 = vld [vmem:[%s3709 + $0x198] sm:$0xff]
        %v3762 = vld [vmem:[%s3709 + $0x1a0] sm:$0xff]
        %v3763 = vld [vmem:[%s3709 + $0x1a8] sm:$0xff]
        %v3764 = vld [vmem:[%s3709 + $0x1b0] sm:$0xff]
        %v3765 = vld [vmem:[%s3709 + $0x1b8] sm:$0xff]
        %v3766 = vld [vmem:[%s3709 + $0x1c0] sm:$0xff]
        %v3767 = vld [vmem:[%s3709 + $0x1c8] sm:$0xff]
        %v3768 = vld [vmem:[%s3709 + $0x1d0] sm:$0xff]
        %v3769 = vld [vmem:[%s3709 + $0x1d8] sm:$0xff]
        %v3770 = vld [vmem:[%s3709 + $0x1e0] sm:$0xff]
        %v3771 = vld [vmem:[%s3709 + $0x1e8] sm:$0xff]
        %v3772 = vld [vmem:[%s3709 + $0x1f0] sm:$0xff]
        %v3773 = vld [vmem:[%s3709 + $0x1f8] sm:$0xff]
        %v3774 = vld [vmem:[%s3709 + $0x200] sm:$0xff]
        %v3775 = vld [vmem:[%s3709 + $0x208] sm:$0xff]
        %v3776 = vld [vmem:[%s3709 + $0x210] sm:$0xff]
        %v3777 = vld [vmem:[%s3709 + $0x218] sm:$0xff]
        %v3778 = vld [vmem:[%s3709 + $0x220] sm:$0xff]
        %v3779 = vld [vmem:[%s3709 + $0x228] sm:$0xff]
        %v3780 = vld [vmem:[%s3709 + $0x230] sm:$0xff]
        %v3781 = vld [vmem:[%s3709 + $0x238] sm:$0xff]
        %v3782 = vld [vmem:[%s3709 + $0x240] sm:$0xff]
        %v3783 = vld [vmem:[%s3709 + $0x248] sm:$0xff]
        %v3784 = vld [vmem:[%s3709 + $0x250] sm:$0xff]
        %v3785 = vld [vmem:[%s3709 + $0x258] sm:$0xff]
        %v3786 = vld [vmem:[%s3709 + $0x260] sm:$0xff]
        %v3787 = vld [vmem:[%s3709 + $0x268] sm:$0xff]
        %v3788 = vld [vmem:[%s3709 + $0x270] sm:$0xff]
        %v3789 = vld [vmem:[%s3709 + $0x278] sm:$0xff]
        %v3790 = vld [vmem:[%s3709 + $0x280] sm:$0xff]
        %v3791 = vld [vmem:[%s3709 + $0x288] sm:$0xff]
        %v3792 = vld [vmem:[%s3709 + $0x290] sm:$0xff]
        %v3793 = vld [vmem:[%s3709 + $0x298] sm:$0xff]
        %v3794 = vld [vmem:[%s3709 + $0x2a0] sm:$0xff]
        %v3795 = vld [vmem:[%s3709 + $0x2a8] sm:$0xff]
        %v3796 = vld [vmem:[%s3709 + $0x2b0] sm:$0xff]
        %v3797 = vld [vmem:[%s3709 + $0x2b8] sm:$0xff]
        %v3798 = vld [vmem:[%s3709 + $0x2c0] sm:$0xff]
        %v3799 = vld [vmem:[%s3709 + $0x2c8] sm:$0xff]
        %v3800 = vld [vmem:[%s3709 + $0x2d0] sm:$0xff]
        %v3801 = vld [vmem:[%s3709 + $0x2d8] sm:$0xff]
        %v3802 = vld [vmem:[%s3709 + $0x2e0] sm:$0xff]
        %v3803 = vld [vmem:[%s3709 + $0x2e8] sm:$0xff]
        %v3804 = vld [vmem:[%s3709 + $0x2f0] sm:$0xff]
        %v3805 = vld [vmem:[%s3709 + $0x2f8] sm:$0xff]
        %v3806 = vld [vmem:[%s3709 + $0x300] sm:$0xff]
        %v3807 = vld [vmem:[%s3709 + $0x308] sm:$0xff]
        %v3808 = vld [vmem:[%s3709 + $0x310] sm:$0xff]
        %v3809 = vld [vmem:[%s3709 + $0x318] sm:$0xff]
        %v3810 = vld [vmem:[%s3709 + $0x320] sm:$0xff]
        %v3811 = vld [vmem:[%s3709 + $0x328] sm:$0xff]
        %v3812 = vld [vmem:[%s3709 + $0x330] sm:$0xff]
        %v3813 = vld [vmem:[%s3709 + $0x338] sm:$0xff]
        %v3814 = vld [vmem:[%s3709 + $0x340] sm:$0xff]
        %v3815 = vld [vmem:[%s3709 + $0x348] sm:$0xff]
        %v3816 = vld [vmem:[%s3709 + $0x350] sm:$0xff]
        %v3817 = vld [vmem:[%s3709 + $0x358] sm:$0xff]
        %v3818 = vld [vmem:[%s3709 + $0x360] sm:$0xff]
        %v3819 = vld [vmem:[%s3709 + $0x368] sm:$0xff]
        %v3820 = vld [vmem:[%s3709 + $0x370] sm:$0xff]
        %v3821 = vld [vmem:[%s3709 + $0x378] sm:$0xff]
        %v3822 = vld [vmem:[%s3709 + $0x380] sm:$0xff]
        %v3823 = vld [vmem:[%s3709 + $0x388] sm:$0xff]
        %v3824 = vld [vmem:[%s3709 + $0x390] sm:$0xff]
        %v3825 = vld [vmem:[%s3709 + $0x398] sm:$0xff]
        %v3826 = vld [vmem:[%s3709 + $0x3a0] sm:$0xff]
        %v3827 = vld [vmem:[%s3709 + $0x3a8] sm:$0xff]
        %v3828 = vld [vmem:[%s3709 + $0x3b0] sm:$0xff]
        %v3829 = vld [vmem:[%s3709 + $0x3b8] sm:$0xff]
        %v3830 = vld [vmem:[%s3709 + $0x3c0] sm:$0xff]
        %v3831 = vld [vmem:[%s3709 + $0x3c8] sm:$0xff]
        %v3832 = vld [vmem:[%s3709 + $0x3d0] sm:$0xff]
        %v3833 = vld [vmem:[%s3709 + $0x3d8] sm:$0xff]
        %v3834 = vld [vmem:[%s3709 + $0x3e0] sm:$0xff]
        %v3835 = vld [vmem:[%s3709 + $0x3e8] sm:$0xff]
        %v3836 = vld [vmem:[%s3709 + $0x3f0] sm:$0xff]
        %v3837 = vld [vmem:[%s3709 + $0x3f8] sm:$0xff]
        %3838 = vmatprep.subr.mxu0 %v3711
        %3839 = vmatpush1.msra.mxu0 %v3710
        %3840 = vmatprep.subr.mxu0 %v3715
        %3841 = vmatpush1.msra.mxu0 %v3714
        %3842 = vmatprep.subr.mxu0 %v3719
        %3843 = vmatpush1.msra.mxu0 %v3718
        %3844 = vmatprep.subr.mxu0 %v3723
        %3845 = vmatpush1.msra.mxu0 %v3722
        %3846 = vmatprep.subr.mxu0 %v3727
        %3847 = vmatpush1.msra.mxu0 %v3726
        %3848 = vmatprep.subr.mxu0 %v3731
        %3849 = vmatpush1.msra.mxu0 %v3730
        %3850 = vmatprep.subr.mxu0 %v3735
        %3851 = vmatpush1.msra.mxu0 %v3734
        %3852 = vmatprep.subr.mxu0 %v3739
        %3853 = vmatpush1.msra.mxu0 %v3738
        %3854 = vmatprep.subr.mxu0 %v3743
        %3855 = vmatpush1.msra.mxu0 %v3742
        %3856 = vmatprep.subr.mxu0 %v3747
        %3857 = vmatpush1.msra.mxu0 %v3746
        %3858 = vmatprep.subr.mxu0 %v3751
        %3859 = vmatpush1.msra.mxu0 %v3750
        %3860 = vmatprep.subr.mxu0 %v3755
        %3861 = vmatpush1.msra.mxu0 %v3754
        %3862 = vmatprep.subr.mxu0 %v3759
        %3863 = vmatpush1.msra.mxu0 %v3758
        %3864 = vmatprep.subr.mxu0 %v3763
        %3865 = vmatpush1.msra.mxu0 %v3762
        %3866 = vmatprep.subr.mxu0 %v3767
        %3867 = vmatpush1.msra.mxu0 %v3766
        %3868 = vmatprep.subr.mxu0 %v3771
        %3869 = vmatpush1.msra.mxu0 %v3770
        %3870 = vmatprep.subr.mxu0 %v3775
        %3871 = vmatpush1.msra.mxu0 %v3774
        %3872 = vmatprep.subr.mxu0 %v3779
        %3873 = vmatpush1.msra.mxu0 %v3778
        %3874 = vmatprep.subr.mxu0 %v3783
        %3875 = vmatpush1.msra.mxu0 %v3782
        %3876 = vmatprep.subr.mxu0 %v3787
        %3877 = vmatpush1.msra.mxu0 %v3786
        %3878 = vmatprep.subr.mxu0 %v3791
        %3879 = vmatpush1.msra.mxu0 %v3790
        %3880 = vmatprep.subr.mxu0 %v3795
        %3881 = vmatpush1.msra.mxu0 %v3794
        %3882 = vmatprep.subr.mxu0 %v3799
        %3883 = vmatpush1.msra.mxu0 %v3798
        %3884 = vmatprep.subr.mxu0 %v3803
        %3885 = vmatpush1.msra.mxu0 %v3802
        %3886 = vmatprep.subr.mxu0 %v3807
        %3887 = vmatpush1.msra.mxu0 %v3806
        %3888 = vmatprep.subr.mxu0 %v3811
        %3889 = vmatpush1.msra.mxu0 %v3810
        %3890 = vmatprep.subr.mxu0 %v3815
        %3891 = vmatpush1.msra.mxu0 %v3814
        %3892 = vmatprep.subr.mxu0 %v3819
        %3893 = vmatpush1.msra.mxu0 %v3818
        %3894 = vmatprep.subr.mxu0 %v3823
        %3895 = vmatpush1.msra.mxu0 %v3822
        %3896 = vmatprep.subr.mxu0 %v3827
        %3897 = vmatpush1.msra.mxu0 %v3826
        %3898 = vmatprep.subr.mxu0 %v3831
        %3899 = vmatpush1.msra.mxu0 %v3830
        %3900 = vmatprep.subr.mxu0 %v3835
        %3901 = vmatpush1.msra.mxu0 %v3834
        %3902 = vmatprep.mubr.f32.mxu0 %v3151
        %3903 = vmatmul.mubr.f32.gmra.mrb[0].mxu0 %v3150
        %v3904 = vpop.f32.mrb[0].mxu0
        %v3905 = vadd.f32 0.0, %v3904
        %v3906 = vpop.f32.mrb[0].mxu0
        %v3907 = vadd.f32 0.0, %v3906
        %3908 = vdwg.mxu0
        %3909 = vmatprep.subr.mxu0 %v3713
        %3910 = vmatpush1.msra.mxu0 %v3712
        %3911 = vmatprep.subr.mxu0 %v3717
        %3912 = vmatpush1.msra.mxu0 %v3716
        %3913 = vmatprep.subr.mxu0 %v3721
        %3914 = vmatpush1.msra.mxu0 %v3720
        %3915 = vmatprep.subr.mxu0 %v3725
        %3916 = vmatpush1.msra.mxu0 %v3724
        %3917 = vmatprep.subr.mxu0 %v3729
        %3918 = vmatpush1.msra.mxu0 %v3728
        %3919 = vmatprep.subr.mxu0 %v3733
        %3920 = vmatpush1.msra.mxu0 %v3732
        %3921 = vmatprep.subr.mxu0 %v3737
        %3922 = vmatpush1.msra.mxu0 %v3736
        %3923 = vmatprep.subr.mxu0 %v3741
        %3924 = vmatpush1.msra.mxu0 %v3740
        %3925 = vmatprep.subr.mxu0 %v3745
        %3926 = vmatpush1.msra.mxu0 %v3744
        %3927 = vmatprep.subr.mxu0 %v3749
        %3928 = vmatpush1.msra.mxu0 %v3748
        %3929 = vmatprep.subr.mxu0 %v3753
        %3930 = vmatpush1.msra.mxu0 %v3752
        %3931 = vmatprep.subr.mxu0 %v3757
        %3932 = vmatpush1.msra.mxu0 %v3756
        %3933 = vmatprep.subr.mxu0 %v3761
        %3934 = vmatpush1.msra.mxu0 %v3760
        %3935 = vmatprep.subr.mxu0 %v3765
        %3936 = vmatpush1.msra.mxu0 %v3764
        %3937 = vmatprep.subr.mxu0 %v3769
        %3938 = vmatpush1.msra.mxu0 %v3768
        %3939 = vmatprep.subr.mxu0 %v3773
        %3940 = vmatpush1.msra.mxu0 %v3772
        %3941 = vmatprep.subr.mxu0 %v3777
        %3942 = vmatpush1.msra.mxu0 %v3776
        %3943 = vmatprep.subr.mxu0 %v3781
        %3944 = vmatpush1.msra.mxu0 %v3780
        %3945 = vmatprep.subr.mxu0 %v3785
        %3946 = vmatpush1.msra.mxu0 %v3784
        %3947 = vmatprep.subr.mxu0 %v3789
        %3948 = vmatpush1.msra.mxu0 %v3788
        %3949 = vmatprep.subr.mxu0 %v3793
        %3950 = vmatpush1.msra.mxu0 %v3792
        %3951 = vmatprep.subr.mxu0 %v3797
        %3952 = vmatpush1.msra.mxu0 %v3796
        %3953 = vmatprep.subr.mxu0 %v3801
        %3954 = vmatpush1.msra.mxu0 %v3800
        %3955 = vmatprep.subr.mxu0 %v3805
        %3956 = vmatpush1.msra.mxu0 %v3804
        %3957 = vmatprep.subr.mxu0 %v3809
        %3958 = vmatpush1.msra.mxu0 %v3808
        %3959 = vmatprep.subr.mxu0 %v3813
        %3960 = vmatpush1.msra.mxu0 %v3812
        %3961 = vmatprep.subr.mxu0 %v3817
        %3962 = vmatpush1.msra.mxu0 %v3816
        %3963 = vmatprep.subr.mxu0 %v3821
        %3964 = vmatpush1.msra.mxu0 %v3820
        %3965 = vmatprep.subr.mxu0 %v3825
        %3966 = vmatpush1.msra.mxu0 %v3824
        %3967 = vmatprep.subr.mxu0 %v3829
        %3968 = vmatpush1.msra.mxu0 %v3828
        %3969 = vmatprep.subr.mxu0 %v3833
        %3970 = vmatpush1.msra.mxu0 %v3832
        %3971 = vmatprep.subr.mxu0 %v3837
        %3972 = vmatpush1.msra.mxu0 %v3836
        %3973 = vmatprep.mubr.f32.mxu0 %v3151
        %3974 = vmatmul.mubr.f32.gmra.mrb[0].mxu0 %v3150
        %v3975 = vpop.f32.mrb[0].mxu0
        %v3976 = vadd.f32 0.0, %v3975
        %v3977 = vpop.f32.mrb[0].mxu0
        %v3978 = vadd.f32 0.0, %v3977
        %3979 = vdwg.mxu0
        %v3980 = vadd.f32 %v3634, %v3905
        %v3981 = vadd.f32 %v3636, %v3907
        %v3982 = vadd.f32 %v3705, %v3976
        %v3983 = vadd.f32 %v3707, %v3978
        %v3984 = vld [vmem:[%s6] sm:$0xf]
        %v3986 = vlaneseq
        %v3987 = vshrl.u32 %v3986, 7
        %v3988 = vsub.s32 0, %v3987
        %v3989 = vrot.slane %v3984, %v3988
        %v3990 = vlaneseq
        %v3991 = vshrl.u32 %v3990, 7
        %v3992 = vsub.s32 1, %v3991
        %v3993 = vrot.slane %v3984, %v3992
        %v3994 = vlaneseq
        %v3995 = vshrl.u32 %v3994, 7
        %v3996 = vsub.s32 2, %v3995
        %v3997 = vrot.slane %v3984, %v3996
        %v3998 = vlaneseq
        %v3999 = vshrl.u32 %v3998, 7
        %v4000 = vsub.s32 3, %v3999
        %v4001 = vrot.slane %v3984, %v4000
        %v4006 = vadd.f32 %v3980, %v3989
        %v4007 = vadd.f32 %v3981, %v3993
        %v4008 = vadd.f32 %v3982, %v3997
        %v4009 = vadd.f32 %v3983, %v4001
        %v4010 = vmax.f32 %v4006, 0.0
        %v4011 = vmax.f32 %v4007, 0.0
        %v4012 = vmax.f32 %v4008, 0.0
        %v4013 = vmax.f32 %v4009, 0.0
        %4014 = vst [vmem:[%s533] sm:$0xff] %v4010
        %4015 = vst [vmem:[%s533 + $0x8] sm:$0xff] %v4011
        %4016 = vst [vmem:[%s533 + $0x10] sm:$0xff] %v4012
        %4017 = vst [vmem:[%s533 + $0x18] sm:$0xff] %v4013
        %v4018 = vmax.f32 %v4010, %v4012
        %v4019 = vmax.f32 %v4011, %v4013
        %v4022 = vcombine.low %v4018, %v4019
        %v4023 = vcombine.high %v4018, %v4019
        %v4025 = vunpack.c.l.s4 1983009808
        %v4026 = vunpack.c.0.s8 %v4025
        %v4027 = vlaneseq
        %v4028 = vshrl.u32 %v4027, 7
        %v4029 = vsub.s32 %v4026, %v4028
        %v4030 = vrot.slane %v4022, %v4029
        %v4032 = vunpack.c.l.s4 1983009808
        %v4033 = vunpack.c.0.s8 %v4032
        %v4034 = vlaneseq
        %v4035 = vshrl.u32 %v4034, 7
        %v4036 = vsub.s32 %v4033, %v4035
        %v4037 = vrot.slane %v4023, %v4036
        %v4038 = vcombine.high %v4030, %v4030
        %v4039 = vcombine.high %v4037, %v4037
        %v4041 = vunpack.c.l.s4 1983009808
        %v4042 = vunpack.c.0.s8 %v4041
        %v4043 = vlaneseq
        %v4044 = vshrl.u32 %v4043, 7
        %v4045 = vsub.s32 %v4042, %v4044
        %v4046 = vrot.slane %v4030, %v4045
        %v4047 = vcombine.high %v4046, %v4046
        %v4049 = vunpack.c.l.s4 1983009808
        %v4050 = vunpack.c.0.s8 %v4049
        %v4051 = vlaneseq
        %v4052 = vshrl.u32 %v4051, 7
        %v4053 = vsub.s32 %v4050, %v4052
        %v4054 = vrot.slane %v4038, %v4053
        %v4055 = vcombine.high %v4054, %v4054
        %v4057 = vunpack.c.l.s4 1983009808
        %v4058 = vunpack.c.0.s8 %v4057
        %v4059 = vlaneseq
        %v4060 = vshrl.u32 %v4059, 7
        %v4061 = vsub.s32 %v4058, %v4060
        %v4062 = vrot.slane %v4037, %v4061
        %v4063 = vcombine.high %v4062, %v4062
        %v4065 = vunpack.c.l.s4 1983009808
        %v4066 = vunpack.c.0.s8 %v4065
        %v4067 = vlaneseq
        %v4068 = vshrl.u32 %v4067, 7
        %v4069 = vsub.s32 %v4066, %v4068
        %v4070 = vrot.slane %v4039, %v4069
        %v4071 = vcombine.high %v4070, %v4070
        %v4080 = vsel %vm1606, %v4046, -inf
        %v4081 = vrot.slane %v4080, 4
        %v4082 = vmax.f32 %v4080, %v4081
        %v4083 = vrot.slane %v4082, 2
        %v4084 = vmax.f32 %v4082, %v4083
        %v4085 = vrot.slane %v4084, 1
        %v4086 = vmax.f32 %v4084, %v4085
        %v4087 = vsel %vm1606, %v4047, -inf
        %v4088 = vrot.slane %v4087, 4
        %v4089 = vmax.f32 %v4087, %v4088
        %v4090 = vrot.slane %v4089, 2
        %v4091 = vmax.f32 %v4089, %v4090
        %v4092 = vrot.slane %v4091, 1
        %v4093 = vmax.f32 %v4091, %v4092
        %v4094 = vsel %vm1606, %v4054, -inf
        %v4095 = vrot.slane %v4094, 4
        %v4096 = vmax.f32 %v4094, %v4095
        %v4097 = vrot.slane %v4096, 2
        %v4098 = vmax.f32 %v4096, %v4097
        %v4099 = vrot.slane %v4098, 1
        %v4100 = vmax.f32 %v4098, %v4099
        %v4101 = vsel %vm1606, %v4055, -inf
        %v4102 = vrot.slane %v4101, 4
        %v4103 = vmax.f32 %v4101, %v4102
        %v4104 = vrot.slane %v4103, 2
        %v4105 = vmax.f32 %v4103, %v4104
        %v4106 = vrot.slane %v4105, 1
        %v4107 = vmax.f32 %v4105, %v4106
        %v4108 = vsel %vm1606, %v4062, -inf
        %v4109 = vrot.slane %v4108, 4
        %v4110 = vmax.f32 %v4108, %v4109
        %v4111 = vrot.slane %v4110, 2
        %v4112 = vmax.f32 %v4110, %v4111
        %v4113 = vrot.slane %v4112, 1
        %v4114 = vmax.f32 %v4112, %v4113
        %v4115 = vsel %vm1606, %v4063, -inf
        %v4116 = vrot.slane %v4115, 4
        %v4117 = vmax.f32 %v4115, %v4116
        %v4118 = vrot.slane %v4117, 2
        %v4119 = vmax.f32 %v4117, %v4118
        %v4120 = vrot.slane %v4119, 1
        %v4121 = vmax.f32 %v4119, %v4120
        %v4122 = vsel %vm1606, %v4070, -inf
        %v4123 = vrot.slane %v4122, 4
        %v4124 = vmax.f32 %v4122, %v4123
        %v4125 = vrot.slane %v4124, 2
        %v4126 = vmax.f32 %v4124, %v4125
        %v4127 = vrot.slane %v4126, 1
        %v4128 = vmax.f32 %v4126, %v4127
        %v4129 = vsel %vm1606, %v4071, -inf
        %v4130 = vrot.slane %v4129, 4
        %v4131 = vmax.f32 %v4129, %v4130
        %v4132 = vrot.slane %v4131, 2
        %v4133 = vmax.f32 %v4131, %v4132
        %v4134 = vrot.slane %v4133, 1
        %v4135 = vmax.f32 %v4133, %v4134
        %v4136 = vld [vmem:[%s7] sm:$0xff]
        %v4137 = vld [vmem:[%s7 + $0x8] sm:$0xff]
        %v4138 = vld [vmem:[%s7 + $0x10] sm:$0xff]
        %v4139 = vld [vmem:[%s7 + $0x18] sm:$0xff]
        %v4140 = vld [vmem:[%s7 + $0x20] sm:$0xff]
        %v4141 = vld [vmem:[%s7 + $0x28] sm:$0xff]
        %v4142 = vld [vmem:[%s7 + $0x30] sm:$0xff]
        %v4143 = vld [vmem:[%s7 + $0x38] sm:$0xff]
        %v4144 = vld [vmem:[%s7 + $0x40] sm:$0xff]
        %v4145 = vld [vmem:[%s7 + $0x48] sm:$0xff]
        %v4146 = vld [vmem:[%s7 + $0x50] sm:$0xff]
        %v4147 = vld [vmem:[%s7 + $0x58] sm:$0xff]
        %v4148 = vld [vmem:[%s7 + $0x60] sm:$0xff]
        %v4149 = vld [vmem:[%s7 + $0x68] sm:$0xff]
        %v4150 = vld [vmem:[%s7 + $0x70] sm:$0xff]
        %v4151 = vld [vmem:[%s7 + $0x78] sm:$0xff]
        %v4152 = vld [vmem:[%s7 + $0x80] sm:$0xff]
        %v4153 = vld [vmem:[%s7 + $0x88] sm:$0xff]
        %v4154 = vld [vmem:[%s7 + $0x90] sm:$0xff]
        %v4155 = vld [vmem:[%s7 + $0x98] sm:$0xff]
        %v4156 = vld [vmem:[%s7 + $0xa0] sm:$0xff]
        %v4157 = vld [vmem:[%s7 + $0xa8] sm:$0xff]
        %v4158 = vld [vmem:[%s7 + $0xb0] sm:$0xff]
        %v4159 = vld [vmem:[%s7 + $0xb8] sm:$0xff]
        %v4160 = vld [vmem:[%s7 + $0xc0] sm:$0xff]
        %v4161 = vld [vmem:[%s7 + $0xc8] sm:$0xff]
        %v4162 = vld [vmem:[%s7 + $0xd0] sm:$0xff]
        %v4163 = vld [vmem:[%s7 + $0xd8] sm:$0xff]
        %v4164 = vld [vmem:[%s7 + $0xe0] sm:$0xff]
        %v4165 = vld [vmem:[%s7 + $0xe8] sm:$0xff]
        %v4166 = vld [vmem:[%s7 + $0xf0] sm:$0xff]
        %v4167 = vld [vmem:[%s7 + $0xf8] sm:$0xff]
        %s4168 = scalar_lea.vmem %s7, 256
        %v4169 = vld [vmem:[%s4168] sm:$0xff]
        %v4170 = vld [vmem:[%s4168 + $0x8] sm:$0xff]
        %v4171 = vld [vmem:[%s4168 + $0x10] sm:$0xff]
        %v4172 = vld [vmem:[%s4168 + $0x18] sm:$0xff]
        %v4173 = vld [vmem:[%s4168 + $0x20] sm:$0xff]
        %v4174 = vld [vmem:[%s4168 + $0x28] sm:$0xff]
        %v4175 = vld [vmem:[%s4168 + $0x30] sm:$0xff]
        %v4176 = vld [vmem:[%s4168 + $0x38] sm:$0xff]
        %v4177 = vld [vmem:[%s4168 + $0x40] sm:$0xff]
        %v4178 = vld [vmem:[%s4168 + $0x48] sm:$0xff]
        %v4179 = vld [vmem:[%s4168 + $0x50] sm:$0xff]
        %v4180 = vld [vmem:[%s4168 + $0x58] sm:$0xff]
        %v4181 = vld [vmem:[%s4168 + $0x60] sm:$0xff]
        %v4182 = vld [vmem:[%s4168 + $0x68] sm:$0xff]
        %v4183 = vld [vmem:[%s4168 + $0x70] sm:$0xff]
        %v4184 = vld [vmem:[%s4168 + $0x78] sm:$0xff]
        %v4185 = vld [vmem:[%s4168 + $0x80] sm:$0xff]
        %v4186 = vld [vmem:[%s4168 + $0x88] sm:$0xff]
        %v4187 = vld [vmem:[%s4168 + $0x90] sm:$0xff]
        %v4188 = vld [vmem:[%s4168 + $0x98] sm:$0xff]
        %v4189 = vld [vmem:[%s4168 + $0xa0] sm:$0xff]
        %v4190 = vld [vmem:[%s4168 + $0xa8] sm:$0xff]
        %v4191 = vld [vmem:[%s4168 + $0xb0] sm:$0xff]
        %v4192 = vld [vmem:[%s4168 + $0xb8] sm:$0xff]
        %v4193 = vld [vmem:[%s4168 + $0xc0] sm:$0xff]
        %v4194 = vld [vmem:[%s4168 + $0xc8] sm:$0xff]
        %v4195 = vld [vmem:[%s4168 + $0xd0] sm:$0xff]
        %v4196 = vld [vmem:[%s4168 + $0xd8] sm:$0xff]
        %v4197 = vld [vmem:[%s4168 + $0xe0] sm:$0xff]
        %v4198 = vld [vmem:[%s4168 + $0xe8] sm:$0xff]
        %v4199 = vld [vmem:[%s4168 + $0xf0] sm:$0xff]
        %v4200 = vld [vmem:[%s4168 + $0xf8] sm:$0xff]
        %4201 = vmatprep.subr.mxu0 0.0
        %4202 = vmatpush1.msra.mxu0 %v4169
        %4203 = vmatprep.subr.mxu0 0.0
        %4204 = vmatpush1.msra.mxu0 %v4170
        %4205 = vmatprep.subr.mxu0 0.0
        %4206 = vmatpush1.msra.mxu0 %v4171
        %4207 = vmatprep.subr.mxu0 0.0
        %4208 = vmatpush1.msra.mxu0 %v4172
        %4209 = vmatprep.subr.mxu0 0.0
        %4210 = vmatpush1.msra.mxu0 %v4173
        %4211 = vmatprep.subr.mxu0 0.0
        %4212 = vmatpush1.msra.mxu0 %v4174
        %4213 = vmatprep.subr.mxu0 0.0
        %4214 = vmatpush1.msra.mxu0 %v4175
        %4215 = vmatprep.subr.mxu0 0.0
        %4216 = vmatpush1.msra.mxu0 %v4176
        %4217 = vmatprep.subr.mxu0 0.0
        %4218 = vmatpush1.msra.mxu0 %v4177
        %4219 = vmatprep.subr.mxu0 0.0
        %4220 = vmatpush1.msra.mxu0 %v4178
        %4221 = vmatprep.subr.mxu0 0.0
        %4222 = vmatpush1.msra.mxu0 %v4179
        %4223 = vmatprep.subr.mxu0 0.0
        %4224 = vmatpush1.msra.mxu0 %v4180
        %4225 = vmatprep.subr.mxu0 0.0
        %4226 = vmatpush1.msra.mxu0 %v4181
        %4227 = vmatprep.subr.mxu0 0.0
        %4228 = vmatpush1.msra.mxu0 %v4182
        %4229 = vmatprep.subr.mxu0 0.0
        %4230 = vmatpush1.msra.mxu0 %v4183
        %4231 = vmatprep.subr.mxu0 0.0
        %4232 = vmatpush1.msra.mxu0 %v4184
        %4233 = vmatprep.subr.mxu0 0.0
        %4234 = vmatpush1.msra.mxu0 %v4185
        %4235 = vmatprep.subr.mxu0 0.0
        %4236 = vmatpush1.msra.mxu0 %v4186
        %4237 = vmatprep.subr.mxu0 0.0
        %4238 = vmatpush1.msra.mxu0 %v4187
        %4239 = vmatprep.subr.mxu0 0.0
        %4240 = vmatpush1.msra.mxu0 %v4188
        %4241 = vmatprep.subr.mxu0 0.0
        %4242 = vmatpush1.msra.mxu0 %v4189
        %4243 = vmatprep.subr.mxu0 0.0
        %4244 = vmatpush1.msra.mxu0 %v4190
        %4245 = vmatprep.subr.mxu0 0.0
        %4246 = vmatpush1.msra.mxu0 %v4191
        %4247 = vmatprep.subr.mxu0 0.0
        %4248 = vmatpush1.msra.mxu0 %v4192
        %4249 = vmatprep.subr.mxu0 0.0
        %4250 = vmatpush1.msra.mxu0 %v4193
        %4251 = vmatprep.subr.mxu0 0.0
        %4252 = vmatpush1.msra.mxu0 %v4194
        %4253 = vmatprep.subr.mxu0 0.0
        %4254 = vmatpush1.msra.mxu0 %v4195
        %4255 = vmatprep.subr.mxu0 0.0
        %4256 = vmatpush1.msra.mxu0 %v4196
        %4257 = vmatprep.subr.mxu0 0.0
        %4258 = vmatpush1.msra.mxu0 %v4197
        %4259 = vmatprep.subr.mxu0 0.0
        %4260 = vmatpush1.msra.mxu0 %v4198
        %4261 = vmatprep.subr.mxu0 0.0
        %4262 = vmatpush1.msra.mxu0 %v4199
        %4263 = vmatprep.subr.mxu0 0.0
        %4264 = vmatpush1.msra.mxu0 %v4200
        %4265 = vmatprep.mubr.f32.mxu0 %v4107
        %4266 = vmatmul.mubr.f32.gmra.mrb[0].mxu0 %v4100
        %v4267 = vpop.f32.mrb[0].mxu0
        %v4268 = vadd.f32 0.0, %v4267
        %v4269 = vpop.f32.mrb[0].mxu0
        %4270 = vdwg.mxu0
        %4271 = vmatprep.subr.mxu0 0.0
        %4272 = vmatpush1.msra.mxu0 %v4136
        %4273 = vmatprep.subr.mxu0 0.0
        %4274 = vmatpush1.msra.mxu0 %v4137
        %4275 = vmatprep.subr.mxu0 0.0
        %4276 = vmatpush1.msra.mxu0 %v4138
        %4277 = vmatprep.subr.mxu0 0.0
        %4278 = vmatpush1.msra.mxu0 %v4139
        %4279 = vmatprep.subr.mxu0 0.0
        %4280 = vmatpush1.msra.mxu0 %v4140
        %4281 = vmatprep.subr.mxu0 0.0
        %4282 = vmatpush1.msra.mxu0 %v4141
        %4283 = vmatprep.subr.mxu0 0.0
        %4284 = vmatpush1.msra.mxu0 %v4142
        %4285 = vmatprep.subr.mxu0 0.0
        %4286 = vmatpush1.msra.mxu0 %v4143
        %4287 = vmatprep.subr.mxu0 0.0
        %4288 = vmatpush1.msra.mxu0 %v4144
        %4289 = vmatprep.subr.mxu0 0.0
        %4290 = vmatpush1.msra.mxu0 %v4145
        %4291 = vmatprep.subr.mxu0 0.0
        %4292 = vmatpush1.msra.mxu0 %v4146
        %4293 = vmatprep.subr.mxu0 0.0
        %4294 = vmatpush1.msra.mxu0 %v4147
        %4295 = vmatprep.subr.mxu0 0.0
        %4296 = vmatpush1.msra.mxu0 %v4148
        %4297 = vmatprep.subr.mxu0 0.0
        %4298 = vmatpush1.msra.mxu0 %v4149
        %4299 = vmatprep.subr.mxu0 0.0
        %4300 = vmatpush1.msra.mxu0 %v4150
        %4301 = vmatprep.subr.mxu0 0.0
        %4302 = vmatpush1.msra.mxu0 %v4151
        %4303 = vmatprep.subr.mxu0 0.0
        %4304 = vmatpush1.msra.mxu0 %v4152
        %4305 = vmatprep.subr.mxu0 0.0
        %4306 = vmatpush1.msra.mxu0 %v4153
        %4307 = vmatprep.subr.mxu0 0.0
        %4308 = vmatpush1.msra.mxu0 %v4154
        %4309 = vmatprep.subr.mxu0 0.0
        %4310 = vmatpush1.msra.mxu0 %v4155
        %4311 = vmatprep.subr.mxu0 0.0
        %4312 = vmatpush1.msra.mxu0 %v4156
        %4313 = vmatprep.subr.mxu0 0.0
        %4314 = vmatpush1.msra.mxu0 %v4157
        %4315 = vmatprep.subr.mxu0 0.0
        %4316 = vmatpush1.msra.mxu0 %v4158
        %4317 = vmatprep.subr.mxu0 0.0
        %4318 = vmatpush1.msra.mxu0 %v4159
        %4319 = vmatprep.subr.mxu0 0.0
        %4320 = vmatpush1.msra.mxu0 %v4160
        %4321 = vmatprep.subr.mxu0 0.0
        %4322 = vmatpush1.msra.mxu0 %v4161
        %4323 = vmatprep.subr.mxu0 0.0
        %4324 = vmatpush1.msra.mxu0 %v4162
        %4325 = vmatprep.subr.mxu0 0.0
        %4326 = vmatpush1.msra.mxu0 %v4163
        %4327 = vmatprep.subr.mxu0 0.0
        %4328 = vmatpush1.msra.mxu0 %v4164
        %4329 = vmatprep.subr.mxu0 0.0
        %4330 = vmatpush1.msra.mxu0 %v4165
        %4331 = vmatprep.subr.mxu0 0.0
        %4332 = vmatpush1.msra.mxu0 %v4166
        %4333 = vmatprep.subr.mxu0 0.0
        %4334 = vmatpush1.msra.mxu0 %v4167
        %4335 = vmatprep.mubr.f32.mxu0 %v4093
        %4336 = vmatmul.mubr.f32.gmra.mrb[0].mxu0 %v4086
        %v4337 = vpop.f32.mrb[0].mxu0
        %v4338 = vadd.f32 %v4268, %v4337
        %v4339 = vpop.f32.mrb[0].mxu0
        %4340 = vdwg.mxu0
        %s4341 = scalar_lea.vmem %s7, 512
        %v4342 = vld [vmem:[%s4341] sm:$0xff]
        %v4343 = vld [vmem:[%s4341 + $0x8] sm:$0xff]
        %v4344 = vld [vmem:[%s4341 + $0x10] sm:$0xff]
        %v4345 = vld [vmem:[%s4341 + $0x18] sm:$0xff]
        %v4346 = vld [vmem:[%s4341 + $0x20] sm:$0xff]
        %v4347 = vld [vmem:[%s4341 + $0x28] sm:$0xff]
        %v4348 = vld [vmem:[%s4341 + $0x30] sm:$0xff]
        %v4349 = vld [vmem:[%s4341 + $0x38] sm:$0xff]
        %v4350 = vld [vmem:[%s4341 + $0x40] sm:$0xff]
        %v4351 = vld [vmem:[%s4341 + $0x48] sm:$0xff]
        %v4352 = vld [vmem:[%s4341 + $0x50] sm:$0xff]
        %v4353 = vld [vmem:[%s4341 + $0x58] sm:$0xff]
        %v4354 = vld [vmem:[%s4341 + $0x60] sm:$0xff]
        %v4355 = vld [vmem:[%s4341 + $0x68] sm:$0xff]
        %v4356 = vld [vmem:[%s4341 + $0x70] sm:$0xff]
        %v4357 = vld [vmem:[%s4341 + $0x78] sm:$0xff]
        %v4358 = vld [vmem:[%s4341 + $0x80] sm:$0xff]
        %v4359 = vld [vmem:[%s4341 + $0x88] sm:$0xff]
        %v4360 = vld [vmem:[%s4341 + $0x90] sm:$0xff]
        %v4361 = vld [vmem:[%s4341 + $0x98] sm:$0xff]
        %v4362 = vld [vmem:[%s4341 + $0xa0] sm:$0xff]
        %v4363 = vld [vmem:[%s4341 + $0xa8] sm:$0xff]
        %v4364 = vld [vmem:[%s4341 + $0xb0] sm:$0xff]
        %v4365 = vld [vmem:[%s4341 + $0xb8] sm:$0xff]
        %v4366 = vld [vmem:[%s4341 + $0xc0] sm:$0xff]
        %v4367 = vld [vmem:[%s4341 + $0xc8] sm:$0xff]
        %v4368 = vld [vmem:[%s4341 + $0xd0] sm:$0xff]
        %v4369 = vld [vmem:[%s4341 + $0xd8] sm:$0xff]
        %v4370 = vld [vmem:[%s4341 + $0xe0] sm:$0xff]
        %v4371 = vld [vmem:[%s4341 + $0xe8] sm:$0xff]
        %v4372 = vld [vmem:[%s4341 + $0xf0] sm:$0xff]
        %v4373 = vld [vmem:[%s4341 + $0xf8] sm:$0xff]
        %4374 = vmatprep.subr.mxu0 0.0
        %4375 = vmatpush1.msra.mxu0 %v4342
        %4376 = vmatprep.subr.mxu0 0.0
        %4377 = vmatpush1.msra.mxu0 %v4343
        %4378 = vmatprep.subr.mxu0 0.0
        %4379 = vmatpush1.msra.mxu0 %v4344
        %4380 = vmatprep.subr.mxu0 0.0
        %4381 = vmatpush1.msra.mxu0 %v4345
        %4382 = vmatprep.subr.mxu0 0.0
        %4383 = vmatpush1.msra.mxu0 %v4346
        %4384 = vmatprep.subr.mxu0 0.0
        %4385 = vmatpush1.msra.mxu0 %v4347
        %4386 = vmatprep.subr.mxu0 0.0
        %4387 = vmatpush1.msra.mxu0 %v4348
        %4388 = vmatprep.subr.mxu0 0.0
        %4389 = vmatpush1.msra.mxu0 %v4349
        %4390 = vmatprep.subr.mxu0 0.0
        %4391 = vmatpush1.msra.mxu0 %v4350
        %4392 = vmatprep.subr.mxu0 0.0
        %4393 = vmatpush1.msra.mxu0 %v4351
        %4394 = vmatprep.subr.mxu0 0.0
        %4395 = vmatpush1.msra.mxu0 %v4352
        %4396 = vmatprep.subr.mxu0 0.0
        %4397 = vmatpush1.msra.mxu0 %v4353
        %4398 = vmatprep.subr.mxu0 0.0
        %4399 = vmatpush1.msra.mxu0 %v4354
        %4400 = vmatprep.subr.mxu0 0.0
        %4401 = vmatpush1.msra.mxu0 %v4355
        %4402 = vmatprep.subr.mxu0 0.0
        %4403 = vmatpush1.msra.mxu0 %v4356
        %4404 = vmatprep.subr.mxu0 0.0
        %4405 = vmatpush1.msra.mxu0 %v4357
        %4406 = vmatprep.subr.mxu0 0.0
        %4407 = vmatpush1.msra.mxu0 %v4358
        %4408 = vmatprep.subr.mxu0 0.0
        %4409 = vmatpush1.msra.mxu0 %v4359
        %4410 = vmatprep.subr.mxu0 0.0
        %4411 = vmatpush1.msra.mxu0 %v4360
        %4412 = vmatprep.subr.mxu0 0.0
        %4413 = vmatpush1.msra.mxu0 %v4361
        %4414 = vmatprep.subr.mxu0 0.0
        %4415 = vmatpush1.msra.mxu0 %v4362
        %4416 = vmatprep.subr.mxu0 0.0
        %4417 = vmatpush1.msra.mxu0 %v4363
        %4418 = vmatprep.subr.mxu0 0.0
        %4419 = vmatpush1.msra.mxu0 %v4364
        %4420 = vmatprep.subr.mxu0 0.0
        %4421 = vmatpush1.msra.mxu0 %v4365
        %4422 = vmatprep.subr.mxu0 0.0
        %4423 = vmatpush1.msra.mxu0 %v4366
        %4424 = vmatprep.subr.mxu0 0.0
        %4425 = vmatpush1.msra.mxu0 %v4367
        %4426 = vmatprep.subr.mxu0 0.0
        %4427 = vmatpush1.msra.mxu0 %v4368
        %4428 = vmatprep.subr.mxu0 0.0
        %4429 = vmatpush1.msra.mxu0 %v4369
        %4430 = vmatprep.subr.mxu0 0.0
        %4431 = vmatpush1.msra.mxu0 %v4370
        %4432 = vmatprep.subr.mxu0 0.0
        %4433 = vmatpush1.msra.mxu0 %v4371
        %4434 = vmatprep.subr.mxu0 0.0
        %4435 = vmatpush1.msra.mxu0 %v4372
        %4436 = vmatprep.subr.mxu0 0.0
        %4437 = vmatpush1.msra.mxu0 %v4373
        %4438 = vmatprep.mubr.f32.mxu0 %v4121
        %4439 = vmatmul.mubr.f32.gmra.mrb[0].mxu0 %v4114
        %v4440 = vpop.f32.mrb[0].mxu0
        %v4441 = vadd.f32 0.0, %v4440
        %v4442 = vpop.f32.mrb[0].mxu0
        %4443 = vdwg.mxu0
        %v4444 = vadd.f32 %v4338, %v4441
        %s4445 = scalar_lea.vmem %s7, 768
        %v4446 = vld [vmem:[%s4445] sm:$0xff]
        %v4447 = vld [vmem:[%s4445 + $0x8] sm:$0xff]
        %v4448 = vld [vmem:[%s4445 + $0x10] sm:$0xff]
        %v4449 = vld [vmem:[%s4445 + $0x18] sm:$0xff]
        %v4450 = vld [vmem:[%s4445 + $0x20] sm:$0xff]
        %v4451 = vld [vmem:[%s4445 + $0x28] sm:$0xff]
        %v4452 = vld [vmem:[%s4445 + $0x30] sm:$0xff]
        %v4453 = vld [vmem:[%s4445 + $0x38] sm:$0xff]
        %v4454 = vld [vmem:[%s4445 + $0x40] sm:$0xff]
        %v4455 = vld [vmem:[%s4445 + $0x48] sm:$0xff]
        %v4456 = vld [vmem:[%s4445 + $0x50] sm:$0xff]
        %v4457 = vld [vmem:[%s4445 + $0x58] sm:$0xff]
        %v4458 = vld [vmem:[%s4445 + $0x60] sm:$0xff]
        %v4459 = vld [vmem:[%s4445 + $0x68] sm:$0xff]
        %v4460 = vld [vmem:[%s4445 + $0x70] sm:$0xff]
        %v4461 = vld [vmem:[%s4445 + $0x78] sm:$0xff]
        %v4462 = vld [vmem:[%s4445 + $0x80] sm:$0xff]
        %v4463 = vld [vmem:[%s4445 + $0x88] sm:$0xff]
        %v4464 = vld [vmem:[%s4445 + $0x90] sm:$0xff]
        %v4465 = vld [vmem:[%s4445 + $0x98] sm:$0xff]
        %v4466 = vld [vmem:[%s4445 + $0xa0] sm:$0xff]
        %v4467 = vld [vmem:[%s4445 + $0xa8] sm:$0xff]
        %v4468 = vld [vmem:[%s4445 + $0xb0] sm:$0xff]
        %v4469 = vld [vmem:[%s4445 + $0xb8] sm:$0xff]
        %v4470 = vld [vmem:[%s4445 + $0xc0] sm:$0xff]
        %v4471 = vld [vmem:[%s4445 + $0xc8] sm:$0xff]
        %v4472 = vld [vmem:[%s4445 + $0xd0] sm:$0xff]
        %v4473 = vld [vmem:[%s4445 + $0xd8] sm:$0xff]
        %v4474 = vld [vmem:[%s4445 + $0xe0] sm:$0xff]
        %v4475 = vld [vmem:[%s4445 + $0xe8] sm:$0xff]
        %v4476 = vld [vmem:[%s4445 + $0xf0] sm:$0xff]
        %v4477 = vld [vmem:[%s4445 + $0xf8] sm:$0xff]
        %4478 = vmatprep.subr.mxu0 0.0
        %4479 = vmatpush1.msra.mxu0 %v4446
        %4480 = vmatprep.subr.mxu0 0.0
        %4481 = vmatpush1.msra.mxu0 %v4447
        %4482 = vmatprep.subr.mxu0 0.0
        %4483 = vmatpush1.msra.mxu0 %v4448
        %4484 = vmatprep.subr.mxu0 0.0
        %4485 = vmatpush1.msra.mxu0 %v4449
        %4486 = vmatprep.subr.mxu0 0.0
        %4487 = vmatpush1.msra.mxu0 %v4450
        %4488 = vmatprep.subr.mxu0 0.0
        %4489 = vmatpush1.msra.mxu0 %v4451
        %4490 = vmatprep.subr.mxu0 0.0
        %4491 = vmatpush1.msra.mxu0 %v4452
        %4492 = vmatprep.subr.mxu0 0.0
        %4493 = vmatpush1.msra.mxu0 %v4453
        %4494 = vmatprep.subr.mxu0 0.0
        %4495 = vmatpush1.msra.mxu0 %v4454
        %4496 = vmatprep.subr.mxu0 0.0
        %4497 = vmatpush1.msra.mxu0 %v4455
        %4498 = vmatprep.subr.mxu0 0.0
        %4499 = vmatpush1.msra.mxu0 %v4456
        %4500 = vmatprep.subr.mxu0 0.0
        %4501 = vmatpush1.msra.mxu0 %v4457
        %4502 = vmatprep.subr.mxu0 0.0
        %4503 = vmatpush1.msra.mxu0 %v4458
        %4504 = vmatprep.subr.mxu0 0.0
        %4505 = vmatpush1.msra.mxu0 %v4459
        %4506 = vmatprep.subr.mxu0 0.0
        %4507 = vmatpush1.msra.mxu0 %v4460
        %4508 = vmatprep.subr.mxu0 0.0
        %4509 = vmatpush1.msra.mxu0 %v4461
        %4510 = vmatprep.subr.mxu0 0.0
        %4511 = vmatpush1.msra.mxu0 %v4462
        %4512 = vmatprep.subr.mxu0 0.0
        %4513 = vmatpush1.msra.mxu0 %v4463
        %4514 = vmatprep.subr.mxu0 0.0
        %4515 = vmatpush1.msra.mxu0 %v4464
        %4516 = vmatprep.subr.mxu0 0.0
        %4517 = vmatpush1.msra.mxu0 %v4465
        %4518 = vmatprep.subr.mxu0 0.0
        %4519 = vmatpush1.msra.mxu0 %v4466
        %4520 = vmatprep.subr.mxu0 0.0
        %4521 = vmatpush1.msra.mxu0 %v4467
        %4522 = vmatprep.subr.mxu0 0.0
        %4523 = vmatpush1.msra.mxu0 %v4468
        %4524 = vmatprep.subr.mxu0 0.0
        %4525 = vmatpush1.msra.mxu0 %v4469
        %4526 = vmatprep.subr.mxu0 0.0
        %4527 = vmatpush1.msra.mxu0 %v4470
        %4528 = vmatprep.subr.mxu0 0.0
        %4529 = vmatpush1.msra.mxu0 %v4471
        %4530 = vmatprep.subr.mxu0 0.0
        %4531 = vmatpush1.msra.mxu0 %v4472
        %4532 = vmatprep.subr.mxu0 0.0
        %4533 = vmatpush1.msra.mxu0 %v4473
        %4534 = vmatprep.subr.mxu0 0.0
        %4535 = vmatpush1.msra.mxu0 %v4474
        %4536 = vmatprep.subr.mxu0 0.0
        %4537 = vmatpush1.msra.mxu0 %v4475
        %4538 = vmatprep.subr.mxu0 0.0
        %4539 = vmatpush1.msra.mxu0 %v4476
        %4540 = vmatprep.subr.mxu0 0.0
        %4541 = vmatpush1.msra.mxu0 %v4477
        %4542 = vmatprep.mubr.f32.mxu0 %v4135
        %4543 = vmatmul.mubr.f32.gmra.mrb[0].mxu0 %v4128
        %v4544 = vpop.f32.mrb[0].mxu0
        %v4545 = vadd.f32 0.0, %v4544
        %v4546 = vpop.f32.mrb[0].mxu0
        %4547 = vdwg.mxu0
        %v4548 = vadd.f32 %v4444, %v4545
        %v4549 = vld [vmem:[%s8] sm:$0x1]
        %v4550 = vadd.f32 %v4548, %v4549
        %v4551 = vmax.f32 %v4550, 0.0
        %4552 = vst [vmem:[%s508] sm:$0x1] %v4551
        %v4553 = vld [vmem:[%s9] sm:$0xff]
        %v4554 = vld [vmem:[%s9 + $0x8] sm:$0xff]
        %v4555 = vld [vmem:[%s9 + $0x10] sm:$0xff]
        %v4556 = vld [vmem:[%s9 + $0x18] sm:$0xff]
        %v4557 = vld [vmem:[%s9 + $0x20] sm:$0xff]
        %v4558 = vld [vmem:[%s9 + $0x28] sm:$0xff]
        %v4559 = vld [vmem:[%s9 + $0x30] sm:$0xff]
        %v4560 = vld [vmem:[%s9 + $0x38] sm:$0xff]
        %v4561 = vld [vmem:[%s9 + $0x40] sm:$0xff]
        %v4562 = vld [vmem:[%s9 + $0x48] sm:$0xff]
        %v4563 = vld [vmem:[%s9 + $0x50] sm:$0xff]
        %v4564 = vld [vmem:[%s9 + $0x58] sm:$0xff]
        %v4565 = vld [vmem:[%s9 + $0x60] sm:$0xff]
        %v4566 = vld [vmem:[%s9 + $0x68] sm:$0xff]
        %v4567 = vld [vmem:[%s9 + $0x70] sm:$0xff]
        %v4568 = vld [vmem:[%s9 + $0x78] sm:$0xff]
        %v4569 = vld [vmem:[%s10] sm:$0x1]
        %4570 = vmatprep.subr.mxu0 0.0
        %4571 = vmatpush1.msra.mxu0 %v4553
        %4572 = vmatprep.subr.mxu0 0.0
        %4573 = vmatpush1.msra.mxu0 %v4554
        %4574 = vmatprep.subr.mxu0 0.0
        %4575 = vmatpush1.msra.mxu0 %v4555
        %4576 = vmatprep.subr.mxu0 0.0
        %4577 = vmatpush1.msra.mxu0 %v4556
        %4578 = vmatprep.subr.mxu0 0.0
        %4579 = vmatpush1.msra.mxu0 %v4557
        %4580 = vmatprep.subr.mxu0 0.0
        %4581 = vmatpush1.msra.mxu0 %v4558
        %4582 = vmatprep.subr.mxu0 0.0
        %4583 = vmatpush1.msra.mxu0 %v4559
        %4584 = vmatprep.subr.mxu0 0.0
        %4585 = vmatpush1.msra.mxu0 %v4560
        %4586 = vmatprep.subr.mxu0 0.0
        %4587 = vmatpush1.msra.mxu0 %v4561
        %4588 = vmatprep.subr.mxu0 0.0
        %4589 = vmatpush1.msra.mxu0 %v4562
        %4590 = vmatprep.subr.mxu0 0.0
        %4591 = vmatpush1.msra.mxu0 %v4563
        %4592 = vmatprep.subr.mxu0 0.0
        %4593 = vmatpush1.msra.mxu0 %v4564
        %4594 = vmatprep.subr.mxu0 0.0
        %4595 = vmatpush1.msra.mxu0 %v4565
        %4596 = vmatprep.subr.mxu0 0.0
        %4597 = vmatpush1.msra.mxu0 %v4566
        %4598 = vmatprep.subr.mxu0 0.0
        %4599 = vmatpush1.msra.mxu0 %v4567
        %4600 = vmatprep.subr.mxu0 0.0
        %4601 = vmatpush1.msra.mxu0 %v4568
        %4602 = vmatprep.subr.mxu0 0.0
        %4603 = vmatpush1.msra.mxu0 0.0
        %4604 = vmatprep.subr.mxu0 0.0
        %4605 = vmatpush1.msra.mxu0 0.0
        %4606 = vmatprep.subr.mxu0 0.0
        %4607 = vmatpush1.msra.mxu0 0.0
        %4608 = vmatprep.subr.mxu0 0.0
        %4609 = vmatpush1.msra.mxu0 0.0
        %4610 = vmatprep.subr.mxu0 0.0
        %4611 = vmatpush1.msra.mxu0 0.0
        %4612 = vmatprep.subr.mxu0 0.0
        %4613 = vmatpush1.msra.mxu0 0.0
        %4614 = vmatprep.subr.mxu0 0.0
        %4615 = vmatpush1.msra.mxu0 0.0
        %4616 = vmatprep.subr.mxu0 0.0
        %4617 = vmatpush1.msra.mxu0 0.0
        %4618 = vmatprep.subr.mxu0 0.0
        %4619 = vmatpush1.msra.mxu0 0.0
        %4620 = vmatprep.subr.mxu0 0.0
        %4621 = vmatpush1.msra.mxu0 0.0
        %4622 = vmatprep.subr.mxu0 0.0
        %4623 = vmatpush1.msra.mxu0 0.0
        %4624 = vmatprep.subr.mxu0 0.0
        %4625 = vmatpush1.msra.mxu0 0.0
        %4626 = vmatprep.subr.mxu0 0.0
        %4627 = vmatpush1.msra.mxu0 0.0
        %4628 = vmatprep.subr.mxu0 0.0
        %4629 = vmatpush1.msra.mxu0 0.0
        %4630 = vmatprep.subr.mxu0 0.0
        %4631 = vmatpush1.msra.mxu0 0.0
        %4632 = vmatprep.subr.mxu0 0.0
        %4633 = vmatpush1.msra.mxu0 0.0
        %4634 = vmatprep.mubr.f32.mxu0 0.0
        %4635 = vmatmul.mubr.f32.gmra.mrb[0].mxu0 %v4551
        %v4636 = vpop.f32.mrb[0].mxu0
        %v4637 = vadd.f32 %v4569, %v4636
        %v4638 = vpop.f32.mrb[0].mxu0
        %4639 = vdwg.mxu0
        %vm4640 = vcmask 73728
        %4641 = vst.msk [vmem:[%s536] sm:$0x1] %vm4640, %v4637
        %p4642 = scmp.lt.s32.totalorder %s30, 1
        %s4643 = scalar_select %p4642, %s30, 1
        %s4644 = smul.addr %s4643, 16
        %s4645 = smul.addr %s4644, 8
        %s4646 = scalar_lea.vmem %s11, %s4645
        %p4647 = scmp.lt.s32.totalorder %s30, 1
        %s4648 = scalar_select %p4647, %s30, 1
        %s4649 = smul.addr %s4648, 8
        %s4650 = smul.addr %s4649, 8
        %s4651 = scalar_lea.vmem %s12, %s4650
        %p4652 = scmp.lt.s32.totalorder %s30, 1
        %s4653 = scalar_select %p4652, %s30, 1
        %s4654 = smul.addr %s4653, 4
        %s4655 = smul.addr %s4654, 8
        %s4656 = scalar_lea.vmem %s13, %s4655
        %s4657 = sand.u32 %s352, 1
        %s4658 = scalar_lea.sflag [#allocation3], %s4657
        %s4659 = sand.u32 %s352, 1
        %s4660 = scalar_lea.vmem [#allocation2], %s4659
        %p4661 = scmp.lt.s32.totalorder %s30, 1
        %s4662 = scalar_select %p4661, %s30, 1
        %s4663 = scalar_lea.vmem %s15, %s4662
        // Predicated region
        $region65: #{convnet_forward.1} parent=63 // pred_check
          %p4664 = pneg %p284
        $region66: #{convnet_forward.1} parent=63 // pred_check_branch
          %4666 = sbr.rel (%p4664) target = $region68
        $region67: #{convnet_forward.1} parent=63 // pred_region
          _
        $region68: #{convnet_forward.1} parent=63 // pred_fallthru
          _
        // Predicated region
        $region69: #{convnet_forward.1} parent=63 // pred_check
          %p4667 = pneg %p310
        $region70: #{convnet_forward.1} parent=63 // pred_check_branch
          %4669 = sbr.rel (%p4667) target = $region72
        $region71: #{convnet_forward.1} parent=63 // pred_region
          _
        $region72: #{convnet_forward.1} parent=63 // pred_fallthru
          _
        // Predicated region
        $region73: #{convnet_forward.1} parent=63 // pred_check
          %p4670 = pneg %p336
        $region74: #{convnet_forward.1} parent=63 // pred_check_branch
          %4672 = sbr.rel (%p4670) target = $region76
        $region75: #{convnet_forward.1} parent=63 // pred_region
          _
        $region76: #{convnet_forward.1} parent=63 // pred_fallthru
          _
        // Predicated region
        $region77: #{convnet_forward.1} parent=63 // pred_check
          %p4673 = pneg %p362
        $region78: #{convnet_forward.1} parent=63 // pred_check_branch
          %4675 = sbr.rel (%p4673) target = $region80
        $region79: #{convnet_forward.1} parent=63 // pred_region
          %s4677 = ssub.s32 16, 16
          %4678 = vsyncadd %s4658, %s4677
          %s4679 = smul.addr %s30, 16
          %s4680 = scalar_lea.hbm %s14, %s4679
          %s4682 = sshll.u32 %s4660, 4
          %s4683 = int_to_ptr.vmem [resolvable:$true] %s4682
          %4685 = dma.vmem_to_hbm [thread:$0]  %s4683, 16, %s4680, %s4658
        $region80: #{convnet_forward.1} parent=63 // pred_fallthru
          _
        // Predicated region
        $region81: #{convnet_forward.1} parent=63 // pred_check
          %p4686 = pneg %p388
        $region82: #{convnet_forward.1} parent=63 // pred_check_branch
          %4688 = sbr.rel (%p4686) target = $region84
        $region83: #{convnet_forward.1} parent=63 // pred_region
          _
        $region84: #{convnet_forward.1} parent=63 // pred_fallthru
          _
      $region64: #{convnet_forward.1} parent=5 // pred_fallthru
        _
      %p4689 = scmp.le.s32.totalorder 2, %s25
      // Predicated region
      $region85: #{convnet_forward.1} parent=5 // pred_check
        %p4690 = pneg %p4689
      $region86: #{convnet_forward.1} parent=5 // pred_check_branch
        %4692 = sbr.rel (%p4690) target = $region88
      $region87: #{convnet_forward.1} parent=5 // pred_region
        %s4693 = ssub.s32 %s25, 2
        // Predicated region
        $region89: #{convnet_forward.1} parent=87 // pred_check
          %p4694 = pneg %p290
        $region90: #{convnet_forward.1} parent=87 // pred_check_branch
          %4696 = sbr.rel (%p4694) target = $region92
        $region91: #{convnet_forward.1} parent=87 // pred_region
          %p4697 = scmp.lt.s32.totalorder %s31, 1
          %s4698 = scalar_select %p4697, %s31, 1
          %s4699 = smul.addr %s4698, 16
          %s4700 = smul.addr %s4699, 8
          %s4701 = scalar_lea.vmem %s11, %s4700
        $region92: #{convnet_forward.1} parent=87 // pred_fallthru
          _
        // Predicated region
        $region93: #{convnet_forward.1} parent=87 // pred_check
          %p4702 = pneg %p316
        $region94: #{convnet_forward.1} parent=87 // pred_check_branch
          %4704 = sbr.rel (%p4702) target = $region96
        $region95: #{convnet_forward.1} parent=87 // pred_region
          %p4705 = scmp.lt.s32.totalorder %s31, 1
          %s4706 = scalar_select %p4705, %s31, 1
          %s4707 = smul.addr %s4706, 8
          %s4708 = smul.addr %s4707, 8
          %s4709 = scalar_lea.vmem %s12, %s4708
        $region96: #{convnet_forward.1} parent=87 // pred_fallthru
          _
        // Predicated region
        $region97: #{convnet_forward.1} parent=87 // pred_check
          %p4710 = pneg %p342
        $region98: #{convnet_forward.1} parent=87 // pred_check_branch
          %4712 = sbr.rel (%p4710) target = $region100
        $region99: #{convnet_forward.1} parent=87 // pred_region
          %p4713 = scmp.lt.s32.totalorder %s31, 1
          %s4714 = scalar_select %p4713, %s31, 1
          %s4715 = smul.addr %s4714, 4
          %s4716 = smul.addr %s4715, 8
          %s4717 = scalar_lea.vmem %s13, %s4716
        $region100: #{convnet_forward.1} parent=87 // pred_fallthru
          _
        // Predicated region
        $region101: #{convnet_forward.1} parent=87 // pred_check
          %p4718 = pneg %p368
        $region102: #{convnet_forward.1} parent=87 // pred_check_branch
          %4720 = sbr.rel (%p4718) target = $region104
        $region103: #{convnet_forward.1} parent=87 // pred_region
          %s4721 = sand.u32 %s353, 1
          %s4722 = scalar_lea.sflag [#allocation3], %s4721
          %s4723 = sand.u32 %s353, 1
          %s4724 = scalar_lea.vmem [#allocation2], %s4723
          %4725 = dma.done %s4722, 16
        $region104: #{convnet_forward.1} parent=87 // pred_fallthru
          _
        // Predicated region
        $region105: #{convnet_forward.1} parent=87 // pred_check
          %p4726 = pneg %p394
        $region106: #{convnet_forward.1} parent=87 // pred_check_branch
          %4728 = sbr.rel (%p4726) target = $region108
        $region107: #{convnet_forward.1} parent=87 // pred_region
          %p4729 = scmp.lt.s32.totalorder %s31, 1
          %s4730 = scalar_select %p4729, %s31, 1
          %s4731 = scalar_lea.vmem %s15, %s4730
        $region108: #{convnet_forward.1} parent=87 // pred_fallthru
          _
      $region88: #{convnet_forward.1} parent=5 // pred_fallthru
        _
    $region6: #{convnet_forward.1} parent=1 // loop_footer
      %s29 = sadd.s32 1, %s25
    $region7: #{convnet_forward.1} parent=1 // loop_footer_branch
      %24 = sbr.rel target = $region3
    $region8: #{convnet_forward.1} parent=1 // loop_exit
      _
    %4732 = vsyncpa [#allocation3], 1
    %s4733 = scalar_lea.sflag [#allocation3], 1
    %4734 = vsyncpa %s4733, 1

</llo_original>
